<compile_context>
chip_gen: v7x
topology: tpu7x:2x2x1
jax: 0.10.0
libtpu: 0.0.40
codegen_flags: <defaults>
</compile_context>

<pallas_src>
import jax
import jax.numpy as jnp
from jax import lax
from jax.experimental import pallas as pl
from jax.experimental.pallas import tpu as pltpu


# --------------------------------------------------------------------------- #
# Kernel: one batch element per grid step.
# x_ref  : (H, W, Cin_p)      bf16   input image (channel-padded, no spatial pad)
# w1_ref : (Cin_p, P_p)       bf16   1x1 conv, BN1 scale folded in
# w2_ref : (9, P_p, P_p)      bf16   3x3 conv taps (ky*3+kx), BN2 scale folded
# w3_ref : (P_p, Cout_p)      bf16   1x1 conv, BN3 scale folded in
# b*_ref : (1, C)             f32    folded BN biases
# out_ref: (H, W, Cout_p)     bf16 (or f32)
# h1_ref : (H+2, W+2, P_p)    bf16   VMEM scratch with zero ring for conv2 pad
# --------------------------------------------------------------------------- #
def bottleneck_kernel(x_ref, w1_ref, b1_ref, w2_ref, b2_ref, w3_ref, b3_ref,
                      out_ref, h1_ref):
    H, W, Cin = x_ref.shape
    Cout = out_ref.shape[2]
    P = w1_ref.shape[1]
    HW = H * W

    # ---- conv1 (1x1) + folded BN1 bias + ReLU (f32 accumulate) -------------
    h1 = jnp.dot(x_ref[...].reshape(HW, Cin), w1_ref[...],
                 preferred_element_type=jnp.float32)
    h1 = jnp.maximum(h1 + b1_ref[...], 0.0).astype(jnp.bfloat16)

    # Zero-padding ring for the 3x3 conv: 4 static border stores + 1 interior
    # store into the (H+2, W+2, P) scratch.  No iota/where masking work.
    zrow = jnp.zeros((1, W + 2, P), jnp.bfloat16)
    zcol = jnp.zeros((H + 2, 1, P), jnp.bfloat16)
    h1_ref[0:1, :, :] = zrow
    h1_ref[H + 1:H + 2, :, :] = zrow
    h1_ref[:, 0:1, :] = zcol
    h1_ref[:, W + 1:W + 2, :] = zcol
    h1_ref[1:H + 1, 1:W + 1, :] = h1.reshape(H, W, P)

    # ---- conv2 (3x3, stride 1, pad 1): 9 accumulated MXU matmuls -----------
    acc = jnp.dot(h1_ref[0:H, 0:W, :].reshape(HW, P), w2_ref[0, :, :],
                  preferred_element_type=jnp.float32)
    for k in range(1, 9):
        ky, kx = divmod(k, 3)
        win = h1_ref[ky:ky + H, kx:kx + W, :].reshape(HW, P)
        acc = acc + jnp.dot(win, w2_ref[k, :, :],
                            preferred_element_type=jnp.float32)
    h2 = jnp.maximum(acc + b2_ref[...], 0.0).astype(jnp.bfloat16)

    # ---- conv3 (1x1) + folded BN3 bias + ReLU -------------------------------
    h3 = jnp.dot(h2, w3_ref[...], preferred_element_type=jnp.float32)
    h3 = jnp.maximum(h3 + b3_ref[...], 0.0)

    # ---- residual added AFTER the last ReLU (matches this module) ----------
    # Re-read x_ref here (short live range) instead of hoisting it above.
    res = x_ref[...].reshape(HW, Cin).astype(jnp.float32)
    out_ref[...] = (h3 + res).reshape(H, W, Cout).astype(out_ref.dtype)


# --------------------------------------------------------------------------- #
# Parameter preparation: fold BN scale into weights, pad channels to 128,
# cast weights to bf16, reshape w2 to per-tap (9, P, P).
# --------------------------------------------------------------------------- #
def fold_bn(gamma, beta, mean, var, eps=1e-5):
    scale = gamma / jnp.sqrt(var + eps)
    bias = beta - mean * scale
    return scale, bias


def _round_up(n, m):
    return (n + m - 1) // m * m


def _pad_to(a, target_shape):
    return jnp.pad(a, [(0, t - s) for s, t in zip(a.shape, target_shape)])


def pack_params(w1, w2, w3, bn1, bn2, bn3, lane=128):
    cin, planes = w1.shape
    cout = w3.shape[1]
    s1, b1 = fold_bn(*bn1)
    s2, b2 = fold_bn(*bn2)
    s3, b3 = fold_bn(*bn3)
    cinp = _round_up(cin, lane)
    pp = _round_up(planes, lane)
    coutp = _round_up(cout, lane)

    w1f = _pad_to(w1 * s1[None, :], (cinp, pp)).astype(jnp.bfloat16)
    w2f = _pad_to(w2 * s2[None, None, None, :], (3, 3, pp, pp))
    w2f = w2f.reshape(9, pp, pp).astype(jnp.bfloat16)
    w3f = _pad_to(w3 * s3[None, :], (pp, coutp)).astype(jnp.bfloat16)

    b1p = _pad_to(b1[None, :], (1, pp)).astype(jnp.float32)
    b2p = _pad_to(b2[None, :], (1, pp)).astype(jnp.float32)
    b3p = _pad_to(b3[None, :], (1, coutp)).astype(jnp.float32)

    return dict(w1=w1f, b1=b1p, w2=w2f, b2=b2p, w3=w3f, b3=b3p,
                cin=cin, planes=planes, cout=cout)


# --------------------------------------------------------------------------- #
# Forward wrapper: NHWC in (f32) / NHWC out (bf16 by default).
# --------------------------------------------------------------------------- #
def bottleneck_forward(x_nhwc, params, out_dtype=jnp.bfloat16):
    N, H, W, cin = x_nhwc.shape
    cinp, pp = params["w1"].shape
    coutp = params["w3"].shape[1]
    cout = params["cout"]
    assert cin == params["cin"]
    assert cinp == coutp and cin == cout, \
        "identity residual requires inplanes == planes * 4"

    # Single fused pass: channel-pad to lane width + cast to bf16.
    # (No spatial pad, no overlapping-slab duplication, no extra gather pass.)
    xp = jnp.pad(x_nhwc, ((0, 0), (0, 0), (0, 0), (0, cinp - cin)))
    xp = xp.astype(jnp.bfloat16)                       # (N, H, W, cinp)

    out_itemsize = jnp.dtype(out_dtype).itemsize
    weight_bytes = ((params["w1"].size + params["w2"].size
                     + params["w3"].size) * 2 + (2 * pp + coutp) * 4)
    # Double-buffered input/output blocks + (default double-buffered) weights
    # + h1 scratch.  TODO(synk): on v7x (64 MiB VMEM) single-buffer the
    # constant-index weight BlockSpecs for production channel widths.
    est_vmem = (2 * H * W * cinp * 2 + 2 * H * W * coutp * out_itemsize
                + 2 * weight_bytes + (H + 2) * (W + 2) * pp * 2)
    vmem_limit = int(min(max(2 * est_vmem, 32 * 2**20), 64 * 2**20))

    flops = 2 * N * H * W * (cinp * pp + 9 * pp * pp + pp * coutp)
    bytes_accessed = int(xp.size * 2 + N * H * W * coutp * out_itemsize
                         + weight_bytes)

    out = pl.pallas_call(
        bottleneck_kernel,
        out_shape=jax.ShapeDtypeStruct((N, H, W, coutp), out_dtype),
        grid_spec=pltpu.PrefetchScalarGridSpec(
            num_scalar_prefetch=0,
            grid=(N,),
            in_specs=[
                pl.BlockSpec((None, H, W, cinp), lambda b: (b, 0, 0, 0)),
                pl.BlockSpec((cinp, pp), lambda b: (0, 0)),
                pl.BlockSpec((1, pp), lambda b: (0, 0)),
                pl.BlockSpec((9, pp, pp), lambda b: (0, 0, 0)),
                pl.BlockSpec((1, pp), lambda b: (0, 0)),
                pl.BlockSpec((pp, coutp), lambda b: (0, 0)),
                pl.BlockSpec((1, coutp), lambda b: (0, 0)),
            ],
            out_specs=pl.BlockSpec((None, H, W, coutp),
                                   lambda b: (b, 0, 0, 0)),
            scratch_shapes=[pltpu.VMEM((H + 2, W + 2, pp), jnp.bfloat16)],
        ),
        compiler_params=pltpu.CompilerParams(
            dimension_semantics=("parallel",),
            vmem_limit_bytes=vmem_limit),
        cost_estimate=pl.CostEstimate(flops=flops, transcendentals=0,
                                      bytes_accessed=bytes_accessed),
    )(xp, params["w1"], params["b1"], params["w2"], params["b2"],
      params["w3"], params["b3"])

    return out[..., :cout]


# --------------------------------------------------------------------------- #
# Pure-JAX f32 reference (mirrors the PyTorch forward) for verification.
# --------------------------------------------------------------------------- #
def ref_forward(x, w1, w2, w3, bn1, bn2, bn3, eps=1e-5):
    dn = ("NHWC", "HWIO", "NHWC")
    relu = lambda t: jnp.maximum(t, 0.0)

    def bn(t, p):
        g, b, m, v = p
        return (t - m) * (g / jnp.sqrt(v + eps)) + b

    h = lax.conv_general_dilated(x, w1[None, None], (1, 1), "VALID",
                                 dimension_numbers=dn)
    h = relu(bn(h, bn1))
    h = lax.conv_general_dilated(h, w2, (1, 1), [(1, 1), (1, 1)],
                                 dimension_numbers=dn)
    h = relu(bn(h, bn2))
    h = lax.conv_general_dilated(h, w3[None, None], (1, 1), "VALID",
                                 dimension_numbers=dn)
    h = relu(bn(h, bn3))
    return h + x                     # residual added after the last ReLU


if __name__ == "__main__":
    # small shapes: batch=2, planes=4, inplanes = planes*4 = 16, spatial=16
    N, H, W = 2, 16, 16
    planes = 4
    inplanes = planes * 4            # identity residual requires Cin == Cout
    cout = planes * 4

    key = jax.random.PRNGKey(0)
    ks = jax.random.split(key, 16)

    x_nchw = jax.random.normal(ks[0], (N, inplanes, H, W), jnp.float32)
    x_nhwc = jnp.transpose(x_nchw, (0, 2, 3, 1))      # NCHW -> NHWC

    w1 = 0.1 * jax.random.normal(ks[1], (inplanes, planes), jnp.float32)      # 1x1
    w2 = 0.1 * jax.random.normal(ks[2], (3, 3, planes, planes), jnp.float32)  # 3x3 HWIO
    w3 = 0.1 * jax.random.normal(ks[3], (planes, cout), jnp.float32)          # 1x1

    def bn_params(kg, kb, km, kv, c):
        gamma = 0.5 + jax.random.uniform(kg, (c,), jnp.float32)
        beta = 0.1 * jax.random.normal(kb, (c,), jnp.float32)
        mean = 0.1 * jax.random.normal(km, (c,), jnp.float32)
        var = 0.5 + jax.random.uniform(kv, (c,), jnp.float32)
        return gamma, beta, mean, var

    bn1 = bn_params(ks[4], ks[5], ks[6], ks[7], planes)
    bn2 = bn_params(ks[8], ks[9], ks[10], ks[11], planes)
    bn3 = bn_params(ks[12], ks[13], ks[14], ks[15], cout)

    params = pack_params(w1, w2, w3, bn1, bn2, bn3)

    out = jax.block_until_ready(bottleneck_forward(x_nhwc, params))
    ref = jax.block_until_ready(ref_forward(x_nhwc, w1, w2, w3, bn1, bn2, bn3))

    assert out.shape == (N, H, W, cout)
    max_err = float(jnp.max(jnp.abs(out.astype(jnp.float32) - ref)))
    # bf16 matmul inputs + bf16 output store vs f32 reference -> loose tol
    assert max_err < 1e-1, max_err

    print("KERNEL_OK")
</pallas_src>

<mosaic_0001>
module attributes {stable_mosaic.version = 11 : i64} {
  func.func @bottleneck_kernel(%arg0: i32, %arg1: memref<1x16x16x128xbf16, #tpu.memory_space<vmem>>, %arg2: memref<128x128xbf16, #tpu.memory_space<vmem>>, %arg3: memref<1x128xf32, #tpu.memory_space<vmem>>, %arg4: memref<9x128x128xbf16, #tpu.memory_space<vmem>>, %arg5: memref<1x128xf32, #tpu.memory_space<vmem>>, %arg6: memref<128x128xbf16, #tpu.memory_space<vmem>>, %arg7: memref<1x128xf32, #tpu.memory_space<vmem>>, %arg8: memref<1x16x16x128xbf16, #tpu.memory_space<vmem>>, %arg9: memref<18x18x128xbf16, #tpu.memory_space<vmem>>) attributes {dimension_semantics = [#tpu.dimension_semantics<parallel>], iteration_bounds = array<i64: 2>, scalar_prefetch = 0 : i64, scratch_operands = 1 : i64, tpu.core_type = #tpu.core_type<tc>, window_params = [{transform_indices = @transform_0, window_bounds = array<i64: 1, 16, 16, 128>}, {pipeline_mode = #tpu.pipeline_mode<synchronous>, transform_indices = @transform_1, window_bounds = array<i64: 128, 128>}, {pipeline_mode = #tpu.pipeline_mode<synchronous>, transform_indices = @transform_2, window_bounds = array<i64: 1, 128>}, {pipeline_mode = #tpu.pipeline_mode<synchronous>, transform_indices = @transform_3, window_bounds = array<i64: 9, 128, 128>}, {pipeline_mode = #tpu.pipeline_mode<synchronous>, transform_indices = @transform_4, window_bounds = array<i64: 1, 128>}, {pipeline_mode = #tpu.pipeline_mode<synchronous>, transform_indices = @transform_5, window_bounds = array<i64: 128, 128>}, {pipeline_mode = #tpu.pipeline_mode<synchronous>, transform_indices = @transform_6, window_bounds = array<i64: 1, 128>}, {transform_indices = @transform_7, window_bounds = array<i64: 1, 16, 16, 128>}]} {
    %c0 = arith.constant 0 : index
    %c0_0 = arith.constant 0 : index
    %c0_1 = arith.constant 0 : index
    %c0_2 = arith.constant 0 : index
    %0 = vector.load %arg1[%c0, %c0_0, %c0_1, %c0_2] : memref<1x16x16x128xbf16, #tpu.memory_space<vmem>>, vector<1x16x16x128xbf16>
    %1 = vector.shape_cast %0 : vector<1x16x16x128xbf16> to vector<16x16x128xbf16>
    %2 = vector.shape_cast %1 : vector<16x16x128xbf16> to vector<256x128xbf16>
    %c0_3 = arith.constant 0 : index
    %c0_4 = arith.constant 0 : index
    %3 = vector.load %arg2[%c0_3, %c0_4] : memref<128x128xbf16, #tpu.memory_space<vmem>>, vector<128x128xbf16>
    %cst = arith.constant dense<0.000000e+00> : vector<256x128xf32>
    %4 = tpu.matmul %2, %3, %cst {dimension_numbers = #tpu.dot_dimension_numbers<[1], [0], [0], [1], [0, 0, 1, 1], [], []>} : vector<256x128xbf16>, vector<128x128xbf16>, vector<256x128xf32> -> vector<256x128xf32>
    %c0_5 = arith.constant 0 : index
    %c0_6 = arith.constant 0 : index
    %5 = vector.load %arg3[%c0_5, %c0_6] : memref<1x128xf32, #tpu.memory_space<vmem>>, vector<1x128xf32>
    %6 = vector.broadcast %5 : vector<1x128xf32> to vector<256x128xf32>
    %7 = arith.addf %4, %6 : vector<256x128xf32>
    %cst_7 = arith.constant 0.000000e+00 : f32
    %8 = vector.broadcast %cst_7 : f32 to vector<256x128xf32>
    %9 = arith.maximumf %7, %8 : vector<256x128xf32>
    %10 = arith.truncf %9 : vector<256x128xf32> to vector<256x128xbf16>
    %cst_8 = arith.constant 0.000000e+00 : bf16
    %11 = vector.broadcast %cst_8 : bf16 to vector<1x18x128xbf16>
    %cst_9 = arith.constant 0.000000e+00 : bf16
    %12 = vector.broadcast %cst_9 : bf16 to vector<18x1x128xbf16>
    %c0_10 = arith.constant 0 : index
    %c0_11 = arith.constant 0 : index
    %c0_12 = arith.constant 0 : index
    %13 = vector.load %arg9[%c0_10, %c0_11, %c0_12] : memref<18x18x128xbf16, #tpu.memory_space<vmem>>, vector<1x18x128xbf16>
    tpu.vector_store %arg9[%c0_10, %c0_11, %c0_12], %11 {strides = array<i32>} : memref<18x18x128xbf16, #tpu.memory_space<vmem>>, vector<1x18x128xbf16>,
    %c17 = arith.constant 17 : index
    %c0_13 = arith.constant 0 : index
    %c0_14 = arith.constant 0 : index
    %14 = vector.load %arg9[%c17, %c0_13, %c0_14] : memref<18x18x128xbf16, #tpu.memory_space<vmem>>, vector<1x18x128xbf16>
    tpu.vector_store %arg9[%c17, %c0_13, %c0_14], %11 {strides = array<i32>} : memref<18x18x128xbf16, #tpu.memory_space<vmem>>, vector<1x18x128xbf16>,
    %c0_15 = arith.constant 0 : index
    %c0_16 = arith.constant 0 : index
    %c0_17 = arith.constant 0 : index
    %15 = vector.load %arg9[%c0_15, %c0_16, %c0_17] : memref<18x18x128xbf16, #tpu.memory_space<vmem>>, vector<18x1x128xbf16>
    tpu.vector_store %arg9[%c0_15, %c0_16, %c0_17], %12 {strides = array<i32>} : memref<18x18x128xbf16, #tpu.memory_space<vmem>>, vector<18x1x128xbf16>,
    %c0_18 = arith.constant 0 : index
    %c17_19 = arith.constant 17 : index
    %c0_20 = arith.constant 0 : index
    %16 = vector.load %arg9[%c0_18, %c17_19, %c0_20] : memref<18x18x128xbf16, #tpu.memory_space<vmem>>, vector<18x1x128xbf16>
    tpu.vector_store %arg9[%c0_18, %c17_19, %c0_20], %12 {strides = array<i32>} : memref<18x18x128xbf16, #tpu.memory_space<vmem>>, vector<18x1x128xbf16>,
    %17 = vector.shape_cast %10 : vector<256x128xbf16> to vector<16x16x128xbf16>
    %c1 = arith.constant 1 : index
    %c1_21 = arith.constant 1 : index
    %c0_22 = arith.constant 0 : index
    %18 = vector.load %arg9[%c1, %c1_21, %c0_22] : memref<18x18x128xbf16, #tpu.memory_space<vmem>>, vector<16x16x128xbf16>
    tpu.vector_store %arg9[%c1, %c1_21, %c0_22], %17 {strides = array<i32>} : memref<18x18x128xbf16, #tpu.memory_space<vmem>>, vector<16x16x128xbf16>,
    %c0_23 = arith.constant 0 : index
    %c0_24 = arith.constant 0 : index
    %c0_25 = arith.constant 0 : index
    %19 = vector.load %arg9[%c0_23, %c0_24, %c0_25] : memref<18x18x128xbf16, #tpu.memory_space<vmem>>, vector<16x16x128xbf16>
    %20 = vector.shape_cast %19 : vector<16x16x128xbf16> to vector<256x128xbf16>
    %c0_26 = arith.constant 0 : index
    %c0_27 = arith.constant 0 : index
    %c0_28 = arith.constant 0 : index
    %21 = vector.load %arg4[%c0_26, %c0_27, %c0_28] : memref<9x128x128xbf16, #tpu.memory_space<vmem>>, vector<1x128x128xbf16>
    %22 = vector.shape_cast %21 : vector<1x128x128xbf16> to vector<128x128xbf16>
    %cst_29 = arith.constant dense<0.000000e+00> : vector<256x128xf32>
    %23 = tpu.matmul %20, %22, %cst_29 {dimension_numbers = #tpu.dot_dimension_numbers<[1], [0], [0], [1], [0, 0, 1, 1], [], []>} : vector<256x128xbf16>, vector<128x128xbf16>, vector<256x128xf32> -> vector<256x128xf32>
    %c0_30 = arith.constant 0 : index
    %c1_31 = arith.constant 1 : index
    %c0_32 = arith.constant 0 : index
    %24 = vector.load %arg9[%c0_30, %c1_31, %c0_32] : memref<18x18x128xbf16, #tpu.memory_space<vmem>>, vector<16x16x128xbf16>
    %25 = vector.shape_cast %24 : vector<16x16x128xbf16> to vector<256x128xbf16>
    %c1_33 = arith.constant 1 : index
    %c0_34 = arith.constant 0 : index
    %c0_35 = arith.constant 0 : index
    %26 = vector.load %arg4[%c1_33, %c0_34, %c0_35] : memref<9x128x128xbf16, #tpu.memory_space<vmem>>, vector<1x128x128xbf16>
    %27 = vector.shape_cast %26 : vector<1x128x128xbf16> to vector<128x128xbf16>
    %cst_36 = arith.constant dense<0.000000e+00> : vector<256x128xf32>
    %28 = tpu.matmul %25, %27, %cst_36 {dimension_numbers = #tpu.dot_dimension_numbers<[1], [0], [0], [1], [0, 0, 1, 1], [], []>} : vector<256x128xbf16>, vector<128x128xbf16>, vector<256x128xf32> -> vector<256x128xf32>
    %29 = arith.addf %23, %28 : vector<256x128xf32>
    %c0_37 = arith.constant 0 : index
    %c2 = arith.constant 2 : index
    %c0_38 = arith.constant 0 : index
    %30 = vector.load %arg9[%c0_37, %c2, %c0_38] : memref<18x18x128xbf16, #tpu.memory_space<vmem>>, vector<16x16x128xbf16>
    %31 = vector.shape_cast %30 : vector<16x16x128xbf16> to vector<256x128xbf16>
    %c2_39 = arith.constant 2 : index
    %c0_40 = arith.constant 0 : index
    %c0_41 = arith.constant 0 : index
    %32 = vector.load %arg4[%c2_39, %c0_40, %c0_41] : memref<9x128x128xbf16, #tpu.memory_space<vmem>>, vector<1x128x128xbf16>
    %33 = vector.shape_cast %32 : vector<1x128x128xbf16> to vector<128x128xbf16>
    %cst_42 = arith.constant dense<0.000000e+00> : vector<256x128xf32>
    %34 = tpu.matmul %31, %33, %cst_42 {dimension_numbers = #tpu.dot_dimension_numbers<[1], [0], [0], [1], [0, 0, 1, 1], [], []>} : vector<256x128xbf16>, vector<128x128xbf16>, vector<256x128xf32> -> vector<256x128xf32>
    %35 = arith.addf %29, %34 : vector<256x128xf32>
    %c1_43 = arith.constant 1 : index
    %c0_44 = arith.constant 0 : index
    %c0_45 = arith.constant 0 : index
    %36 = vector.load %arg9[%c1_43, %c0_44, %c0_45] : memref<18x18x128xbf16, #tpu.memory_space<vmem>>, vector<16x16x128xbf16>
    %37 = vector.shape_cast %36 : vector<16x16x128xbf16> to vector<256x128xbf16>
    %c3 = arith.constant 3 : index
    %c0_46 = arith.constant 0 : index
    %c0_47 = arith.constant 0 : index
    %38 = vector.load %arg4[%c3, %c0_46, %c0_47] : memref<9x128x128xbf16, #tpu.memory_space<vmem>>, vector<1x128x128xbf16>
    %39 = vector.shape_cast %38 : vector<1x128x128xbf16> to vector<128x128xbf16>
    %cst_48 = arith.constant dense<0.000000e+00> : vector<256x128xf32>
    %40 = tpu.matmul %37, %39, %cst_48 {dimension_numbers = #tpu.dot_dimension_numbers<[1], [0], [0], [1], [0, 0, 1, 1], [], []>} : vector<256x128xbf16>, vector<128x128xbf16>, vector<256x128xf32> -> vector<256x128xf32>
    %41 = arith.addf %35, %40 : vector<256x128xf32>
    %c1_49 = arith.constant 1 : index
    %c1_50 = arith.constant 1 : index
    %c0_51 = arith.constant 0 : index
    %42 = vector.load %arg9[%c1_49, %c1_50, %c0_51] : memref<18x18x128xbf16, #tpu.memory_space<vmem>>, vector<16x16x128xbf16>
    %43 = vector.shape_cast %42 : vector<16x16x128xbf16> to vector<256x128xbf16>
    %c4 = arith.constant 4 : index
    %c0_52 = arith.constant 0 : index
    %c0_53 = arith.constant 0 : index
    %44 = vector.load %arg4[%c4, %c0_52, %c0_53] : memref<9x128x128xbf16, #tpu.memory_space<vmem>>, vector<1x128x128xbf16>
    %45 = vector.shape_cast %44 : vector<1x128x128xbf16> to vector<128x128xbf16>
    %cst_54 = arith.constant dense<0.000000e+00> : vector<256x128xf32>
    %46 = tpu.matmul %43, %45, %cst_54 {dimension_numbers = #tpu.dot_dimension_numbers<[1], [0], [0], [1], [0, 0, 1, 1], [], []>} : vector<256x128xbf16>, vector<128x128xbf16>, vector<256x128xf32> -> vector<256x128xf32>
    %47 = arith.addf %41, %46 : vector<256x128xf32>
    %c1_55 = arith.constant 1 : index
    %c2_56 = arith.constant 2 : index
    %c0_57 = arith.constant 0 : index
    %48 = vector.load %arg9[%c1_55, %c2_56, %c0_57] : memref<18x18x128xbf16, #tpu.memory_space<vmem>>, vector<16x16x128xbf16>
    %49 = vector.shape_cast %48 : vector<16x16x128xbf16> to vector<256x128xbf16>
    %c5 = arith.constant 5 : index
    %c0_58 = arith.constant 0 : index
    %c0_59 = arith.constant 0 : index
    %50 = vector.load %arg4[%c5, %c0_58, %c0_59] : memref<9x128x128xbf16, #tpu.memory_space<vmem>>, vector<1x128x128xbf16>
    %51 = vector.shape_cast %50 : vector<1x128x128xbf16> to vector<128x128xbf16>
    %cst_60 = arith.constant dense<0.000000e+00> : vector<256x128xf32>
    %52 = tpu.matmul %49, %51, %cst_60 {dimension_numbers = #tpu.dot_dimension_numbers<[1], [0], [0], [1], [0, 0, 1, 1], [], []>} : vector<256x128xbf16>, vector<128x128xbf16>, vector<256x128xf32> -> vector<256x128xf32>
    %53 = arith.addf %47, %52 : vector<256x128xf32>
    %c2_61 = arith.constant 2 : index
    %c0_62 = arith.constant 0 : index
    %c0_63 = arith.constant 0 : index
    %54 = vector.load %arg9[%c2_61, %c0_62, %c0_63] : memref<18x18x128xbf16, #tpu.memory_space<vmem>>, vector<16x16x128xbf16>
    %55 = vector.shape_cast %54 : vector<16x16x128xbf16> to vector<256x128xbf16>
    %c6 = arith.constant 6 : index
    %c0_64 = arith.constant 0 : index
    %c0_65 = arith.constant 0 : index
    %56 = vector.load %arg4[%c6, %c0_64, %c0_65] : memref<9x128x128xbf16, #tpu.memory_space<vmem>>, vector<1x128x128xbf16>
    %57 = vector.shape_cast %56 : vector<1x128x128xbf16> to vector<128x128xbf16>
    %cst_66 = arith.constant dense<0.000000e+00> : vector<256x128xf32>
    %58 = tpu.matmul %55, %57, %cst_66 {dimension_numbers = #tpu.dot_dimension_numbers<[1], [0], [0], [1], [0, 0, 1, 1], [], []>} : vector<256x128xbf16>, vector<128x128xbf16>, vector<256x128xf32> -> vector<256x128xf32>
    %59 = arith.addf %53, %58 : vector<256x128xf32>
    %c2_67 = arith.constant 2 : index
    %c1_68 = arith.constant 1 : index
    %c0_69 = arith.constant 0 : index
    %60 = vector.load %arg9[%c2_67, %c1_68, %c0_69] : memref<18x18x128xbf16, #tpu.memory_space<vmem>>, vector<16x16x128xbf16>
    %61 = vector.shape_cast %60 : vector<16x16x128xbf16> to vector<256x128xbf16>
    %c7 = arith.constant 7 : index
    %c0_70 = arith.constant 0 : index
    %c0_71 = arith.constant 0 : index
    %62 = vector.load %arg4[%c7, %c0_70, %c0_71] : memref<9x128x128xbf16, #tpu.memory_space<vmem>>, vector<1x128x128xbf16>
    %63 = vector.shape_cast %62 : vector<1x128x128xbf16> to vector<128x128xbf16>
    %cst_72 = arith.constant dense<0.000000e+00> : vector<256x128xf32>
    %64 = tpu.matmul %61, %63, %cst_72 {dimension_numbers = #tpu.dot_dimension_numbers<[1], [0], [0], [1], [0, 0, 1, 1], [], []>} : vector<256x128xbf16>, vector<128x128xbf16>, vector<256x128xf32> -> vector<256x128xf32>
    %65 = arith.addf %59, %64 : vector<256x128xf32>
    %c2_73 = arith.constant 2 : index
    %c2_74 = arith.constant 2 : index
    %c0_75 = arith.constant 0 : index
    %66 = vector.load %arg9[%c2_73, %c2_74, %c0_75] : memref<18x18x128xbf16, #tpu.memory_space<vmem>>, vector<16x16x128xbf16>
    %67 = vector.shape_cast %66 : vector<16x16x128xbf16> to vector<256x128xbf16>
    %c8 = arith.constant 8 : index
    %c0_76 = arith.constant 0 : index
    %c0_77 = arith.constant 0 : index
    %68 = vector.load %arg4[%c8, %c0_76, %c0_77] : memref<9x128x128xbf16, #tpu.memory_space<vmem>>, vector<1x128x128xbf16>
    %69 = vector.shape_cast %68 : vector<1x128x128xbf16> to vector<128x128xbf16>
    %cst_78 = arith.constant dense<0.000000e+00> : vector<256x128xf32>
    %70 = tpu.matmul %67, %69, %cst_78 {dimension_numbers = #tpu.dot_dimension_numbers<[1], [0], [0], [1], [0, 0, 1, 1], [], []>} : vector<256x128xbf16>, vector<128x128xbf16>, vector<256x128xf32> -> vector<256x128xf32>
    %71 = arith.addf %65, %70 : vector<256x128xf32>
    %c0_79 = arith.constant 0 : index
    %c0_80 = arith.constant 0 : index
    %72 = vector.load %arg5[%c0_79, %c0_80] : memref<1x128xf32, #tpu.memory_space<vmem>>, vector<1x128xf32>
    %73 = vector.broadcast %72 : vector<1x128xf32> to vector<256x128xf32>
    %74 = arith.addf %71, %73 : vector<256x128xf32>
    %cst_81 = arith.constant 0.000000e+00 : f32
    %75 = vector.broadcast %cst_81 : f32 to vector<256x128xf32>
    %76 = arith.maximumf %74, %75 : vector<256x128xf32>
    %77 = arith.truncf %76 : vector<256x128xf32> to vector<256x128xbf16>
    %c0_82 = arith.constant 0 : index
    %c0_83 = arith.constant 0 : index
    %78 = vector.load %arg6[%c0_82, %c0_83] : memref<128x128xbf16, #tpu.memory_space<vmem>>, vector<128x128xbf16>
    %cst_84 = arith.constant dense<0.000000e+00> : vector<256x128xf32>
    %79 = tpu.matmul %77, %78, %cst_84 {dimension_numbers = #tpu.dot_dimension_numbers<[1], [0], [0], [1], [0, 0, 1, 1], [], []>} : vector<256x128xbf16>, vector<128x128xbf16>, vector<256x128xf32> -> vector<256x128xf32>
    %c0_85 = arith.constant 0 : index
    %c0_86 = arith.constant 0 : index
    %80 = vector.load %arg7[%c0_85, %c0_86] : memref<1x128xf32, #tpu.memory_space<vmem>>, vector<1x128xf32>
    %81 = vector.broadcast %80 : vector<1x128xf32> to vector<256x128xf32>
    %82 = arith.addf %79, %81 : vector<256x128xf32>
    %cst_87 = arith.constant 0.000000e+00 : f32
    %83 = vector.broadcast %cst_87 : f32 to vector<256x128xf32>
    %84 = arith.maximumf %82, %83 : vector<256x128xf32>
    %c0_88 = arith.constant 0 : index
    %c0_89 = arith.constant 0 : index
    %c0_90 = arith.constant 0 : index
    %c0_91 = arith.constant 0 : index
    %85 = vector.load %arg1[%c0_88, %c0_89, %c0_90, %c0_91] : memref<1x16x16x128xbf16, #tpu.memory_space<vmem>>, vector<1x16x16x128xbf16>
    %86 = vector.shape_cast %85 : vector<1x16x16x128xbf16> to vector<16x16x128xbf16>
    %87 = vector.shape_cast %86 : vector<16x16x128xbf16> to vector<256x128xbf16>
    %88 = arith.extf %87 : vector<256x128xbf16> to vector<256x128xf32>
    %89 = arith.addf %84, %88 : vector<256x128xf32>
    %90 = vector.shape_cast %89 : vector<256x128xf32> to vector<16x16x128xf32>
    %91 = arith.truncf %90 : vector<16x16x128xf32> to vector<16x16x128xbf16>
    %c0_92 = arith.constant 0 : index
    %c0_93 = arith.constant 0 : index
    %c0_94 = arith.constant 0 : index
    %c0_95 = arith.constant 0 : index
    %92 = vector.load %arg8[%c0_92, %c0_93, %c0_94, %c0_95] : memref<1x16x16x128xbf16, #tpu.memory_space<vmem>>, vector<1x16x16x128xbf16>
    %93 = vector.shape_cast %92 : vector<1x16x16x128xbf16> to vector<16x16x128xbf16>
    %94 = vector.shape_cast %91 : vector<16x16x128xbf16> to vector<1x16x16x128xbf16>
    tpu.vector_store %arg8[%c0_92, %c0_93, %c0_94, %c0_95], %94 {strides = array<i32>} : memref<1x16x16x128xbf16, #tpu.memory_space<vmem>>, vector<1x16x16x128xbf16>,
    return
  }
  func.func @transform_0(%arg0: i32) -> (i32, i32, i32, i32) {
    %c0_i32 = arith.constant 0 : i32
    %c0_i32_0 = arith.constant 0 : i32
    %c0_i32_1 = arith.constant 0 : i32
    %c0_i32_2 = arith.constant 0 : i32
    return %arg0, %c0_i32, %c0_i32_0, %c0_i32_1 : i32, i32, i32, i32
  }
  func.func @transform_1(%arg0: i32) -> (i32, i32) {
    %c0_i32 = arith.constant 0 : i32
    %c0_i32_0 = arith.constant 0 : i32
    %c0_i32_1 = arith.constant 0 : i32
    return %c0_i32, %c0_i32_0 : i32, i32
  }
  func.func @transform_2(%arg0: i32) -> (i32, i32) {
    %c0_i32 = arith.constant 0 : i32
    %c0_i32_0 = arith.constant 0 : i32
    %c0_i32_1 = arith.constant 0 : i32
    return %c0_i32, %c0_i32_0 : i32, i32
  }
  func.func @transform_3(%arg0: i32) -> (i32, i32, i32) {
    %c0_i32 = arith.constant 0 : i32
    %c0_i32_0 = arith.constant 0 : i32
    %c0_i32_1 = arith.constant 0 : i32
    %c0_i32_2 = arith.constant 0 : i32
    return %c0_i32, %c0_i32_0, %c0_i32_1 : i32, i32, i32
  }
  func.func @transform_4(%arg0: i32) -> (i32, i32) {
    %c0_i32 = arith.constant 0 : i32
    %c0_i32_0 = arith.constant 0 : i32
    %c0_i32_1 = arith.constant 0 : i32
    return %c0_i32, %c0_i32_0 : i32, i32
  }
  func.func @transform_5(%arg0: i32) -> (i32, i32) {
    %c0_i32 = arith.constant 0 : i32
    %c0_i32_0 = arith.constant 0 : i32
    %c0_i32_1 = arith.constant 0 : i32
    return %c0_i32, %c0_i32_0 : i32, i32
  }
  func.func @transform_6(%arg0: i32) -> (i32, i32) {
    %c0_i32 = arith.constant 0 : i32
    %c0_i32_0 = arith.constant 0 : i32
    %c0_i32_1 = arith.constant 0 : i32
    return %c0_i32, %c0_i32_0 : i32, i32
  }
  func.func @transform_7(%arg0: i32) -> (i32, i32, i32, i32) {
    %c0_i32 = arith.constant 0 : i32
    %c0_i32_0 = arith.constant 0 : i32
    %c0_i32_1 = arith.constant 0 : i32
    %c0_i32_2 = arith.constant 0 : i32
    return %arg0, %c0_i32, %c0_i32_0, %c0_i32_1 : i32, i32, i32, i32
  }
}

</mosaic_0001>

<llo_original>
// kernel: tpu_custom_call.1
$region0: #{tpu_custom_call.1}
  #allocation0 [shape = 'u32[]', space=smem, size = 0x4, offset = 0x4, fixed_abs, tag = 'smem constant byte address 0x4 - core index']
  #allocation1 [shape = 'u32[144,128]{1,0:T(1,128)}', space=vmem, size = 0x12000, scoped, tag = 'internal scratch']
  #allocation2 [shape = 'bf16[18,18,128]{2,1,0:T(8,128)(2,1)}', space=vmem, size = 0x1b000, scoped, tag = 'scratch operand']
  %s0 = inlined_call_operand.hbm [shape: bf16[2,16,16,128], index: 0, kind: input, shape index: {}]
  %s1 = inlined_call_operand.hbm [shape: bf16[128,128], index: 1, kind: input, shape index: {}]
  %s2 = inlined_call_operand.vmem [shape: f32[1,128], index: 2, kind: input, shape index: {}]
  %s3 = inlined_call_operand.hbm [shape: bf16[9,128,128], index: 3, kind: input, shape index: {}]
  %s4 = inlined_call_operand.vmem [shape: f32[1,128], index: 4, kind: input, shape index: {}]
  %s5 = inlined_call_operand.hbm [shape: bf16[128,128], index: 5, kind: input, shape index: {}]
  %s6 = inlined_call_operand.vmem [shape: f32[1,128], index: 6, kind: input, shape index: {}]
  %s7 = inlined_call_operand.hbm [shape: bf16[2,16,16,128], index: 7, kind: output, shape index: {}]
  %s8 = sld [smem:[#allocation0]]
  $region77: #{tpu_custom_call.1} parent=0
    _
  %s10 = ssub.s32 1, %s8
  %s11 = scalar_select 0, %s10, %s8
  $region1: #{tpu_custom_call.1} parent=0
    #allocation3 [shape = 'u8[131072]{0}', space=vmem, size = 0x20000, scoped, tag = 'input window, operand 0']
    #allocation4 [shape = 's32[2]{0}', space=sflag, size = 0x8, scoped, tag = 'scoped memory for tpu_custom_call.1']
    #allocation5 [shape = 's32[2]{0}', space=sflag, size = 0x8, scoped, tag = 'scoped memory for tpu_custom_call.1']
    #allocation6 [shape = 'u8[32768]{0}', space=vmem, size = 0x8000, scoped, tag = 'input window, operand 1, single buffered']
    #allocation7 [shape = 's32[1]{0}', space=sflag, size = 0x4, scoped, tag = 'scoped memory for tpu_custom_call.1']
    #allocation8 [shape = 'u8[294912]{0}', space=vmem, size = 0x48000, scoped, tag = 'input window, operand 3, single buffered']
    #allocation9 [shape = 'u8[32768]{0}', space=vmem, size = 0x8000, scoped, tag = 'input window, operand 5, single buffered']
    #allocation10 [shape = 's32[1]{0}', space=sflag, size = 0x4, scoped, tag = 'scoped memory for tpu_custom_call.1']
    #allocation11 [shape = 'u8[131072]{0}', space=vmem, size = 0x20000, scoped, tag = 'output window, operand 0']
    %12 = vsyncpa [#allocation4], 0
    %s13 = scalar_lea.sflag [#allocation4], 1
    %14 = vsyncpa %s13, 0
    %15 = vsyncpa [#allocation7], 0
    %16 = vsyncpa [#allocation10], 0
    %17 = vsyncpa [#allocation5], 0
    %s18 = scalar_lea.sflag [#allocation5], 1
    %19 = vsyncpa %s18, 0
    loop: start=0, step=1, limit=4
    $region2: #{tpu_custom_call.1} parent=1 // loop_pre_header
      _
    $region3: #{tpu_custom_call.1} parent=1 // loop_header
      %s21 = sphi 0, %s25
      %p22 = scmp.ge.s32.totalorder %s21, 4
      %s31 = sphi 0, %s33
      %s34 = sphi 0, %s31
      %s35 = sphi 0, %s34
      %s51 = sphi 0, %s35
      %s55 = sphi 0, %s55
      %s57 = sphi 0, %s55
      %s58 = sphi 0, %s57
      %s72 = sphi 0, %s58
      %s76 = sphi 0, %s76
      %s78 = sphi 0, %s76
      %s79 = sphi 0, %s78
      %s93 = sphi 0, %s79
      %s97 = sphi 0, %s97
      %s99 = sphi 0, %s97
      %s100 = sphi 0, %s99
      %s114 = sphi 0, %s100
      %s118 = sphi 0, %s118
      %s120 = sphi 0, %s118
      %s121 = sphi 0, %s120
      %s135 = sphi 0, %s121
      %s139 = sphi 0, %s139
      %s141 = sphi 0, %s139
      %s142 = sphi 0, %s141
      %s156 = sphi 0, %s142
      %s160 = sphi 0, %s160
      %s162 = sphi 0, %s160
      %s163 = sphi 0, %s162
      %s177 = sphi 0, %s163
      %s183 = sphi 0, %s185
      %s186 = sphi 0, %s183
      %s187 = sphi 0, %s186
      %s203 = sphi 0, %s187
    $region4: #{tpu_custom_call.1} parent=1 // loop_header_branch
      %24 = sbr.rel (%p22) target = $region8
    $region5: #{tpu_custom_call.1} parent=1 // loop_body
      %s26 = ssub.s32 %s21, 1
      %s27 = ssub.s32 %s21, 2
      %s28 = sadd.s32 %s21, 1
      %s29 = ssub.s32 %s21, %s28
      %p30 = scmp.eq.s32.totalorder %s29, 0
      %s32 = sadd.s32 %s31, 1
      %s33 = scalar_select %p30, %s31, %s32
      %p36 = pneg %p30
      %p37 = scmp.eq.s32.totalorder %s21, 1
      %p38 = por %p36, %p37
      %p39 = scmp.ne.s32.totalorder %s31, %s34
      %p40 = scmp.eq.s32.totalorder %s21, 0
      %p41 = por %p39, %p40
      %p42 = scmp.ne.s32.totalorder %s31, %s34
      %p43 = scmp.eq.s32.totalorder %s26, 1
      %p44 = por %p42, %p43
      %p45 = scmp.ne.s32.totalorder %s34, %s35
      %p46 = scmp.eq.s32.totalorder %s26, 0
      %p47 = por %p45, %p46
      %p48 = scmp.ne.s32.totalorder %s34, %s35
      %p49 = scmp.eq.s32.totalorder %s27, 1
      %p50 = por %p48, %p49
      %p52 = scmp.ne.s32.totalorder %s35, %s51
      %p53 = scmp.eq.s32.totalorder %s27, 0
      %p54 = por %p52, %p53
      %s56 = sadd.s32 %s55, 1
      %p59 = scmp.eq.s32.totalorder %s21, 1
      %p60 = scmp.ne.s32.totalorder %s55, %s57
      %p61 = scmp.eq.s32.totalorder %s21, 0
      %p62 = por %p60, %p61
      %p63 = scmp.ne.s32.totalorder %s55, %s57
      %p64 = scmp.eq.s32.totalorder %s26, 1
      %p65 = por %p63, %p64
      %p66 = scmp.ne.s32.totalorder %s57, %s58
      %p67 = scmp.eq.s32.totalorder %s26, 0
      %p68 = por %p66, %p67
      %p69 = scmp.ne.s32.totalorder %s57, %s58
      %p70 = scmp.eq.s32.totalorder %s27, 1
      %p71 = por %p69, %p70
      %p73 = scmp.ne.s32.totalorder %s58, %s72
      %p74 = scmp.eq.s32.totalorder %s27, 0
      %p75 = por %p73, %p74
      %s77 = sadd.s32 %s76, 1
      %p80 = scmp.eq.s32.totalorder %s21, 1
      %p81 = scmp.ne.s32.totalorder %s76, %s78
      %p82 = scmp.eq.s32.totalorder %s21, 0
      %p83 = por %p81, %p82
      %p84 = scmp.ne.s32.totalorder %s76, %s78
      %p85 = scmp.eq.s32.totalorder %s26, 1
      %p86 = por %p84, %p85
      %p87 = scmp.ne.s32.totalorder %s78, %s79
      %p88 = scmp.eq.s32.totalorder %s26, 0
      %p89 = por %p87, %p88
      %p90 = scmp.ne.s32.totalorder %s78, %s79
      %p91 = scmp.eq.s32.totalorder %s27, 1
      %p92 = por %p90, %p91
      %p94 = scmp.ne.s32.totalorder %s79, %s93
      %p95 = scmp.eq.s32.totalorder %s27, 0
      %p96 = por %p94, %p95
      %s98 = sadd.s32 %s97, 1
      %p101 = scmp.eq.s32.totalorder %s21, 1
      %p102 = scmp.ne.s32.totalorder %s97, %s99
      %p103 = scmp.eq.s32.totalorder %s21, 0
      %p104 = por %p102, %p103
      %p105 = scmp.ne.s32.totalorder %s97, %s99
      %p106 = scmp.eq.s32.totalorder %s26, 1
      %p107 = por %p105, %p106
      %p108 = scmp.ne.s32.totalorder %s99, %s100
      %p109 = scmp.eq.s32.totalorder %s26, 0
      %p110 = por %p108, %p109
      %p111 = scmp.ne.s32.totalorder %s99, %s100
      %p112 = scmp.eq.s32.totalorder %s27, 1
      %p113 = por %p111, %p112
      %p115 = scmp.ne.s32.totalorder %s100, %s114
      %p116 = scmp.eq.s32.totalorder %s27, 0
      %p117 = por %p115, %p116
      %s119 = sadd.s32 %s118, 1
      %p122 = scmp.eq.s32.totalorder %s21, 1
      %p123 = scmp.ne.s32.totalorder %s118, %s120
      %p124 = scmp.eq.s32.totalorder %s21, 0
      %p125 = por %p123, %p124
      %p126 = scmp.ne.s32.totalorder %s118, %s120
      %p127 = scmp.eq.s32.totalorder %s26, 1
      %p128 = por %p126, %p127
      %p129 = scmp.ne.s32.totalorder %s120, %s121
      %p130 = scmp.eq.s32.totalorder %s26, 0
      %p131 = por %p129, %p130
      %p132 = scmp.ne.s32.totalorder %s120, %s121
      %p133 = scmp.eq.s32.totalorder %s27, 1
      %p134 = por %p132, %p133
      %p136 = scmp.ne.s32.totalorder %s121, %s135
      %p137 = scmp.eq.s32.totalorder %s27, 0
      %p138 = por %p136, %p137
      %s140 = sadd.s32 %s139, 1
      %p143 = scmp.eq.s32.totalorder %s21, 1
      %p144 = scmp.ne.s32.totalorder %s139, %s141
      %p145 = scmp.eq.s32.totalorder %s21, 0
      %p146 = por %p144, %p145
      %p147 = scmp.ne.s32.totalorder %s139, %s141
      %p148 = scmp.eq.s32.totalorder %s26, 1
      %p149 = por %p147, %p148
      %p150 = scmp.ne.s32.totalorder %s141, %s142
      %p151 = scmp.eq.s32.totalorder %s26, 0
      %p152 = por %p150, %p151
      %p153 = scmp.ne.s32.totalorder %s141, %s142
      %p154 = scmp.eq.s32.totalorder %s27, 1
      %p155 = por %p153, %p154
      %p157 = scmp.ne.s32.totalorder %s142, %s156
      %p158 = scmp.eq.s32.totalorder %s27, 0
      %p159 = por %p157, %p158
      %s161 = sadd.s32 %s160, 1
      %p164 = scmp.eq.s32.totalorder %s21, 1
      %p165 = scmp.ne.s32.totalorder %s160, %s162
      %p166 = scmp.eq.s32.totalorder %s21, 0
      %p167 = por %p165, %p166
      %p168 = scmp.ne.s32.totalorder %s160, %s162
      %p169 = scmp.eq.s32.totalorder %s26, 1
      %p170 = por %p168, %p169
      %p171 = scmp.ne.s32.totalorder %s162, %s163
      %p172 = scmp.eq.s32.totalorder %s26, 0
      %p173 = por %p171, %p172
      %p174 = scmp.ne.s32.totalorder %s162, %s163
      %p175 = scmp.eq.s32.totalorder %s27, 1
      %p176 = por %p174, %p175
      %p178 = scmp.ne.s32.totalorder %s163, %s177
      %p179 = scmp.eq.s32.totalorder %s27, 0
      %p180 = por %p178, %p179
      %s181 = ssub.s32 %s21, %s28
      %p182 = scmp.eq.s32.totalorder %s181, 0
      %s184 = sadd.s32 %s183, 1
      %s185 = scalar_select %p182, %s183, %s184
      %p188 = pneg %p182
      %p189 = scmp.eq.s32.totalorder %s21, 1
      %p190 = por %p188, %p189
      %p191 = scmp.ne.s32.totalorder %s183, %s186
      %p192 = scmp.eq.s32.totalorder %s21, 0
      %p193 = por %p191, %p192
      %p194 = scmp.ne.s32.totalorder %s183, %s186
      %p195 = scmp.eq.s32.totalorder %s26, 1
      %p196 = por %p194, %p195
      %p197 = scmp.ne.s32.totalorder %s186, %s187
      %p198 = scmp.eq.s32.totalorder %s26, 0
      %p199 = por %p197, %p198
      %p200 = scmp.ne.s32.totalorder %s186, %s187
      %p201 = scmp.eq.s32.totalorder %s27, 1
      %p202 = por %p200, %p201
      %p204 = scmp.ne.s32.totalorder %s187, %s203
      %p205 = scmp.eq.s32.totalorder %s27, 0
      %p206 = por %p204, %p205
      %p207 = scmp.le.s32.totalorder 1, %s21
      %p208 = scmp.lt.s32.totalorder %s21, 3
      %p209 = pnand %p207, %p208
      %p210 = pneg %p209
      // Predicated region
      $region9: #{tpu_custom_call.1} parent=5 // pred_check
        _
      $region10: #{tpu_custom_call.1} parent=5 // pred_check_branch
        %212 = sbr.rel (%p209) target = $region12
      $region11: #{tpu_custom_call.1} parent=5 // pred_region
        %s213 = ssub.s32 %s21, 1
        // Predicated region
        $region13: #{tpu_custom_call.1} parent=11 // pred_check
          %p214 = pneg %p68
        $region14: #{tpu_custom_call.1} parent=11 // pred_check_branch
          %216 = sbr.rel (%p214) target = $region16
        $region15: #{tpu_custom_call.1} parent=11 // pred_region
          %s218 = ssub.s32 1024, 1024
          %219 = vsyncadd [#allocation7], %s218
          %s220 = sshll.u32 [#allocation6], 4
          %s221 = int_to_ptr.vmem [resolvable:$true] %s220
          %226 = dma.hbm_to_vmem [thread:$0]  %s1, 1024, %s221, [#allocation7], 64, 64, 4
        $region16: #{tpu_custom_call.1} parent=11 // pred_fallthru
          _
        // Predicated region
        $region17: #{tpu_custom_call.1} parent=11 // pred_check
          %p227 = pneg %p89
        $region18: #{tpu_custom_call.1} parent=11 // pred_check_branch
          %229 = sbr.rel (%p227) target = $region20
        $region19: #{tpu_custom_call.1} parent=11 // pred_region
          _
        $region20: #{tpu_custom_call.1} parent=11 // pred_fallthru
          _
        // Predicated region
        $region21: #{tpu_custom_call.1} parent=11 // pred_check
          %p230 = pneg %p110
        $region22: #{tpu_custom_call.1} parent=11 // pred_check_branch
          %232 = sbr.rel (%p230) target = $region24
        $region23: #{tpu_custom_call.1} parent=11 // pred_region
          %s234 = ssub.s32 9216, 9216
          %235 = vsyncadd [#allocation7], %s234
          %s236 = sshll.u32 [#allocation8], 4
          %s237 = int_to_ptr.vmem [resolvable:$true] %s236
          %242 = dma.hbm_to_vmem [thread:$0]  %s3, 9216, %s237, [#allocation7], 64, 64, 4
        $region24: #{tpu_custom_call.1} parent=11 // pred_fallthru
          _
        // Predicated region
        $region25: #{tpu_custom_call.1} parent=11 // pred_check
          %p243 = pneg %p131
        $region26: #{tpu_custom_call.1} parent=11 // pred_check_branch
          %245 = sbr.rel (%p243) target = $region28
        $region27: #{tpu_custom_call.1} parent=11 // pred_region
          _
        $region28: #{tpu_custom_call.1} parent=11 // pred_fallthru
          _
        // Predicated region
        $region29: #{tpu_custom_call.1} parent=11 // pred_check
          %p246 = pneg %p152
        $region30: #{tpu_custom_call.1} parent=11 // pred_check_branch
          %248 = sbr.rel (%p246) target = $region32
        $region31: #{tpu_custom_call.1} parent=11 // pred_region
          %s250 = ssub.s32 1024, 1024
          %251 = vsyncadd [#allocation10], %s250
          %s252 = sshll.u32 [#allocation9], 4
          %s253 = int_to_ptr.vmem [resolvable:$true] %s252
          %258 = dma.hbm_to_vmem [thread:$0]  %s5, 1024, %s253, [#allocation10], 64, 64, 4
        $region32: #{tpu_custom_call.1} parent=11 // pred_fallthru
          _
        // Predicated region
        $region33: #{tpu_custom_call.1} parent=11 // pred_check
          %p259 = pneg %p173
        $region34: #{tpu_custom_call.1} parent=11 // pred_check_branch
          %261 = sbr.rel (%p259) target = $region36
        $region35: #{tpu_custom_call.1} parent=11 // pred_region
          _
        $region36: #{tpu_custom_call.1} parent=11 // pred_fallthru
          _
      $region12: #{tpu_custom_call.1} parent=5 // pred_fallthru
        _
      %p262 = scmp.lt.s32.totalorder %s21, 2
      // Predicated region
      $region37: #{tpu_custom_call.1} parent=5 // pred_check
        %p263 = pneg %p262
      $region38: #{tpu_custom_call.1} parent=5 // pred_check_branch
        %265 = sbr.rel (%p263) target = $region40
      $region39: #{tpu_custom_call.1} parent=5 // pred_region
        // Predicated region
        $region41: #{tpu_custom_call.1} parent=39 // pred_check
          %p266 = pneg %p41
        $region42: #{tpu_custom_call.1} parent=39 // pred_check_branch
          %268 = sbr.rel (%p266) target = $region44
        $region43: #{tpu_custom_call.1} parent=39 // pred_region
          %s269 = sand.u32 %s31, 1
          %s270 = scalar_lea.sflag [#allocation4], %s269
          %s271 = sand.u32 %s31, 1
          %s272 = smul.addr %s271, 128
          %s273 = scalar_lea.vmem [#allocation3], %s272
          %s275 = ssub.s32 2048, 2048
          %276 = vsyncadd %s270, %s275
          %s277 = smul.addr %s21, 32
          %s278 = smul.addr %s277, 64
          %s279 = scalar_lea.hbm %s0, %s278
          %s280 = sshll.u32 %s273, 4
          %s281 = int_to_ptr.vmem [resolvable:$true] %s280
          %286 = dma.hbm_to_vmem [thread:$0]  %s279, 2048, %s281, %s270, 64, 64, 4
        $region44: #{tpu_custom_call.1} parent=39 // pred_fallthru
          _
      $region40: #{tpu_custom_call.1} parent=5 // pred_fallthru
        _
      %p287 = scmp.le.s32.totalorder 1, %s21
      %p288 = scmp.lt.s32.totalorder %s21, 3
      %p289 = pnand %p287, %p288
      %p290 = pneg %p289
      // Predicated region
      $region45: #{tpu_custom_call.1} parent=5 // pred_check
        _
      $region46: #{tpu_custom_call.1} parent=5 // pred_check_branch
        %292 = sbr.rel (%p289) target = $region48
      $region47: #{tpu_custom_call.1} parent=5 // pred_region
        %s293 = ssub.s32 %s21, 1
        %s294 = sand.u32 %s34, 1
        %s295 = scalar_lea.sflag [#allocation4], %s294
        %s296 = sand.u32 %s34, 1
        %s297 = smul.addr %s296, 128
        %s298 = scalar_lea.vmem [#allocation3], %s297
        // Predicated region
        $region49: #{tpu_custom_call.1} parent=47 // pred_check
          %p299 = pneg %p47
        $region50: #{tpu_custom_call.1} parent=47 // pred_check_branch
          %301 = sbr.rel (%p299) target = $region52
        $region51: #{tpu_custom_call.1} parent=47 // pred_region
          %302 = dma.done %s295, 2048
        $region52: #{tpu_custom_call.1} parent=47 // pred_fallthru
          _
        // Predicated region
        $region53: #{tpu_custom_call.1} parent=47 // pred_check
          %p303 = pneg %p68
        $region54: #{tpu_custom_call.1} parent=47 // pred_check_branch
          %305 = sbr.rel (%p303) target = $region56
        $region55: #{tpu_custom_call.1} parent=47 // pred_region
          %306 = dma.done [#allocation7], 1024
        $region56: #{tpu_custom_call.1} parent=47 // pred_fallthru
          _
        // Predicated region
        $region57: #{tpu_custom_call.1} parent=47 // pred_check
          %p307 = pneg %p110
        $region58: #{tpu_custom_call.1} parent=47 // pred_check_branch
          %309 = sbr.rel (%p307) target = $region60
        $region59: #{tpu_custom_call.1} parent=47 // pred_region
          %310 = dma.done [#allocation7], 9216
        $region60: #{tpu_custom_call.1} parent=47 // pred_fallthru
          _
        // Predicated region
        $region61: #{tpu_custom_call.1} parent=47 // pred_check
          %p311 = pneg %p152
        $region62: #{tpu_custom_call.1} parent=47 // pred_check_branch
          %313 = sbr.rel (%p311) target = $region64
        $region63: #{tpu_custom_call.1} parent=47 // pred_region
          %314 = dma.done [#allocation10], 1024
        $region64: #{tpu_custom_call.1} parent=47 // pred_fallthru
          _
        %s315 = sand.u32 %s34, 1
        %s316 = scalar_lea.sflag [#allocation4], %s315
        %s317 = sand.u32 %s34, 1
        %s318 = smul.addr %s317, 128
        %s319 = scalar_lea.vmem [#allocation3], %s318
        %p320 = pneg %p47
        %p321 = pneg %p44
        %p322 = pneg %p68
        %p323 = pneg %p65
        %p324 = pneg %p89
        %p325 = pneg %p86
        %p326 = pneg %p110
        %p327 = pneg %p107
        %p328 = pneg %p131
        %p329 = pneg %p128
        %p330 = pneg %p152
        %p331 = pneg %p149
        %p332 = pneg %p173
        %p333 = pneg %p170
        %p334 = pneg %p199
        %p335 = pneg %p196
        %s336 = sand.u32 %s186, 1
        %s337 = scalar_lea.sflag [#allocation5], %s336
        %s338 = sand.u32 %s186, 1
        %s339 = smul.addr %s338, 128
        %s340 = scalar_lea.vmem [#allocation11], %s339
        %v342 = vld [vmem:[%s298] sm:$0xf]
        %v343 = vld [vmem:[%s298 + $0x4] sm:$0xf]
        %v344 = vld [vmem:[%s298 + $0x8] sm:$0xf]
        %v345 = vld [vmem:[%s298 + $0xc] sm:$0xf]
        %v346 = vld [vmem:[%s298 + $0x10] sm:$0xf]
        %v347 = vld [vmem:[%s298 + $0x14] sm:$0xf]
        %v348 = vld [vmem:[%s298 + $0x18] sm:$0xf]
        %v349 = vld [vmem:[%s298 + $0x1c] sm:$0xf]
        %v350 = vld [vmem:[%s298 + $0x20] sm:$0xf]
        %v351 = vld [vmem:[%s298 + $0x24] sm:$0xf]
        %v352 = vld [vmem:[%s298 + $0x28] sm:$0xf]
        %v353 = vld [vmem:[%s298 + $0x2c] sm:$0xf]
        %v354 = vld [vmem:[%s298 + $0x30] sm:$0xf]
        %v355 = vld [vmem:[%s298 + $0x34] sm:$0xf]
        %v356 = vld [vmem:[%s298 + $0x38] sm:$0xf]
        %v357 = vld [vmem:[%s298 + $0x3c] sm:$0xf]
        %v358 = vld [vmem:[%s298 + $0x40] sm:$0xf]
        %v359 = vld [vmem:[%s298 + $0x44] sm:$0xf]
        %v360 = vld [vmem:[%s298 + $0x48] sm:$0xf]
        %v361 = vld [vmem:[%s298 + $0x4c] sm:$0xf]
        %v362 = vld [vmem:[%s298 + $0x50] sm:$0xf]
        %v363 = vld [vmem:[%s298 + $0x54] sm:$0xf]
        %v364 = vld [vmem:[%s298 + $0x58] sm:$0xf]
        %v365 = vld [vmem:[%s298 + $0x5c] sm:$0xf]
        %v366 = vld [vmem:[%s298 + $0x60] sm:$0xf]
        %v367 = vld [vmem:[%s298 + $0x64] sm:$0xf]
        %v368 = vld [vmem:[%s298 + $0x68] sm:$0xf]
        %v369 = vld [vmem:[%s298 + $0x6c] sm:$0xf]
        %v370 = vld [vmem:[%s298 + $0x70] sm:$0xf]
        %v371 = vld [vmem:[%s298 + $0x74] sm:$0xf]
        %v372 = vld [vmem:[%s298 + $0x78] sm:$0xf]
        %v373 = vld [vmem:[%s298 + $0x7c] sm:$0xf]
        %v374 = vld [vmem:[#allocation6] sm:$0xf]
        %v375 = vld [vmem:[#allocation6 + $0x4] sm:$0xf]
        %v376 = vld [vmem:[#allocation6 + $0x8] sm:$0xf]
        %v377 = vld [vmem:[#allocation6 + $0xc] sm:$0xf]
        %v378 = vld [vmem:[#allocation6 + $0x10] sm:$0xf]
        %v379 = vld [vmem:[#allocation6 + $0x14] sm:$0xf]
        %v380 = vld [vmem:[#allocation6 + $0x18] sm:$0xf]
        %v381 = vld [vmem:[#allocation6 + $0x1c] sm:$0xf]
        %v382 = vld [vmem:[#allocation6 + $0x20] sm:$0xf]
        %v383 = vld [vmem:[#allocation6 + $0x24] sm:$0xf]
        %v384 = vld [vmem:[#allocation6 + $0x28] sm:$0xf]
        %v385 = vld [vmem:[#allocation6 + $0x2c] sm:$0xf]
        %v386 = vld [vmem:[#allocation6 + $0x30] sm:$0xf]
        %v387 = vld [vmem:[#allocation6 + $0x34] sm:$0xf]
        %v388 = vld [vmem:[#allocation6 + $0x38] sm:$0xf]
        %v389 = vld [vmem:[#allocation6 + $0x3c] sm:$0xf]
        %v390 = vld [vmem:[%s2] sm:$0x1]
        %v392 = vlaneseq
        %v393 = vshrl.u32 %v392, 7
        %v394 = vsub.s32 0, %v393
        %v395 = vrot.slane %v390, %v394
        %v429 = vunpack.c.l.b16 %v342
        %v430 = vunpack.c.l.b16 %v343
        %v431 = vunpack.c.l.b16 %v344
        %v432 = vunpack.c.l.b16 %v345
        %v433 = vunpack.c.l.b16 %v346
        %v434 = vunpack.c.l.b16 %v347
        %v435 = vunpack.c.l.b16 %v348
        %v436 = vunpack.c.l.b16 %v349
        %v437 = vunpack.c.l.b16 %v350
        %v438 = vunpack.c.l.b16 %v351
        %v439 = vunpack.c.l.b16 %v352
        %v440 = vunpack.c.l.b16 %v353
        %v441 = vunpack.c.l.b16 %v354
        %v442 = vunpack.c.l.b16 %v355
        %v443 = vunpack.c.l.b16 %v356
        %v444 = vunpack.c.l.b16 %v357
        %v445 = vunpack.c.l.b16 %v358
        %v446 = vunpack.c.l.b16 %v359
        %v447 = vunpack.c.l.b16 %v360
        %v448 = vunpack.c.l.b16 %v361
        %v449 = vunpack.c.l.b16 %v362
        %v450 = vunpack.c.l.b16 %v363
        %v451 = vunpack.c.l.b16 %v364
        %v452 = vunpack.c.l.b16 %v365
        %v453 = vunpack.c.l.b16 %v366
        %v454 = vunpack.c.l.b16 %v367
        %v455 = vunpack.c.l.b16 %v368
        %v456 = vunpack.c.l.b16 %v369
        %v457 = vunpack.c.l.b16 %v370
        %v458 = vunpack.c.l.b16 %v371
        %v459 = vunpack.c.l.b16 %v372
        %v460 = vunpack.c.l.b16 %v373
        %v461 = vpack.c.b16 %v430, %v429
        %v462 = vpack.c.b16 %v432, %v431
        %v463 = vpack.c.b16 %v434, %v433
        %v464 = vpack.c.b16 %v436, %v435
        %v465 = vpack.c.b16 %v438, %v437
        %v466 = vpack.c.b16 %v440, %v439
        %v467 = vpack.c.b16 %v442, %v441
        %v468 = vpack.c.b16 %v444, %v443
        %v469 = vpack.c.b16 %v446, %v445
        %v470 = vpack.c.b16 %v448, %v447
        %v471 = vpack.c.b16 %v450, %v449
        %v472 = vpack.c.b16 %v452, %v451
        %v473 = vpack.c.b16 %v454, %v453
        %v474 = vpack.c.b16 %v456, %v455
        %v475 = vpack.c.b16 %v458, %v457
        %v476 = vpack.c.b16 %v460, %v459
        %v509 = vunpack.c.l.b16 %v374
        %v510 = vunpack.c.l.b16 %v375
        %v511 = vunpack.c.l.b16 %v376
        %v512 = vunpack.c.l.b16 %v377
        %v513 = vunpack.c.l.b16 %v378
        %v514 = vunpack.c.l.b16 %v379
        %v515 = vunpack.c.l.b16 %v380
        %v516 = vunpack.c.l.b16 %v381
        %v517 = vunpack.c.l.b16 %v382
        %v518 = vunpack.c.l.b16 %v383
        %v519 = vunpack.c.l.b16 %v384
        %v520 = vunpack.c.l.b16 %v385
        %v521 = vunpack.c.l.b16 %v386
        %v522 = vunpack.c.l.b16 %v387
        %v523 = vunpack.c.l.b16 %v388
        %v524 = vunpack.c.l.b16 %v389
        %v525 = vpack.c.b16 %v510, %v509
        %v526 = vpack.c.b16 %v512, %v511
        %v527 = vpack.c.b16 %v514, %v513
        %v528 = vpack.c.b16 %v516, %v515
        %v529 = vpack.c.b16 %v518, %v517
        %v530 = vpack.c.b16 %v520, %v519
        %v531 = vpack.c.b16 %v522, %v521
        %v532 = vpack.c.b16 %v524, %v523
        %541 = vmatprep.subr.bf16.mxu0 0
        %542 = vmatpush1.bf16.msra.mxu0 %v525
        %543 = vmatprep.subr.bf16.mxu0 0
        %544 = vmatpush1.bf16.msra.mxu0 %v526
        %545 = vmatprep.subr.bf16.mxu0 0
        %546 = vmatpush1.bf16.msra.mxu0 %v527
        %547 = vmatprep.subr.bf16.mxu0 0
        %548 = vmatpush1.bf16.msra.mxu0 %v528
        %549 = vmatprep.subr.bf16.mxu0 0
        %550 = vmatpush1.bf16.msra.mxu0 %v529
        %551 = vmatprep.subr.bf16.mxu0 0
        %552 = vmatpush1.bf16.msra.mxu0 %v530
        %553 = vmatprep.subr.bf16.mxu0 0
        %554 = vmatpush1.bf16.msra.mxu0 %v531
        %555 = vmatprep.subr.bf16.mxu0 0
        %556 = vmatpush1.bf16.msra.mxu0 %v532
        %557 = vmatprep.subr.bf16.mxu0 0
        %558 = vmatpush1.bf16.msra.mxu0 0
        %559 = vmatprep.subr.bf16.mxu0 0
        %560 = vmatpush1.bf16.msra.mxu0 0
        %561 = vmatprep.subr.bf16.mxu0 0
        %562 = vmatpush1.bf16.msra.mxu0 0
        %563 = vmatprep.subr.bf16.mxu0 0
        %564 = vmatpush1.bf16.msra.mxu0 0
        %565 = vmatprep.subr.bf16.mxu0 0
        %566 = vmatpush1.bf16.msra.mxu0 0
        %567 = vmatprep.subr.bf16.mxu0 0
        %568 = vmatpush1.bf16.msra.mxu0 0
        %569 = vmatprep.subr.bf16.mxu0 0
        %570 = vmatpush1.bf16.msra.mxu0 0
        %571 = vmatprep.subr.bf16.mxu0 0
        %572 = vmatpush1.bf16.msra.mxu0 0
        %573 = vmatprep.mubr.bf16.mxu0 0
        %574 = vmatmul.mubr.bf16.gmra.mrb[0].mxu0 %v461
        %v575 = vpop.f32.mrb[0].mxu0
        %v576 = vadd.f32 %v395, %v575
        %v577 = vpop.f32.mrb[0].mxu0
        %v578 = vpop.f32.mrb[0].mxu0
        %v579 = vadd.f32 %v395, %v578
        %v580 = vpop.f32.mrb[0].mxu0
        %581 = vmatprep.mubr.bf16.mxu0 0
        %582 = vmatmul.mubr.bf16.gmra.mrb[0].mxu0 %v462
        %v583 = vpop.f32.mrb[0].mxu0
        %v584 = vadd.f32 %v395, %v583
        %v585 = vpop.f32.mrb[0].mxu0
        %v586 = vpop.f32.mrb[0].mxu0
        %v587 = vadd.f32 %v395, %v586
        %v588 = vpop.f32.mrb[0].mxu0
        %589 = vmatprep.mubr.bf16.mxu0 0
        %590 = vmatmul.mubr.bf16.gmra.mrb[0].mxu0 %v463
        %v591 = vpop.f32.mrb[0].mxu0
        %v592 = vadd.f32 %v395, %v591
        %v593 = vpop.f32.mrb[0].mxu0
        %v594 = vpop.f32.mrb[0].mxu0
        %v595 = vadd.f32 %v395, %v594
        %v596 = vpop.f32.mrb[0].mxu0
        %597 = vmatprep.mubr.bf16.mxu0 0
        %598 = vmatmul.mubr.bf16.gmra.mrb[0].mxu0 %v464
        %v599 = vpop.f32.mrb[0].mxu0
        %v600 = vadd.f32 %v395, %v599
        %v601 = vpop.f32.mrb[0].mxu0
        %v602 = vpop.f32.mrb[0].mxu0
        %v603 = vadd.f32 %v395, %v602
        %v604 = vpop.f32.mrb[0].mxu0
        %605 = vmatprep.mubr.bf16.mxu0 0
        %606 = vmatmul.mubr.bf16.gmra.mrb[0].mxu0 %v465
        %v607 = vpop.f32.mrb[0].mxu0
        %v608 = vadd.f32 %v395, %v607
        %v609 = vpop.f32.mrb[0].mxu0
        %v610 = vpop.f32.mrb[0].mxu0
        %v611 = vadd.f32 %v395, %v610
        %v612 = vpop.f32.mrb[0].mxu0
        %613 = vmatprep.mubr.bf16.mxu0 0
        %614 = vmatmul.mubr.bf16.gmra.mrb[0].mxu0 %v466
        %v615 = vpop.f32.mrb[0].mxu0
        %v616 = vadd.f32 %v395, %v615
        %v617 = vpop.f32.mrb[0].mxu0
        %v618 = vpop.f32.mrb[0].mxu0
        %v619 = vadd.f32 %v395, %v618
        %v620 = vpop.f32.mrb[0].mxu0
        %621 = vmatprep.mubr.bf16.mxu0 0
        %622 = vmatmul.mubr.bf16.gmra.mrb[0].mxu0 %v467
        %v623 = vpop.f32.mrb[0].mxu0
        %v624 = vadd.f32 %v395, %v623
        %v625 = vpop.f32.mrb[0].mxu0
        %v626 = vpop.f32.mrb[0].mxu0
        %v627 = vadd.f32 %v395, %v626
        %v628 = vpop.f32.mrb[0].mxu0
        %629 = vmatprep.mubr.bf16.mxu0 0
        %630 = vmatmul.mubr.bf16.gmra.mrb[0].mxu0 %v468
        %v631 = vpop.f32.mrb[0].mxu0
        %v632 = vadd.f32 %v395, %v631
        %v633 = vpop.f32.mrb[0].mxu0
        %v634 = vpop.f32.mrb[0].mxu0
        %v635 = vadd.f32 %v395, %v634
        %v636 = vpop.f32.mrb[0].mxu0
        %637 = vmatprep.mubr.bf16.mxu0 0
        %638 = vmatmul.mubr.bf16.gmra.mrb[0].mxu0 %v469
        %v639 = vpop.f32.mrb[0].mxu0
        %v640 = vadd.f32 %v395, %v639
        %v641 = vpop.f32.mrb[0].mxu0
        %v642 = vpop.f32.mrb[0].mxu0
        %v643 = vadd.f32 %v395, %v642
        %v644 = vpop.f32.mrb[0].mxu0
        %645 = vmatprep.mubr.bf16.mxu0 0
        %646 = vmatmul.mubr.bf16.gmra.mrb[0].mxu0 %v470
        %v647 = vpop.f32.mrb[0].mxu0
        %v648 = vadd.f32 %v395, %v647
        %v649 = vpop.f32.mrb[0].mxu0
        %v650 = vpop.f32.mrb[0].mxu0
        %v651 = vadd.f32 %v395, %v650
        %v652 = vpop.f32.mrb[0].mxu0
        %653 = vmatprep.mubr.bf16.mxu0 0
        %654 = vmatmul.mubr.bf16.gmra.mrb[0].mxu0 %v471
        %v655 = vpop.f32.mrb[0].mxu0
        %v656 = vadd.f32 %v395, %v655
        %v657 = vpop.f32.mrb[0].mxu0
        %v658 = vpop.f32.mrb[0].mxu0
        %v659 = vadd.f32 %v395, %v658
        %v660 = vpop.f32.mrb[0].mxu0
        %661 = vmatprep.mubr.bf16.mxu0 0
        %662 = vmatmul.mubr.bf16.gmra.mrb[0].mxu0 %v472
        %v663 = vpop.f32.mrb[0].mxu0
        %v664 = vadd.f32 %v395, %v663
        %v665 = vpop.f32.mrb[0].mxu0
        %v666 = vpop.f32.mrb[0].mxu0
        %v667 = vadd.f32 %v395, %v666
        %v668 = vpop.f32.mrb[0].mxu0
        %669 = vmatprep.mubr.bf16.mxu0 0
        %670 = vmatmul.mubr.bf16.gmra.mrb[0].mxu0 %v473
        %v671 = vpop.f32.mrb[0].mxu0
        %v672 = vadd.f32 %v395, %v671
        %v673 = vpop.f32.mrb[0].mxu0
        %v674 = vpop.f32.mrb[0].mxu0
        %v675 = vadd.f32 %v395, %v674
        %v676 = vpop.f32.mrb[0].mxu0
        %677 = vmatprep.mubr.bf16.mxu0 0
        %678 = vmatmul.mubr.bf16.gmra.mrb[0].mxu0 %v474
        %v679 = vpop.f32.mrb[0].mxu0
        %v680 = vadd.f32 %v395, %v679
        %v681 = vpop.f32.mrb[0].mxu0
        %v682 = vpop.f32.mrb[0].mxu0
        %v683 = vadd.f32 %v395, %v682
        %v684 = vpop.f32.mrb[0].mxu0
        %685 = vmatprep.mubr.bf16.mxu0 0
        %686 = vmatmul.mubr.bf16.gmra.mrb[0].mxu0 %v475
        %v687 = vpop.f32.mrb[0].mxu0
        %v688 = vadd.f32 %v395, %v687
        %v689 = vpop.f32.mrb[0].mxu0
        %v690 = vpop.f32.mrb[0].mxu0
        %v691 = vadd.f32 %v395, %v690
        %v692 = vpop.f32.mrb[0].mxu0
        %693 = vmatprep.mubr.bf16.mxu0 0
        %694 = vmatmul.mubr.bf16.gmra.mrb[0].mxu0 %v476
        %v695 = vpop.f32.mrb[0].mxu0
        %v696 = vadd.f32 %v395, %v695
        %v697 = vpop.f32.mrb[0].mxu0
        %v698 = vpop.f32.mrb[0].mxu0
        %v699 = vadd.f32 %v395, %v698
        %v700 = vpop.f32.mrb[0].mxu0
        %701 = vdwg.mxu0
        %v702 = vmax.f32 %v576, 0.0
        %v703 = vmax.f32 %v579, 0.0
        %v704 = vmax.f32 %v584, 0.0
        %v705 = vmax.f32 %v587, 0.0
        %v706 = vmax.f32 %v592, 0.0
        %v707 = vmax.f32 %v595, 0.0
        %v708 = vmax.f32 %v600, 0.0
        %v709 = vmax.f32 %v603, 0.0
        %v710 = vmax.f32 %v608, 0.0
        %v711 = vmax.f32 %v611, 0.0
        %v712 = vmax.f32 %v616, 0.0
        %v713 = vmax.f32 %v619, 0.0
        %v714 = vmax.f32 %v624, 0.0
        %v715 = vmax.f32 %v627, 0.0
        %v716 = vmax.f32 %v632, 0.0
        %v717 = vmax.f32 %v635, 0.0
        %v718 = vmax.f32 %v640, 0.0
        %v719 = vmax.f32 %v643, 0.0
        %v720 = vmax.f32 %v648, 0.0
        %v721 = vmax.f32 %v651, 0.0
        %v722 = vmax.f32 %v656, 0.0
        %v723 = vmax.f32 %v659, 0.0
        %v724 = vmax.f32 %v664, 0.0
        %v725 = vmax.f32 %v667, 0.0
        %v726 = vmax.f32 %v672, 0.0
        %v727 = vmax.f32 %v675, 0.0
        %v728 = vmax.f32 %v680, 0.0
        %v729 = vmax.f32 %v683, 0.0
        %v730 = vmax.f32 %v688, 0.0
        %v731 = vmax.f32 %v691, 0.0
        %v732 = vmax.f32 %v696, 0.0
        %v733 = vmax.f32 %v699, 0.0
        %v734 = vpack.c.bf16 %v703, %v702
        %v735 = vpack.c.bf16 %v705, %v704
        %v736 = vpack.c.bf16 %v707, %v706
        %v737 = vpack.c.bf16 %v709, %v708
        %v738 = vpack.c.bf16 %v711, %v710
        %v739 = vpack.c.bf16 %v713, %v712
        %v740 = vpack.c.bf16 %v715, %v714
        %v741 = vpack.c.bf16 %v717, %v716
        %v742 = vpack.c.bf16 %v719, %v718
        %v743 = vpack.c.bf16 %v721, %v720
        %v744 = vpack.c.bf16 %v723, %v722
        %v745 = vpack.c.bf16 %v725, %v724
        %v746 = vpack.c.bf16 %v727, %v726
        %v747 = vpack.c.bf16 %v729, %v728
        %v748 = vpack.c.bf16 %v731, %v730
        %v749 = vpack.c.bf16 %v733, %v732
        %750 = vst [vmem:[#allocation2] sm:$0xf] 0
        %751 = vst [vmem:[#allocation2 + $0x4] sm:$0xf] 0
        %752 = vst [vmem:[#allocation2 + $0x8] sm:$0x1] 0
        %s753 = scalar_lea.vmem [#allocation2], 204
        %754 = vst [vmem:[%s753] sm:$0xf] 0
        %755 = vst [vmem:[%s753 + $0x4] sm:$0xf] 0
        %756 = vst [vmem:[%s753 + $0x8] sm:$0x1] 0
        %vm757 = vcmask 1040384
        %vm758 = vsmask.f32 256
        %vm759 = vmand %vm757, %vm758
        %v760 = vld [vmem:[#allocation2] sm:$0x1]
        %v761 = vsel %vm759, 0, %v760
        %762 = vst [vmem:[#allocation2] sm:$0x1] %v761
        %v763 = vld [vmem:[#allocation2 + $0xc] sm:$0x1]
        %v764 = vsel %vm759, 0, %v763
        %765 = vst [vmem:[#allocation2 + $0xc] sm:$0x1] %v764
        %v766 = vld [vmem:[#allocation2 + $0x18] sm:$0x1]
        %v767 = vsel %vm759, 0, %v766
        %768 = vst [vmem:[#allocation2 + $0x18] sm:$0x1] %v767
        %v769 = vld [vmem:[#allocation2 + $0x24] sm:$0x1]
        %v770 = vsel %vm759, 0, %v769
        %771 = vst [vmem:[#allocation2 + $0x24] sm:$0x1] %v770
        %v772 = vld [vmem:[#allocation2 + $0x30] sm:$0x1]
        %v773 = vsel %vm759, 0, %v772
        %774 = vst [vmem:[#allocation2 + $0x30] sm:$0x1] %v773
        %v775 = vld [vmem:[#allocation2 + $0x3c] sm:$0x1]
        %v776 = vsel %vm759, 0, %v775
        %777 = vst [vmem:[#allocation2 + $0x3c] sm:$0x1] %v776
        %v778 = vld [vmem:[#allocation2 + $0x48] sm:$0x1]
        %v779 = vsel %vm759, 0, %v778
        %780 = vst [vmem:[#allocation2 + $0x48] sm:$0x1] %v779
        %v781 = vld [vmem:[#allocation2 + $0x54] sm:$0x1]
        %v782 = vsel %vm759, 0, %v781
        %783 = vst [vmem:[#allocation2 + $0x54] sm:$0x1] %v782
        %v784 = vld [vmem:[#allocation2 + $0x60] sm:$0x1]
        %v785 = vsel %vm759, 0, %v784
        %786 = vst [vmem:[#allocation2 + $0x60] sm:$0x1] %v785
        %v787 = vld [vmem:[#allocation2 + $0x6c] sm:$0x1]
        %v788 = vsel %vm759, 0, %v787
        %789 = vst [vmem:[#allocation2 + $0x6c] sm:$0x1] %v788
        %v790 = vld [vmem:[#allocation2 + $0x78] sm:$0x1]
        %v791 = vsel %vm759, 0, %v790
        %792 = vst [vmem:[#allocation2 + $0x78] sm:$0x1] %v791
        %v793 = vld [vmem:[#allocation2 + $0x84] sm:$0x1]
        %v794 = vsel %vm759, 0, %v793
        %795 = vst [vmem:[#allocation2 + $0x84] sm:$0x1] %v794
        %v796 = vld [vmem:[#allocation2 + $0x90] sm:$0x1]
        %v797 = vsel %vm759, 0, %v796
        %798 = vst [vmem:[#allocation2 + $0x90] sm:$0x1] %v797
        %v799 = vld [vmem:[#allocation2 + $0x9c] sm:$0x1]
        %v800 = vsel %vm759, 0, %v799
        %801 = vst [vmem:[#allocation2 + $0x9c] sm:$0x1] %v800
        %v802 = vld [vmem:[#allocation2 + $0xa8] sm:$0x1]
        %v803 = vsel %vm759, 0, %v802
        %804 = vst [vmem:[#allocation2 + $0xa8] sm:$0x1] %v803
        %v805 = vld [vmem:[#allocation2 + $0xb4] sm:$0x1]
        %v806 = vsel %vm759, 0, %v805
        %807 = vst [vmem:[#allocation2 + $0xb4] sm:$0x1] %v806
        %v808 = vld [vmem:[#allocation2 + $0xc0] sm:$0x1]
        %v809 = vsel %vm759, 0, %v808
        %810 = vst [vmem:[#allocation2 + $0xc0] sm:$0x1] %v809
        %v811 = vld [vmem:[#allocation2 + $0xcc] sm:$0x1]
        %v812 = vsel %vm759, 0, %v811
        %813 = vst [vmem:[#allocation2 + $0xcc] sm:$0x1] %v812
        %vm814 = vsmask.f32 7938
        %vm815 = vmand %vm757, %vm814
        %v816 = vld [vmem:[#allocation2 + $0x8] sm:$0x1]
        %v817 = vsel %vm815, 0, %v816
        %818 = vst [vmem:[#allocation2 + $0x8] sm:$0x1] %v817
        %v819 = vld [vmem:[#allocation2 + $0x14] sm:$0x1]
        %v820 = vsel %vm815, 0, %v819
        %821 = vst [vmem:[#allocation2 + $0x14] sm:$0x1] %v820
        %v822 = vld [vmem:[#allocation2 + $0x20] sm:$0x1]
        %v823 = vsel %vm815, 0, %v822
        %824 = vst [vmem:[#allocation2 + $0x20] sm:$0x1] %v823
        %v825 = vld [vmem:[#allocation2 + $0x2c] sm:$0x1]
        %v826 = vsel %vm815, 0, %v825
        %827 = vst [vmem:[#allocation2 + $0x2c] sm:$0x1] %v826
        %v828 = vld [vmem:[#allocation2 + $0x38] sm:$0x1]
        %v829 = vsel %vm815, 0, %v828
        %830 = vst [vmem:[#allocation2 + $0x38] sm:$0x1] %v829
        %v831 = vld [vmem:[#allocation2 + $0x44] sm:$0x1]
        %v832 = vsel %vm815, 0, %v831
        %833 = vst [vmem:[#allocation2 + $0x44] sm:$0x1] %v832
        %v834 = vld [vmem:[#allocation2 + $0x50] sm:$0x1]
        %v835 = vsel %vm815, 0, %v834
        %836 = vst [vmem:[#allocation2 + $0x50] sm:$0x1] %v835
        %v837 = vld [vmem:[#allocation2 + $0x5c] sm:$0x1]
        %v838 = vsel %vm815, 0, %v837
        %839 = vst [vmem:[#allocation2 + $0x5c] sm:$0x1] %v838
        %v840 = vld [vmem:[#allocation2 + $0x68] sm:$0x1]
        %v841 = vsel %vm815, 0, %v840
        %842 = vst [vmem:[#allocation2 + $0x68] sm:$0x1] %v841
        %v843 = vld [vmem:[#allocation2 + $0x74] sm:$0x1]
        %v844 = vsel %vm815, 0, %v843
        %845 = vst [vmem:[#allocation2 + $0x74] sm:$0x1] %v844
        %v846 = vld [vmem:[#allocation2 + $0x80] sm:$0x1]
        %v847 = vsel %vm815, 0, %v846
        %848 = vst [vmem:[#allocation2 + $0x80] sm:$0x1] %v847
        %v849 = vld [vmem:[#allocation2 + $0x8c] sm:$0x1]
        %v850 = vsel %vm815, 0, %v849
        %851 = vst [vmem:[#allocation2 + $0x8c] sm:$0x1] %v850
        %v852 = vld [vmem:[#allocation2 + $0x98] sm:$0x1]
        %v853 = vsel %vm815, 0, %v852
        %854 = vst [vmem:[#allocation2 + $0x98] sm:$0x1] %v853
        %v855 = vld [vmem:[#allocation2 + $0xa4] sm:$0x1]
        %v856 = vsel %vm815, 0, %v855
        %857 = vst [vmem:[#allocation2 + $0xa4] sm:$0x1] %v856
        %v858 = vld [vmem:[#allocation2 + $0xb0] sm:$0x1]
        %v859 = vsel %vm815, 0, %v858
        %860 = vst [vmem:[#allocation2 + $0xb0] sm:$0x1] %v859
        %v861 = vld [vmem:[#allocation2 + $0xbc] sm:$0x1]
        %v862 = vsel %vm815, 0, %v861
        %863 = vst [vmem:[#allocation2 + $0xbc] sm:$0x1] %v862
        %v864 = vld [vmem:[#allocation2 + $0xc8] sm:$0x1]
        %v865 = vsel %vm815, 0, %v864
        %866 = vst [vmem:[#allocation2 + $0xc8] sm:$0x1] %v865
        %v867 = vld [vmem:[#allocation2 + $0xd4] sm:$0x1]
        %v868 = vsel %vm815, 0, %v867
        %869 = vst [vmem:[#allocation2 + $0xd4] sm:$0x1] %v868
        %v886 = vunpack.c.l.b16 %v734
        %v887 = vunpack.c.h.b16 %v734
        %v888 = vunpack.c.l.b16 %v735
        %v889 = vunpack.c.h.b16 %v735
        %v890 = vunpack.c.l.b16 %v736
        %v891 = vunpack.c.h.b16 %v736
        %v892 = vunpack.c.l.b16 %v737
        %v893 = vunpack.c.h.b16 %v737
        %v894 = vunpack.c.l.b16 %v738
        %v895 = vunpack.c.h.b16 %v738
        %v896 = vunpack.c.l.b16 %v739
        %v897 = vunpack.c.h.b16 %v739
        %v898 = vunpack.c.l.b16 %v740
        %v899 = vunpack.c.h.b16 %v740
        %v900 = vunpack.c.l.b16 %v741
        %v901 = vunpack.c.h.b16 %v741
        %v902 = vunpack.c.l.b16 %v742
        %v903 = vunpack.c.h.b16 %v742
        %v904 = vunpack.c.l.b16 %v743
        %v905 = vunpack.c.h.b16 %v743
        %v906 = vunpack.c.l.b16 %v744
        %v907 = vunpack.c.h.b16 %v744
        %v908 = vunpack.c.l.b16 %v745
        %v909 = vunpack.c.h.b16 %v745
        %v910 = vunpack.c.l.b16 %v746
        %v911 = vunpack.c.h.b16 %v746
        %v912 = vunpack.c.l.b16 %v747
        %v913 = vunpack.c.h.b16 %v747
        %v914 = vunpack.c.l.b16 %v748
        %v915 = vunpack.c.h.b16 %v748
        %v916 = vunpack.c.l.b16 %v749
        %v917 = vunpack.c.h.b16 %v749
        %v918 = vpack.c.b16 %v886, %v886
        %v919 = vpack.c.b16 %v887, %v887
        %v920 = vpack.c.b16 %v888, %v888
        %v921 = vpack.c.b16 %v889, %v889
        %v922 = vpack.c.b16 %v890, %v890
        %v923 = vpack.c.b16 %v891, %v891
        %v924 = vpack.c.b16 %v892, %v892
        %v925 = vpack.c.b16 %v893, %v893
        %v926 = vpack.c.b16 %v894, %v894
        %v927 = vpack.c.b16 %v895, %v895
        %v928 = vpack.c.b16 %v896, %v896
        %v929 = vpack.c.b16 %v897, %v897
        %v930 = vpack.c.b16 %v898, %v898
        %v931 = vpack.c.b16 %v899, %v899
        %v932 = vpack.c.b16 %v900, %v900
        %v933 = vpack.c.b16 %v901, %v901
        %v934 = vpack.c.b16 %v902, %v902
        %v935 = vpack.c.b16 %v903, %v903
        %v936 = vpack.c.b16 %v904, %v904
        %v937 = vpack.c.b16 %v905, %v905
        %v938 = vpack.c.b16 %v906, %v906
        %v939 = vpack.c.b16 %v907, %v907
        %v940 = vpack.c.b16 %v908, %v908
        %v941 = vpack.c.b16 %v909, %v909
        %v942 = vpack.c.b16 %v910, %v910
        %v943 = vpack.c.b16 %v911, %v911
        %v944 = vpack.c.b16 %v912, %v912
        %v945 = vpack.c.b16 %v913, %v913
        %v946 = vpack.c.b16 %v914, %v914
        %v947 = vpack.c.b16 %v915, %v915
        %v948 = vpack.c.b16 %v916, %v916
        %v949 = vpack.c.b16 %v917, %v917
        %vm950 = vsmask.f32 4368
        %vm951 = vmor %vm758, %vm950
        %v953 = vshrl.u32 %v918, 16
        %v955 = vrot.slane %v953, 7
        %v956 = vshll.u32 %v918, 16
        %v958 = vor.u32 %v955, %v956
        %v959 = vrot.slane %v955, 4
        %v961 = vshrl.u32 %v919, 16
        %v963 = vrot.slane %v961, 7
        %v964 = vshll.u32 %v919, 16
        %v966 = vor.u32 %v963, %v964
        %v967 = vsel %vm951, %v959, %v966
        %v968 = vrot.slane %v963, 4
        %v970 = vshrl.u32 %v920, 16
        %v972 = vrot.slane %v970, 7
        %v973 = vshll.u32 %v920, 16
        %v975 = vor.u32 %v972, %v973
        %v976 = vrot.slane %v972, 4
        %v978 = vshrl.u32 %v921, 16
        %v980 = vrot.slane %v978, 7
        %v981 = vshll.u32 %v921, 16
        %v983 = vor.u32 %v980, %v981
        %v984 = vsel %vm951, %v976, %v983
        %v985 = vrot.slane %v980, 4
        %v987 = vshrl.u32 %v922, 16
        %v989 = vrot.slane %v987, 7
        %v990 = vshll.u32 %v922, 16
        %v992 = vor.u32 %v989, %v990
        %v993 = vrot.slane %v989, 4
        %v995 = vshrl.u32 %v923, 16
        %v997 = vrot.slane %v995, 7
        %v998 = vshll.u32 %v923, 16
        %v1000 = vor.u32 %v997, %v998
        %v1001 = vsel %vm951, %v993, %v1000
        %v1002 = vrot.slane %v997, 4
        %v1004 = vshrl.u32 %v924, 16
        %v1006 = vrot.slane %v1004, 7
        %v1007 = vshll.u32 %v924, 16
        %v1009 = vor.u32 %v1006, %v1007
        %v1010 = vrot.slane %v1006, 4
        %v1012 = vshrl.u32 %v925, 16
        %v1014 = vrot.slane %v1012, 7
        %v1015 = vshll.u32 %v925, 16
        %v1017 = vor.u32 %v1014, %v1015
        %v1018 = vsel %vm951, %v1010, %v1017
        %v1019 = vrot.slane %v1014, 4
        %v1021 = vshrl.u32 %v926, 16
        %v1023 = vrot.slane %v1021, 7
        %v1024 = vshll.u32 %v926, 16
        %v1026 = vor.u32 %v1023, %v1024
        %v1027 = vrot.slane %v1023, 4
        %v1029 = vshrl.u32 %v927, 16
        %v1031 = vrot.slane %v1029, 7
        %v1032 = vshll.u32 %v927, 16
        %v1034 = vor.u32 %v1031, %v1032
        %v1035 = vsel %vm951, %v1027, %v1034
        %v1036 = vrot.slane %v1031, 4
        %v1038 = vshrl.u32 %v928, 16
        %v1040 = vrot.slane %v1038, 7
        %v1041 = vshll.u32 %v928, 16
        %v1043 = vor.u32 %v1040, %v1041
        %v1044 = vrot.slane %v1040, 4
        %v1046 = vshrl.u32 %v929, 16
        %v1048 = vrot.slane %v1046, 7
        %v1049 = vshll.u32 %v929, 16
        %v1051 = vor.u32 %v1048, %v1049
        %v1052 = vsel %vm951, %v1044, %v1051
        %v1053 = vrot.slane %v1048, 4
        %v1055 = vshrl.u32 %v930, 16
        %v1057 = vrot.slane %v1055, 7
        %v1058 = vshll.u32 %v930, 16
        %v1060 = vor.u32 %v1057, %v1058
        %v1061 = vrot.slane %v1057, 4
        %v1063 = vshrl.u32 %v931, 16
        %v1065 = vrot.slane %v1063, 7
        %v1066 = vshll.u32 %v931, 16
        %v1068 = vor.u32 %v1065, %v1066
        %v1069 = vsel %vm951, %v1061, %v1068
        %v1070 = vrot.slane %v1065, 4
        %v1072 = vshrl.u32 %v932, 16
        %v1074 = vrot.slane %v1072, 7
        %v1075 = vshll.u32 %v932, 16
        %v1077 = vor.u32 %v1074, %v1075
        %v1078 = vrot.slane %v1074, 4
        %v1080 = vshrl.u32 %v933, 16
        %v1082 = vrot.slane %v1080, 7
        %v1083 = vshll.u32 %v933, 16
        %v1085 = vor.u32 %v1082, %v1083
        %v1086 = vsel %vm951, %v1078, %v1085
        %v1087 = vrot.slane %v1082, 4
        %v1089 = vshrl.u32 %v934, 16
        %v1091 = vrot.slane %v1089, 7
        %v1092 = vshll.u32 %v934, 16
        %v1094 = vor.u32 %v1091, %v1092
        %v1095 = vrot.slane %v1091, 4
        %v1097 = vshrl.u32 %v935, 16
        %v1099 = vrot.slane %v1097, 7
        %v1100 = vshll.u32 %v935, 16
        %v1102 = vor.u32 %v1099, %v1100
        %v1103 = vsel %vm951, %v1095, %v1102
        %v1104 = vrot.slane %v1099, 4
        %v1106 = vshrl.u32 %v936, 16
        %v1108 = vrot.slane %v1106, 7
        %v1109 = vshll.u32 %v936, 16
        %v1111 = vor.u32 %v1108, %v1109
        %v1112 = vrot.slane %v1108, 4
        %v1114 = vshrl.u32 %v937, 16
        %v1116 = vrot.slane %v1114, 7
        %v1117 = vshll.u32 %v937, 16
        %v1119 = vor.u32 %v1116, %v1117
        %v1120 = vsel %vm951, %v1112, %v1119
        %v1121 = vrot.slane %v1116, 4
        %v1123 = vshrl.u32 %v938, 16
        %v1125 = vrot.slane %v1123, 7
        %v1126 = vshll.u32 %v938, 16
        %v1128 = vor.u32 %v1125, %v1126
        %v1129 = vrot.slane %v1125, 4
        %v1131 = vshrl.u32 %v939, 16
        %v1133 = vrot.slane %v1131, 7
        %v1134 = vshll.u32 %v939, 16
        %v1136 = vor.u32 %v1133, %v1134
        %v1137 = vsel %vm951, %v1129, %v1136
        %v1138 = vrot.slane %v1133, 4
        %v1140 = vshrl.u32 %v940, 16
        %v1142 = vrot.slane %v1140, 7
        %v1143 = vshll.u32 %v940, 16
        %v1145 = vor.u32 %v1142, %v1143
        %v1146 = vrot.slane %v1142, 4
        %v1148 = vshrl.u32 %v941, 16
        %v1150 = vrot.slane %v1148, 7
        %v1151 = vshll.u32 %v941, 16
        %v1153 = vor.u32 %v1150, %v1151
        %v1154 = vsel %vm951, %v1146, %v1153
        %v1155 = vrot.slane %v1150, 4
        %v1157 = vshrl.u32 %v942, 16
        %v1159 = vrot.slane %v1157, 7
        %v1160 = vshll.u32 %v942, 16
        %v1162 = vor.u32 %v1159, %v1160
        %v1163 = vrot.slane %v1159, 4
        %v1165 = vshrl.u32 %v943, 16
        %v1167 = vrot.slane %v1165, 7
        %v1168 = vshll.u32 %v943, 16
        %v1170 = vor.u32 %v1167, %v1168
        %v1171 = vsel %vm951, %v1163, %v1170
        %v1172 = vrot.slane %v1167, 4
        %v1174 = vshrl.u32 %v944, 16
        %v1176 = vrot.slane %v1174, 7
        %v1177 = vshll.u32 %v944, 16
        %v1179 = vor.u32 %v1176, %v1177
        %v1180 = vrot.slane %v1176, 4
        %v1182 = vshrl.u32 %v945, 16
        %v1184 = vrot.slane %v1182, 7
        %v1185 = vshll.u32 %v945, 16
        %v1187 = vor.u32 %v1184, %v1185
        %v1188 = vsel %vm951, %v1180, %v1187
        %v1189 = vrot.slane %v1184, 4
        %v1191 = vshrl.u32 %v946, 16
        %v1193 = vrot.slane %v1191, 7
        %v1194 = vshll.u32 %v946, 16
        %v1196 = vor.u32 %v1193, %v1194
        %v1197 = vrot.slane %v1193, 4
        %v1199 = vshrl.u32 %v947, 16
        %v1201 = vrot.slane %v1199, 7
        %v1202 = vshll.u32 %v947, 16
        %v1204 = vor.u32 %v1201, %v1202
        %v1205 = vsel %vm951, %v1197, %v1204
        %v1206 = vrot.slane %v1201, 4
        %v1208 = vshrl.u32 %v948, 16
        %v1210 = vrot.slane %v1208, 7
        %v1211 = vshll.u32 %v948, 16
        %v1213 = vor.u32 %v1210, %v1211
        %v1214 = vrot.slane %v1210, 4
        %v1216 = vshrl.u32 %v949, 16
        %v1218 = vrot.slane %v1216, 7
        %v1219 = vshll.u32 %v949, 16
        %v1221 = vor.u32 %v1218, %v1219
        %v1222 = vsel %vm951, %v1214, %v1221
        %v1223 = vrot.slane %v1218, 4
        %s1272 = scalar_lea.vmem [#allocation2], 12
        %vm1273 = vcmask 1043456
        %vm1274 = vmand %vm1273, %vm814
        %v1275 = vld [vmem:[%s1272] sm:$0xf]
        %v1276 = vsel %vm1274, %v958, %v1275
        %1277 = vst [vmem:[%s1272] sm:$0xf] %v1276
        %1278 = vst [vmem:[%s1272 + $0x4] sm:$0xf] %v967
        %v1279 = vld [vmem:[%s1272 + $0x8] sm:$0x1]
        %v1280 = vsel %vm759, %v968, %v1279
        %1281 = vst [vmem:[%s1272 + $0x8] sm:$0x1] %v1280
        %v1282 = vld [vmem:[%s1272 + $0xc] sm:$0xf]
        %v1283 = vsel %vm1274, %v975, %v1282
        %1284 = vst [vmem:[%s1272 + $0xc] sm:$0xf] %v1283
        %1285 = vst [vmem:[%s1272 + $0x10] sm:$0xf] %v984
        %v1286 = vld [vmem:[%s1272 + $0x14] sm:$0x1]
        %v1287 = vsel %vm759, %v985, %v1286
        %1288 = vst [vmem:[%s1272 + $0x14] sm:$0x1] %v1287
        %v1289 = vld [vmem:[%s1272 + $0x18] sm:$0xf]
        %v1290 = vsel %vm1274, %v992, %v1289
        %1291 = vst [vmem:[%s1272 + $0x18] sm:$0xf] %v1290
        %1292 = vst [vmem:[%s1272 + $0x1c] sm:$0xf] %v1001
        %v1293 = vld [vmem:[%s1272 + $0x20] sm:$0x1]
        %v1294 = vsel %vm759, %v1002, %v1293
        %1295 = vst [vmem:[%s1272 + $0x20] sm:$0x1] %v1294
        %v1296 = vld [vmem:[%s1272 + $0x24] sm:$0xf]
        %v1297 = vsel %vm1274, %v1009, %v1296
        %1298 = vst [vmem:[%s1272 + $0x24] sm:$0xf] %v1297
        %1299 = vst [vmem:[%s1272 + $0x28] sm:$0xf] %v1018
        %v1300 = vld [vmem:[%s1272 + $0x2c] sm:$0x1]
        %v1301 = vsel %vm759, %v1019, %v1300
        %1302 = vst [vmem:[%s1272 + $0x2c] sm:$0x1] %v1301
        %v1303 = vld [vmem:[%s1272 + $0x30] sm:$0xf]
        %v1304 = vsel %vm1274, %v1026, %v1303
        %1305 = vst [vmem:[%s1272 + $0x30] sm:$0xf] %v1304
        %1306 = vst [vmem:[%s1272 + $0x34] sm:$0xf] %v1035
        %v1307 = vld [vmem:[%s1272 + $0x38] sm:$0x1]
        %v1308 = vsel %vm759, %v1036, %v1307
        %1309 = vst [vmem:[%s1272 + $0x38] sm:$0x1] %v1308
        %v1310 = vld [vmem:[%s1272 + $0x3c] sm:$0xf]
        %v1311 = vsel %vm1274, %v1043, %v1310
        %1312 = vst [vmem:[%s1272 + $0x3c] sm:$0xf] %v1311
        %1313 = vst [vmem:[%s1272 + $0x40] sm:$0xf] %v1052
        %v1314 = vld [vmem:[%s1272 + $0x44] sm:$0x1]
        %v1315 = vsel %vm759, %v1053, %v1314
        %1316 = vst [vmem:[%s1272 + $0x44] sm:$0x1] %v1315
        %v1317 = vld [vmem:[%s1272 + $0x48] sm:$0xf]
        %v1318 = vsel %vm1274, %v1060, %v1317
        %1319 = vst [vmem:[%s1272 + $0x48] sm:$0xf] %v1318
        %1320 = vst [vmem:[%s1272 + $0x4c] sm:$0xf] %v1069
        %v1321 = vld [vmem:[%s1272 + $0x50] sm:$0x1]
        %v1322 = vsel %vm759, %v1070, %v1321
        %1323 = vst [vmem:[%s1272 + $0x50] sm:$0x1] %v1322
        %v1324 = vld [vmem:[%s1272 + $0x54] sm:$0xf]
        %v1325 = vsel %vm1274, %v1077, %v1324
        %1326 = vst [vmem:[%s1272 + $0x54] sm:$0xf] %v1325
        %1327 = vst [vmem:[%s1272 + $0x58] sm:$0xf] %v1086
        %v1328 = vld [vmem:[%s1272 + $0x5c] sm:$0x1]
        %v1329 = vsel %vm759, %v1087, %v1328
        %1330 = vst [vmem:[%s1272 + $0x5c] sm:$0x1] %v1329
        %v1331 = vld [vmem:[%s1272 + $0x60] sm:$0xf]
        %v1332 = vsel %vm1274, %v1094, %v1331
        %1333 = vst [vmem:[%s1272 + $0x60] sm:$0xf] %v1332
        %1334 = vst [vmem:[%s1272 + $0x64] sm:$0xf] %v1103
        %v1335 = vld [vmem:[%s1272 + $0x68] sm:$0x1]
        %v1336 = vsel %vm759, %v1104, %v1335
        %1337 = vst [vmem:[%s1272 + $0x68] sm:$0x1] %v1336
        %v1338 = vld [vmem:[%s1272 + $0x6c] sm:$0xf]
        %v1339 = vsel %vm1274, %v1111, %v1338
        %1340 = vst [vmem:[%s1272 + $0x6c] sm:$0xf] %v1339
        %1341 = vst [vmem:[%s1272 + $0x70] sm:$0xf] %v1120
        %v1342 = vld [vmem:[%s1272 + $0x74] sm:$0x1]
        %v1343 = vsel %vm759, %v1121, %v1342
        %1344 = vst [vmem:[%s1272 + $0x74] sm:$0x1] %v1343
        %v1345 = vld [vmem:[%s1272 + $0x78] sm:$0xf]
        %v1346 = vsel %vm1274, %v1128, %v1345
        %1347 = vst [vmem:[%s1272 + $0x78] sm:$0xf] %v1346
        %1348 = vst [vmem:[%s1272 + $0x7c] sm:$0xf] %v1137
        %v1349 = vld [vmem:[%s1272 + $0x80] sm:$0x1]
        %v1350 = vsel %vm759, %v1138, %v1349
        %1351 = vst [vmem:[%s1272 + $0x80] sm:$0x1] %v1350
        %v1352 = vld [vmem:[%s1272 + $0x84] sm:$0xf]
        %v1353 = vsel %vm1274, %v1145, %v1352
        %1354 = vst [vmem:[%s1272 + $0x84] sm:$0xf] %v1353
        %1355 = vst [vmem:[%s1272 + $0x88] sm:$0xf] %v1154
        %v1356 = vld [vmem:[%s1272 + $0x8c] sm:$0x1]
        %v1357 = vsel %vm759, %v1155, %v1356
        %1358 = vst [vmem:[%s1272 + $0x8c] sm:$0x1] %v1357
        %v1359 = vld [vmem:[%s1272 + $0x90] sm:$0xf]
        %v1360 = vsel %vm1274, %v1162, %v1359
        %1361 = vst [vmem:[%s1272 + $0x90] sm:$0xf] %v1360
        %1362 = vst [vmem:[%s1272 + $0x94] sm:$0xf] %v1171
        %v1363 = vld [vmem:[%s1272 + $0x98] sm:$0x1]
        %v1364 = vsel %vm759, %v1172, %v1363
        %1365 = vst [vmem:[%s1272 + $0x98] sm:$0x1] %v1364
        %v1366 = vld [vmem:[%s1272 + $0x9c] sm:$0xf]
        %v1367 = vsel %vm1274, %v1179, %v1366
        %1368 = vst [vmem:[%s1272 + $0x9c] sm:$0xf] %v1367
        %1369 = vst [vmem:[%s1272 + $0xa0] sm:$0xf] %v1188
        %v1370 = vld [vmem:[%s1272 + $0xa4] sm:$0x1]
        %v1371 = vsel %vm759, %v1189, %v1370
        %1372 = vst [vmem:[%s1272 + $0xa4] sm:$0x1] %v1371
        %v1373 = vld [vmem:[%s1272 + $0xa8] sm:$0xf]
        %v1374 = vsel %vm1274, %v1196, %v1373
        %1375 = vst [vmem:[%s1272 + $0xa8] sm:$0xf] %v1374
        %1376 = vst [vmem:[%s1272 + $0xac] sm:$0xf] %v1205
        %v1377 = vld [vmem:[%s1272 + $0xb0] sm:$0x1]
        %v1378 = vsel %vm759, %v1206, %v1377
        %1379 = vst [vmem:[%s1272 + $0xb0] sm:$0x1] %v1378
        %v1380 = vld [vmem:[%s1272 + $0xb4] sm:$0xf]
        %v1381 = vsel %vm1274, %v1213, %v1380
        %1382 = vst [vmem:[%s1272 + $0xb4] sm:$0xf] %v1381
        %1383 = vst [vmem:[%s1272 + $0xb8] sm:$0xf] %v1222
        %v1384 = vld [vmem:[%s1272 + $0xbc] sm:$0x1]
        %v1385 = vsel %vm759, %v1223, %v1384
        %1386 = vst [vmem:[%s1272 + $0xbc] sm:$0x1] %v1385
        %v1387 = vld [vmem:[#allocation2] sm:$0xf]
        %v1388 = vld [vmem:[#allocation2 + $0x4] sm:$0xf]
        %v1389 = vld [vmem:[#allocation2 + $0xc] sm:$0xf]
        %v1390 = vld [vmem:[#allocation2 + $0x10] sm:$0xf]
        %v1391 = vld [vmem:[#allocation2 + $0x18] sm:$0xf]
        %v1392 = vld [vmem:[#allocation2 + $0x1c] sm:$0xf]
        %v1393 = vld [vmem:[#allocation2 + $0x24] sm:$0xf]
        %v1394 = vld [vmem:[#allocation2 + $0x28] sm:$0xf]
        %v1395 = vld [vmem:[#allocation2 + $0x30] sm:$0xf]
        %v1396 = vld [vmem:[#allocation2 + $0x34] sm:$0xf]
        %v1397 = vld [vmem:[#allocation2 + $0x3c] sm:$0xf]
        %v1398 = vld [vmem:[#allocation2 + $0x40] sm:$0xf]
        %v1399 = vld [vmem:[#allocation2 + $0x48] sm:$0xf]
        %v1400 = vld [vmem:[#allocation2 + $0x4c] sm:$0xf]
        %v1401 = vld [vmem:[#allocation2 + $0x54] sm:$0xf]
        %v1402 = vld [vmem:[#allocation2 + $0x58] sm:$0xf]
        %v1403 = vld [vmem:[#allocation2 + $0x60] sm:$0xf]
        %v1404 = vld [vmem:[#allocation2 + $0x64] sm:$0xf]
        %v1405 = vld [vmem:[#allocation2 + $0x6c] sm:$0xf]
        %v1406 = vld [vmem:[#allocation2 + $0x70] sm:$0xf]
        %v1407 = vld [vmem:[#allocation2 + $0x78] sm:$0xf]
        %v1408 = vld [vmem:[#allocation2 + $0x7c] sm:$0xf]
        %v1409 = vld [vmem:[#allocation2 + $0x84] sm:$0xf]
        %v1410 = vld [vmem:[#allocation2 + $0x88] sm:$0xf]
        %v1411 = vld [vmem:[#allocation2 + $0x90] sm:$0xf]
        %v1412 = vld [vmem:[#allocation2 + $0x94] sm:$0xf]
        %v1413 = vld [vmem:[#allocation2 + $0x9c] sm:$0xf]
        %v1414 = vld [vmem:[#allocation2 + $0xa0] sm:$0xf]
        %v1415 = vld [vmem:[#allocation2 + $0xa8] sm:$0xf]
        %v1416 = vld [vmem:[#allocation2 + $0xac] sm:$0xf]
        %v1417 = vld [vmem:[#allocation2 + $0xb4] sm:$0xf]
        %v1418 = vld [vmem:[#allocation2 + $0xb8] sm:$0xf]
        %v1419 = vld [vmem:[#allocation8] sm:$0xf]
        %v1420 = vld [vmem:[#allocation8 + $0x4] sm:$0xf]
        %v1421 = vld [vmem:[#allocation8 + $0x8] sm:$0xf]
        %v1422 = vld [vmem:[#allocation8 + $0xc] sm:$0xf]
        %v1423 = vld [vmem:[#allocation8 + $0x10] sm:$0xf]
        %v1424 = vld [vmem:[#allocation8 + $0x14] sm:$0xf]
        %v1425 = vld [vmem:[#allocation8 + $0x18] sm:$0xf]
        %v1426 = vld [vmem:[#allocation8 + $0x1c] sm:$0xf]
        %v1427 = vld [vmem:[#allocation8 + $0x20] sm:$0xf]
        %v1428 = vld [vmem:[#allocation8 + $0x24] sm:$0xf]
        %v1429 = vld [vmem:[#allocation8 + $0x28] sm:$0xf]
        %v1430 = vld [vmem:[#allocation8 + $0x2c] sm:$0xf]
        %v1431 = vld [vmem:[#allocation8 + $0x30] sm:$0xf]
        %v1432 = vld [vmem:[#allocation8 + $0x34] sm:$0xf]
        %v1433 = vld [vmem:[#allocation8 + $0x38] sm:$0xf]
        %v1434 = vld [vmem:[#allocation8 + $0x3c] sm:$0xf]
        %v1435 = vld [vmem:[#allocation2 + $0x8] sm:$0x1]
        %v1436 = vld [vmem:[#allocation2 + $0x14] sm:$0x1]
        %v1437 = vld [vmem:[#allocation2 + $0x20] sm:$0x1]
        %v1438 = vld [vmem:[#allocation2 + $0x2c] sm:$0x1]
        %v1439 = vld [vmem:[#allocation2 + $0x38] sm:$0x1]
        %v1440 = vld [vmem:[#allocation2 + $0x44] sm:$0x1]
        %v1441 = vld [vmem:[#allocation2 + $0x50] sm:$0x1]
        %v1442 = vld [vmem:[#allocation2 + $0x5c] sm:$0x1]
        %v1443 = vld [vmem:[#allocation2 + $0x68] sm:$0x1]
        %v1444 = vld [vmem:[#allocation2 + $0x74] sm:$0x1]
        %v1445 = vld [vmem:[#allocation2 + $0x80] sm:$0x1]
        %v1446 = vld [vmem:[#allocation2 + $0x8c] sm:$0x1]
        %v1447 = vld [vmem:[#allocation2 + $0x98] sm:$0x1]
        %v1448 = vld [vmem:[#allocation2 + $0xa4] sm:$0x1]
        %v1449 = vld [vmem:[#allocation2 + $0xb0] sm:$0x1]
        %v1450 = vld [vmem:[#allocation2 + $0xbc] sm:$0x1]
        %vm1451 = vsmask.f32 3328
        %vm1452 = vsmask.f32 7440
        %vm1453 = vmor %vm1451, %vm1452
        %v1455 = vshrl.u32 %v1387, 16
        %v1457 = vrot.slane %v1455, 4
        %v1458 = vshll.u32 %v1387, 16
        %v1460 = vrot.slane %v1458, 5
        %v1461 = vor.u32 %v1457, %v1460
        %v1462 = vrot.slane %v1461, 4
        %v1464 = vshll.u32 %v1388, 16
        %v1466 = vrot.slane %v1464, 5
        %v1467 = vsel %vm1453, %v1462, %v1466
        %v1468 = vshrl.u32 %v1388, 16
        %v1470 = vrot.slane %v1468, 4
        %v1471 = vor.u32 %v1470, %v1466
        %v1472 = vrot.slane %v1471, 4
        %v1474 = vshll.u32 %v1435, 16
        %v1476 = vrot.slane %v1474, 5
        %v1477 = vsel %vm1453, %v1472, %v1476
        %v1479 = vshrl.u32 %v1389, 16
        %v1481 = vrot.slane %v1479, 4
        %v1482 = vshll.u32 %v1389, 16
        %v1484 = vrot.slane %v1482, 5
        %v1485 = vor.u32 %v1481, %v1484
        %v1486 = vrot.slane %v1485, 4
        %v1488 = vshll.u32 %v1390, 16
        %v1490 = vrot.slane %v1488, 5
        %v1491 = vsel %vm1453, %v1486, %v1490
        %v1492 = vshrl.u32 %v1390, 16
        %v1494 = vrot.slane %v1492, 4
        %v1495 = vor.u32 %v1494, %v1490
        %v1496 = vrot.slane %v1495, 4
        %v1498 = vshll.u32 %v1436, 16
        %v1500 = vrot.slane %v1498, 5
        %v1501 = vsel %vm1453, %v1496, %v1500
        %v1503 = vshrl.u32 %v1391, 16
        %v1505 = vrot.slane %v1503, 4
        %v1506 = vshll.u32 %v1391, 16
        %v1508 = vrot.slane %v1506, 5
        %v1509 = vor.u32 %v1505, %v1508
        %v1510 = vrot.slane %v1509, 4
        %v1512 = vshll.u32 %v1392, 16
        %v1514 = vrot.slane %v1512, 5
        %v1515 = vsel %vm1453, %v1510, %v1514
        %v1516 = vshrl.u32 %v1392, 16
        %v1518 = vrot.slane %v1516, 4
        %v1519 = vor.u32 %v1518, %v1514
        %v1520 = vrot.slane %v1519, 4
        %v1522 = vshll.u32 %v1437, 16
        %v1524 = vrot.slane %v1522, 5
        %v1525 = vsel %vm1453, %v1520, %v1524
        %v1527 = vshrl.u32 %v1393, 16
        %v1529 = vrot.slane %v1527, 4
        %v1530 = vshll.u32 %v1393, 16
        %v1532 = vrot.slane %v1530, 5
        %v1533 = vor.u32 %v1529, %v1532
        %v1534 = vrot.slane %v1533, 4
        %v1536 = vshll.u32 %v1394, 16
        %v1538 = vrot.slane %v1536, 5
        %v1539 = vsel %vm1453, %v1534, %v1538
        %v1540 = vshrl.u32 %v1394, 16
        %v1542 = vrot.slane %v1540, 4
        %v1543 = vor.u32 %v1542, %v1538
        %v1544 = vrot.slane %v1543, 4
        %v1546 = vshll.u32 %v1438, 16
        %v1548 = vrot.slane %v1546, 5
        %v1549 = vsel %vm1453, %v1544, %v1548
        %v1551 = vshrl.u32 %v1395, 16
        %v1553 = vrot.slane %v1551, 4
        %v1554 = vshll.u32 %v1395, 16
        %v1556 = vrot.slane %v1554, 5
        %v1557 = vor.u32 %v1553, %v1556
        %v1558 = vrot.slane %v1557, 4
        %v1560 = vshll.u32 %v1396, 16
        %v1562 = vrot.slane %v1560, 5
        %v1563 = vsel %vm1453, %v1558, %v1562
        %v1564 = vshrl.u32 %v1396, 16
        %v1566 = vrot.slane %v1564, 4
        %v1567 = vor.u32 %v1566, %v1562
        %v1568 = vrot.slane %v1567, 4
        %v1570 = vshll.u32 %v1439, 16
        %v1572 = vrot.slane %v1570, 5
        %v1573 = vsel %vm1453, %v1568, %v1572
        %v1575 = vshrl.u32 %v1397, 16
        %v1577 = vrot.slane %v1575, 4
        %v1578 = vshll.u32 %v1397, 16
        %v1580 = vrot.slane %v1578, 5
        %v1581 = vor.u32 %v1577, %v1580
        %v1582 = vrot.slane %v1581, 4
        %v1584 = vshll.u32 %v1398, 16
        %v1586 = vrot.slane %v1584, 5
        %v1587 = vsel %vm1453, %v1582, %v1586
        %v1588 = vshrl.u32 %v1398, 16
        %v1590 = vrot.slane %v1588, 4
        %v1591 = vor.u32 %v1590, %v1586
        %v1592 = vrot.slane %v1591, 4
        %v1594 = vshll.u32 %v1440, 16
        %v1596 = vrot.slane %v1594, 5
        %v1597 = vsel %vm1453, %v1592, %v1596
        %v1599 = vshrl.u32 %v1399, 16
        %v1601 = vrot.slane %v1599, 4
        %v1602 = vshll.u32 %v1399, 16
        %v1604 = vrot.slane %v1602, 5
        %v1605 = vor.u32 %v1601, %v1604
        %v1606 = vrot.slane %v1605, 4
        %v1608 = vshll.u32 %v1400, 16
        %v1610 = vrot.slane %v1608, 5
        %v1611 = vsel %vm1453, %v1606, %v1610
        %v1612 = vshrl.u32 %v1400, 16
        %v1614 = vrot.slane %v1612, 4
        %v1615 = vor.u32 %v1614, %v1610
        %v1616 = vrot.slane %v1615, 4
        %v1618 = vshll.u32 %v1441, 16
        %v1620 = vrot.slane %v1618, 5
        %v1621 = vsel %vm1453, %v1616, %v1620
        %v1623 = vshrl.u32 %v1401, 16
        %v1625 = vrot.slane %v1623, 4
        %v1626 = vshll.u32 %v1401, 16
        %v1628 = vrot.slane %v1626, 5
        %v1629 = vor.u32 %v1625, %v1628
        %v1630 = vrot.slane %v1629, 4
        %v1632 = vshll.u32 %v1402, 16
        %v1634 = vrot.slane %v1632, 5
        %v1635 = vsel %vm1453, %v1630, %v1634
        %v1636 = vshrl.u32 %v1402, 16
        %v1638 = vrot.slane %v1636, 4
        %v1639 = vor.u32 %v1638, %v1634
        %v1640 = vrot.slane %v1639, 4
        %v1642 = vshll.u32 %v1442, 16
        %v1644 = vrot.slane %v1642, 5
        %v1645 = vsel %vm1453, %v1640, %v1644
        %v1647 = vshrl.u32 %v1403, 16
        %v1649 = vrot.slane %v1647, 4
        %v1650 = vshll.u32 %v1403, 16
        %v1652 = vrot.slane %v1650, 5
        %v1653 = vor.u32 %v1649, %v1652
        %v1654 = vrot.slane %v1653, 4
        %v1656 = vshll.u32 %v1404, 16
        %v1658 = vrot.slane %v1656, 5
        %v1659 = vsel %vm1453, %v1654, %v1658
        %v1660 = vshrl.u32 %v1404, 16
        %v1662 = vrot.slane %v1660, 4
        %v1663 = vor.u32 %v1662, %v1658
        %v1664 = vrot.slane %v1663, 4
        %v1666 = vshll.u32 %v1443, 16
        %v1668 = vrot.slane %v1666, 5
        %v1669 = vsel %vm1453, %v1664, %v1668
        %v1671 = vshrl.u32 %v1405, 16
        %v1673 = vrot.slane %v1671, 4
        %v1674 = vshll.u32 %v1405, 16
        %v1676 = vrot.slane %v1674, 5
        %v1677 = vor.u32 %v1673, %v1676
        %v1678 = vrot.slane %v1677, 4
        %v1680 = vshll.u32 %v1406, 16
        %v1682 = vrot.slane %v1680, 5
        %v1683 = vsel %vm1453, %v1678, %v1682
        %v1684 = vshrl.u32 %v1406, 16
        %v1686 = vrot.slane %v1684, 4
        %v1687 = vor.u32 %v1686, %v1682
        %v1688 = vrot.slane %v1687, 4
        %v1690 = vshll.u32 %v1444, 16
        %v1692 = vrot.slane %v1690, 5
        %v1693 = vsel %vm1453, %v1688, %v1692
        %v1695 = vshrl.u32 %v1407, 16
        %v1697 = vrot.slane %v1695, 4
        %v1698 = vshll.u32 %v1407, 16
        %v1700 = vrot.slane %v1698, 5
        %v1701 = vor.u32 %v1697, %v1700
        %v1702 = vrot.slane %v1701, 4
        %v1704 = vshll.u32 %v1408, 16
        %v1706 = vrot.slane %v1704, 5
        %v1707 = vsel %vm1453, %v1702, %v1706
        %v1708 = vshrl.u32 %v1408, 16
        %v1710 = vrot.slane %v1708, 4
        %v1711 = vor.u32 %v1710, %v1706
        %v1712 = vrot.slane %v1711, 4
        %v1714 = vshll.u32 %v1445, 16
        %v1716 = vrot.slane %v1714, 5
        %v1717 = vsel %vm1453, %v1712, %v1716
        %v1719 = vshrl.u32 %v1409, 16
        %v1721 = vrot.slane %v1719, 4
        %v1722 = vshll.u32 %v1409, 16
        %v1724 = vrot.slane %v1722, 5
        %v1725 = vor.u32 %v1721, %v1724
        %v1726 = vrot.slane %v1725, 4
        %v1728 = vshll.u32 %v1410, 16
        %v1730 = vrot.slane %v1728, 5
        %v1731 = vsel %vm1453, %v1726, %v1730
        %v1732 = vshrl.u32 %v1410, 16
        %v1734 = vrot.slane %v1732, 4
        %v1735 = vor.u32 %v1734, %v1730
        %v1736 = vrot.slane %v1735, 4
        %v1738 = vshll.u32 %v1446, 16
        %v1740 = vrot.slane %v1738, 5
        %v1741 = vsel %vm1453, %v1736, %v1740
        %v1743 = vshrl.u32 %v1411, 16
        %v1745 = vrot.slane %v1743, 4
        %v1746 = vshll.u32 %v1411, 16
        %v1748 = vrot.slane %v1746, 5
        %v1749 = vor.u32 %v1745, %v1748
        %v1750 = vrot.slane %v1749, 4
        %v1752 = vshll.u32 %v1412, 16
        %v1754 = vrot.slane %v1752, 5
        %v1755 = vsel %vm1453, %v1750, %v1754
        %v1756 = vshrl.u32 %v1412, 16
        %v1758 = vrot.slane %v1756, 4
        %v1759 = vor.u32 %v1758, %v1754
        %v1760 = vrot.slane %v1759, 4
        %v1762 = vshll.u32 %v1447, 16
        %v1764 = vrot.slane %v1762, 5
        %v1765 = vsel %vm1453, %v1760, %v1764
        %v1767 = vshrl.u32 %v1413, 16
        %v1769 = vrot.slane %v1767, 4
        %v1770 = vshll.u32 %v1413, 16
        %v1772 = vrot.slane %v1770, 5
        %v1773 = vor.u32 %v1769, %v1772
        %v1774 = vrot.slane %v1773, 4
        %v1776 = vshll.u32 %v1414, 16
        %v1778 = vrot.slane %v1776, 5
        %v1779 = vsel %vm1453, %v1774, %v1778
        %v1780 = vshrl.u32 %v1414, 16
        %v1782 = vrot.slane %v1780, 4
        %v1783 = vor.u32 %v1782, %v1778
        %v1784 = vrot.slane %v1783, 4
        %v1786 = vshll.u32 %v1448, 16
        %v1788 = vrot.slane %v1786, 5
        %v1789 = vsel %vm1453, %v1784, %v1788
        %v1791 = vshrl.u32 %v1415, 16
        %v1793 = vrot.slane %v1791, 4
        %v1794 = vshll.u32 %v1415, 16
        %v1796 = vrot.slane %v1794, 5
        %v1797 = vor.u32 %v1793, %v1796
        %v1798 = vrot.slane %v1797, 4
        %v1800 = vshll.u32 %v1416, 16
        %v1802 = vrot.slane %v1800, 5
        %v1803 = vsel %vm1453, %v1798, %v1802
        %v1804 = vshrl.u32 %v1416, 16
        %v1806 = vrot.slane %v1804, 4
        %v1807 = vor.u32 %v1806, %v1802
        %v1808 = vrot.slane %v1807, 4
        %v1810 = vshll.u32 %v1449, 16
        %v1812 = vrot.slane %v1810, 5
        %v1813 = vsel %vm1453, %v1808, %v1812
        %v1815 = vshrl.u32 %v1417, 16
        %v1817 = vrot.slane %v1815, 4
        %v1818 = vshll.u32 %v1417, 16
        %v1820 = vrot.slane %v1818, 5
        %v1821 = vor.u32 %v1817, %v1820
        %v1822 = vrot.slane %v1821, 4
        %v1824 = vshll.u32 %v1418, 16
        %v1826 = vrot.slane %v1824, 5
        %v1827 = vsel %vm1453, %v1822, %v1826
        %v1828 = vshrl.u32 %v1418, 16
        %v1830 = vrot.slane %v1828, 4
        %v1831 = vor.u32 %v1830, %v1826
        %v1832 = vrot.slane %v1831, 4
        %v1834 = vshll.u32 %v1450, 16
        %v1836 = vrot.slane %v1834, 5
        %v1837 = vsel %vm1453, %v1832, %v1836
        %s1838 = scalar_lea.vmem [#allocation8], 64
        %v1839 = vld [vmem:[%s1838] sm:$0xf]
        %v1840 = vld [vmem:[%s1838 + $0x4] sm:$0xf]
        %v1841 = vld [vmem:[%s1838 + $0x8] sm:$0xf]
        %v1842 = vld [vmem:[%s1838 + $0xc] sm:$0xf]
        %v1843 = vld [vmem:[%s1838 + $0x10] sm:$0xf]
        %v1844 = vld [vmem:[%s1838 + $0x14] sm:$0xf]
        %v1845 = vld [vmem:[%s1838 + $0x18] sm:$0xf]
        %v1846 = vld [vmem:[%s1838 + $0x1c] sm:$0xf]
        %v1847 = vld [vmem:[%s1838 + $0x20] sm:$0xf]
        %v1848 = vld [vmem:[%s1838 + $0x24] sm:$0xf]
        %v1849 = vld [vmem:[%s1838 + $0x28] sm:$0xf]
        %v1850 = vld [vmem:[%s1838 + $0x2c] sm:$0xf]
        %v1851 = vld [vmem:[%s1838 + $0x30] sm:$0xf]
        %v1852 = vld [vmem:[%s1838 + $0x34] sm:$0xf]
        %v1853 = vld [vmem:[%s1838 + $0x38] sm:$0xf]
        %v1854 = vld [vmem:[%s1838 + $0x3c] sm:$0xf]
        %v1855 = vunpack.c.l.b16 %v1467
        %v1856 = vunpack.c.l.b16 %v1477
        %v1857 = vunpack.c.l.b16 %v1491
        %v1858 = vunpack.c.l.b16 %v1501
        %v1859 = vunpack.c.l.b16 %v1515
        %v1860 = vunpack.c.l.b16 %v1525
        %v1861 = vunpack.c.l.b16 %v1539
        %v1862 = vunpack.c.l.b16 %v1549
        %v1863 = vunpack.c.l.b16 %v1563
        %v1864 = vunpack.c.l.b16 %v1573
        %v1865 = vunpack.c.l.b16 %v1587
        %v1866 = vunpack.c.l.b16 %v1597
        %v1867 = vunpack.c.l.b16 %v1611
        %v1868 = vunpack.c.l.b16 %v1621
        %v1869 = vunpack.c.l.b16 %v1635
        %v1870 = vunpack.c.l.b16 %v1645
        %v1871 = vunpack.c.l.b16 %v1659
        %v1872 = vunpack.c.l.b16 %v1669
        %v1873 = vunpack.c.l.b16 %v1683
        %v1874 = vunpack.c.l.b16 %v1693
        %v1875 = vunpack.c.l.b16 %v1707
        %v1876 = vunpack.c.l.b16 %v1717
        %v1877 = vunpack.c.l.b16 %v1731
        %v1878 = vunpack.c.l.b16 %v1741
        %v1879 = vunpack.c.l.b16 %v1755
        %v1880 = vunpack.c.l.b16 %v1765
        %v1881 = vunpack.c.l.b16 %v1779
        %v1882 = vunpack.c.l.b16 %v1789
        %v1883 = vunpack.c.l.b16 %v1803
        %v1884 = vunpack.c.l.b16 %v1813
        %v1885 = vunpack.c.l.b16 %v1827
        %v1886 = vunpack.c.l.b16 %v1837
        %v1887 = vpack.c.b16 %v1856, %v1855
        %v1888 = vpack.c.b16 %v1858, %v1857
        %v1889 = vpack.c.b16 %v1860, %v1859
        %v1890 = vpack.c.b16 %v1862, %v1861
        %v1891 = vpack.c.b16 %v1864, %v1863
        %v1892 = vpack.c.b16 %v1866, %v1865
        %v1893 = vpack.c.b16 %v1868, %v1867
        %v1894 = vpack.c.b16 %v1870, %v1869
        %v1895 = vpack.c.b16 %v1872, %v1871
        %v1896 = vpack.c.b16 %v1874, %v1873
        %v1897 = vpack.c.b16 %v1876, %v1875
        %v1898 = vpack.c.b16 %v1878, %v1877
        %v1899 = vpack.c.b16 %v1880, %v1879
        %v1900 = vpack.c.b16 %v1882, %v1881
        %v1901 = vpack.c.b16 %v1884, %v1883
        %v1902 = vpack.c.b16 %v1886, %v1885
        %v1935 = vunpack.c.l.b16 %v1839
        %v1936 = vunpack.c.l.b16 %v1840
        %v1937 = vunpack.c.l.b16 %v1841
        %v1938 = vunpack.c.l.b16 %v1842
        %v1939 = vunpack.c.l.b16 %v1843
        %v1940 = vunpack.c.l.b16 %v1844
        %v1941 = vunpack.c.l.b16 %v1845
        %v1942 = vunpack.c.l.b16 %v1846
        %v1943 = vunpack.c.l.b16 %v1847
        %v1944 = vunpack.c.l.b16 %v1848
        %v1945 = vunpack.c.l.b16 %v1849
        %v1946 = vunpack.c.l.b16 %v1850
        %v1947 = vunpack.c.l.b16 %v1851
        %v1948 = vunpack.c.l.b16 %v1852
        %v1949 = vunpack.c.l.b16 %v1853
        %v1950 = vunpack.c.l.b16 %v1854
        %v1951 = vpack.c.b16 %v1936, %v1935
        %v1952 = vpack.c.b16 %v1938, %v1937
        %v1953 = vpack.c.b16 %v1940, %v1939
        %v1954 = vpack.c.b16 %v1942, %v1941
        %v1955 = vpack.c.b16 %v1944, %v1943
        %v1956 = vpack.c.b16 %v1946, %v1945
        %v1957 = vpack.c.b16 %v1948, %v1947
        %v1958 = vpack.c.b16 %v1950, %v1949
        %1967 = vmatprep.subr.bf16.mxu0 0
        %1968 = vmatpush1.bf16.msra.mxu0 %v1951
        %1969 = vmatprep.subr.bf16.mxu0 0
        %1970 = vmatpush1.bf16.msra.mxu0 %v1952
        %1971 = vmatprep.subr.bf16.mxu0 0
        %1972 = vmatpush1.bf16.msra.mxu0 %v1953
        %1973 = vmatprep.subr.bf16.mxu0 0
        %1974 = vmatpush1.bf16.msra.mxu0 %v1954
        %1975 = vmatprep.subr.bf16.mxu0 0
        %1976 = vmatpush1.bf16.msra.mxu0 %v1955
        %1977 = vmatprep.subr.bf16.mxu0 0
        %1978 = vmatpush1.bf16.msra.mxu0 %v1956
        %1979 = vmatprep.subr.bf16.mxu0 0
        %1980 = vmatpush1.bf16.msra.mxu0 %v1957
        %1981 = vmatprep.subr.bf16.mxu0 0
        %1982 = vmatpush1.bf16.msra.mxu0 %v1958
        %1983 = vmatprep.subr.bf16.mxu0 0
        %1984 = vmatpush1.bf16.msra.mxu0 0
        %1985 = vmatprep.subr.bf16.mxu0 0
        %1986 = vmatpush1.bf16.msra.mxu0 0
        %1987 = vmatprep.subr.bf16.mxu0 0
        %1988 = vmatpush1.bf16.msra.mxu0 0
        %1989 = vmatprep.subr.bf16.mxu0 0
        %1990 = vmatpush1.bf16.msra.mxu0 0
        %1991 = vmatprep.subr.bf16.mxu0 0
        %1992 = vmatpush1.bf16.msra.mxu0 0
        %1993 = vmatprep.subr.bf16.mxu0 0
        %1994 = vmatpush1.bf16.msra.mxu0 0
        %1995 = vmatprep.subr.bf16.mxu0 0
        %1996 = vmatpush1.bf16.msra.mxu0 0
        %1997 = vmatprep.subr.bf16.mxu0 0
        %1998 = vmatpush1.bf16.msra.mxu0 0
        %1999 = vmatprep.mubr.bf16.mxu0 0
        %2000 = vmatmul.mubr.bf16.gmra.mrb[0].mxu0 %v1887
        %v2001 = vpop.f32.mrb[0].mxu0
        %v2002 = vadd.f32 0.0, %v2001
        %v2003 = vpop.f32.mrb[0].mxu0
        %v2004 = vpop.f32.mrb[0].mxu0
        %v2005 = vadd.f32 0.0, %v2004
        %v2006 = vpop.f32.mrb[0].mxu0
        %2007 = vmatprep.mubr.bf16.mxu0 0
        %2008 = vmatmul.mubr.bf16.gmra.mrb[0].mxu0 %v1888
        %v2009 = vpop.f32.mrb[0].mxu0
        %v2010 = vadd.f32 0.0, %v2009
        %v2011 = vpop.f32.mrb[0].mxu0
        %v2012 = vpop.f32.mrb[0].mxu0
        %v2013 = vadd.f32 0.0, %v2012
        %v2014 = vpop.f32.mrb[0].mxu0
        %2015 = vmatprep.mubr.bf16.mxu0 0
        %2016 = vmatmul.mubr.bf16.gmra.mrb[0].mxu0 %v1889
        %v2017 = vpop.f32.mrb[0].mxu0
        %v2018 = vadd.f32 0.0, %v2017
        %v2019 = vpop.f32.mrb[0].mxu0
        %v2020 = vpop.f32.mrb[0].mxu0
        %v2021 = vadd.f32 0.0, %v2020
        %v2022 = vpop.f32.mrb[0].mxu0
        %2023 = vmatprep.mubr.bf16.mxu0 0
        %2024 = vmatmul.mubr.bf16.gmra.mrb[0].mxu0 %v1890
        %v2025 = vpop.f32.mrb[0].mxu0
        %v2026 = vadd.f32 0.0, %v2025
        %v2027 = vpop.f32.mrb[0].mxu0
        %v2028 = vpop.f32.mrb[0].mxu0
        %v2029 = vadd.f32 0.0, %v2028
        %v2030 = vpop.f32.mrb[0].mxu0
        %2031 = vmatprep.mubr.bf16.mxu0 0
        %2032 = vmatmul.mubr.bf16.gmra.mrb[0].mxu0 %v1891
        %v2033 = vpop.f32.mrb[0].mxu0
        %v2034 = vadd.f32 0.0, %v2033
        %v2035 = vpop.f32.mrb[0].mxu0
        %v2036 = vpop.f32.mrb[0].mxu0
        %v2037 = vadd.f32 0.0, %v2036
        %v2038 = vpop.f32.mrb[0].mxu0
        %2039 = vmatprep.mubr.bf16.mxu0 0
        %2040 = vmatmul.mubr.bf16.gmra.mrb[0].mxu0 %v1892
        %v2041 = vpop.f32.mrb[0].mxu0
        %v2042 = vadd.f32 0.0, %v2041
        %v2043 = vpop.f32.mrb[0].mxu0
        %v2044 = vpop.f32.mrb[0].mxu0
        %v2045 = vadd.f32 0.0, %v2044
        %v2046 = vpop.f32.mrb[0].mxu0
        %2047 = vmatprep.mubr.bf16.mxu0 0
        %2048 = vmatmul.mubr.bf16.gmra.mrb[0].mxu0 %v1893
        %v2049 = vpop.f32.mrb[0].mxu0
        %v2050 = vadd.f32 0.0, %v2049
        %v2051 = vpop.f32.mrb[0].mxu0
        %v2052 = vpop.f32.mrb[0].mxu0
        %v2053 = vadd.f32 0.0, %v2052
        %v2054 = vpop.f32.mrb[0].mxu0
        %2055 = vmatprep.mubr.bf16.mxu0 0
        %2056 = vmatmul.mubr.bf16.gmra.mrb[0].mxu0 %v1894
        %v2057 = vpop.f32.mrb[0].mxu0
        %v2058 = vadd.f32 0.0, %v2057
        %v2059 = vpop.f32.mrb[0].mxu0
        %v2060 = vpop.f32.mrb[0].mxu0
        %v2061 = vadd.f32 0.0, %v2060
        %v2062 = vpop.f32.mrb[0].mxu0
        %2063 = vmatprep.mubr.bf16.mxu0 0
        %2064 = vmatmul.mubr.bf16.gmra.mrb[0].mxu0 %v1895
        %v2065 = vpop.f32.mrb[0].mxu0
        %v2066 = vadd.f32 0.0, %v2065
        %v2067 = vpop.f32.mrb[0].mxu0
        %v2068 = vpop.f32.mrb[0].mxu0
        %v2069 = vadd.f32 0.0, %v2068
        %v2070 = vpop.f32.mrb[0].mxu0
        %2071 = vmatprep.mubr.bf16.mxu0 0
        %2072 = vmatmul.mubr.bf16.gmra.mrb[0].mxu0 %v1896
        %v2073 = vpop.f32.mrb[0].mxu0
        %v2074 = vadd.f32 0.0, %v2073
        %v2075 = vpop.f32.mrb[0].mxu0
        %v2076 = vpop.f32.mrb[0].mxu0
        %v2077 = vadd.f32 0.0, %v2076
        %v2078 = vpop.f32.mrb[0].mxu0
        %2079 = vmatprep.mubr.bf16.mxu0 0
        %2080 = vmatmul.mubr.bf16.gmra.mrb[0].mxu0 %v1897
        %v2081 = vpop.f32.mrb[0].mxu0
        %v2082 = vadd.f32 0.0, %v2081
        %v2083 = vpop.f32.mrb[0].mxu0
        %v2084 = vpop.f32.mrb[0].mxu0
        %v2085 = vadd.f32 0.0, %v2084
        %v2086 = vpop.f32.mrb[0].mxu0
        %2087 = vmatprep.mubr.bf16.mxu0 0
        %2088 = vmatmul.mubr.bf16.gmra.mrb[0].mxu0 %v1898
        %v2089 = vpop.f32.mrb[0].mxu0
        %v2090 = vadd.f32 0.0, %v2089
        %v2091 = vpop.f32.mrb[0].mxu0
        %v2092 = vpop.f32.mrb[0].mxu0
        %v2093 = vadd.f32 0.0, %v2092
        %v2094 = vpop.f32.mrb[0].mxu0
        %2095 = vmatprep.mubr.bf16.mxu0 0
        %2096 = vmatmul.mubr.bf16.gmra.mrb[0].mxu0 %v1899
        %v2097 = vpop.f32.mrb[0].mxu0
        %v2098 = vadd.f32 0.0, %v2097
        %v2099 = vpop.f32.mrb[0].mxu0
        %v2100 = vpop.f32.mrb[0].mxu0
        %v2101 = vadd.f32 0.0, %v2100
        %v2102 = vpop.f32.mrb[0].mxu0
        %2103 = vmatprep.mubr.bf16.mxu0 0
        %2104 = vmatmul.mubr.bf16.gmra.mrb[0].mxu0 %v1900
        %v2105 = vpop.f32.mrb[0].mxu0
        %v2106 = vadd.f32 0.0, %v2105
        %v2107 = vpop.f32.mrb[0].mxu0
        %v2108 = vpop.f32.mrb[0].mxu0
        %v2109 = vadd.f32 0.0, %v2108
        %v2110 = vpop.f32.mrb[0].mxu0
        %2111 = vmatprep.mubr.bf16.mxu0 0
        %2112 = vmatmul.mubr.bf16.gmra.mrb[0].mxu0 %v1901
        %v2113 = vpop.f32.mrb[0].mxu0
        %v2114 = vadd.f32 0.0, %v2113
        %v2115 = vpop.f32.mrb[0].mxu0
        %v2116 = vpop.f32.mrb[0].mxu0
        %v2117 = vadd.f32 0.0, %v2116
        %v2118 = vpop.f32.mrb[0].mxu0
        %2119 = vmatprep.mubr.bf16.mxu0 0
        %2120 = vmatmul.mubr.bf16.gmra.mrb[0].mxu0 %v1902
        %v2121 = vpop.f32.mrb[0].mxu0
        %v2122 = vadd.f32 0.0, %v2121
        %v2123 = vpop.f32.mrb[0].mxu0
        %v2124 = vpop.f32.mrb[0].mxu0
        %v2125 = vadd.f32 0.0, %v2124
        %v2126 = vpop.f32.mrb[0].mxu0
        %2127 = vdwg.mxu0
        %v2160 = vunpack.c.l.b16 %v1387
        %v2161 = vunpack.c.l.b16 %v1388
        %v2162 = vunpack.c.l.b16 %v1389
        %v2163 = vunpack.c.l.b16 %v1390
        %v2164 = vunpack.c.l.b16 %v1391
        %v2165 = vunpack.c.l.b16 %v1392
        %v2166 = vunpack.c.l.b16 %v1393
        %v2167 = vunpack.c.l.b16 %v1394
        %v2168 = vunpack.c.l.b16 %v1395
        %v2169 = vunpack.c.l.b16 %v1396
        %v2170 = vunpack.c.l.b16 %v1397
        %v2171 = vunpack.c.l.b16 %v1398
        %v2172 = vunpack.c.l.b16 %v1399
        %v2173 = vunpack.c.l.b16 %v1400
        %v2174 = vunpack.c.l.b16 %v1401
        %v2175 = vunpack.c.l.b16 %v1402
        %v2176 = vunpack.c.l.b16 %v1403
        %v2177 = vunpack.c.l.b16 %v1404
        %v2178 = vunpack.c.l.b16 %v1405
        %v2179 = vunpack.c.l.b16 %v1406
        %v2180 = vunpack.c.l.b16 %v1407
        %v2181 = vunpack.c.l.b16 %v1408
        %v2182 = vunpack.c.l.b16 %v1409
        %v2183 = vunpack.c.l.b16 %v1410
        %v2184 = vunpack.c.l.b16 %v1411
        %v2185 = vunpack.c.l.b16 %v1412
        %v2186 = vunpack.c.l.b16 %v1413
        %v2187 = vunpack.c.l.b16 %v1414
        %v2188 = vunpack.c.l.b16 %v1415
        %v2189 = vunpack.c.l.b16 %v1416
        %v2190 = vunpack.c.l.b16 %v1417
        %v2191 = vunpack.c.l.b16 %v1418
        %v2192 = vpack.c.b16 %v2161, %v2160
        %v2193 = vpack.c.b16 %v2163, %v2162
        %v2194 = vpack.c.b16 %v2165, %v2164
        %v2195 = vpack.c.b16 %v2167, %v2166
        %v2196 = vpack.c.b16 %v2169, %v2168
        %v2197 = vpack.c.b16 %v2171, %v2170
        %v2198 = vpack.c.b16 %v2173, %v2172
        %v2199 = vpack.c.b16 %v2175, %v2174
        %v2200 = vpack.c.b16 %v2177, %v2176
        %v2201 = vpack.c.b16 %v2179, %v2178
        %v2202 = vpack.c.b16 %v2181, %v2180
        %v2203 = vpack.c.b16 %v2183, %v2182
        %v2204 = vpack.c.b16 %v2185, %v2184
        %v2205 = vpack.c.b16 %v2187, %v2186
        %v2206 = vpack.c.b16 %v2189, %v2188
        %v2207 = vpack.c.b16 %v2191, %v2190
        %v2240 = vunpack.c.l.b16 %v1419
        %v2241 = vunpack.c.l.b16 %v1420
        %v2242 = vunpack.c.l.b16 %v1421
        %v2243 = vunpack.c.l.b16 %v1422
        %v2244 = vunpack.c.l.b16 %v1423
        %v2245 = vunpack.c.l.b16 %v1424
        %v2246 = vunpack.c.l.b16 %v1425
        %v2247 = vunpack.c.l.b16 %v1426
        %v2248 = vunpack.c.l.b16 %v1427
        %v2249 = vunpack.c.l.b16 %v1428
        %v2250 = vunpack.c.l.b16 %v1429
        %v2251 = vunpack.c.l.b16 %v1430
        %v2252 = vunpack.c.l.b16 %v1431
        %v2253 = vunpack.c.l.b16 %v1432
        %v2254 = vunpack.c.l.b16 %v1433
        %v2255 = vunpack.c.l.b16 %v1434
        %v2256 = vpack.c.b16 %v2241, %v2240
        %v2257 = vpack.c.b16 %v2243, %v2242
        %v2258 = vpack.c.b16 %v2245, %v2244
        %v2259 = vpack.c.b16 %v2247, %v2246
        %v2260 = vpack.c.b16 %v2249, %v2248
        %v2261 = vpack.c.b16 %v2251, %v2250
        %v2262 = vpack.c.b16 %v2253, %v2252
        %v2263 = vpack.c.b16 %v2255, %v2254
        %2272 = vmatprep.subr.bf16.mxu0 0
        %2273 = vmatpush1.bf16.msra.mxu0 %v2256
        %2274 = vmatprep.subr.bf16.mxu0 0
        %2275 = vmatpush1.bf16.msra.mxu0 %v2257
        %2276 = vmatprep.subr.bf16.mxu0 0
        %2277 = vmatpush1.bf16.msra.mxu0 %v2258
        %2278 = vmatprep.subr.bf16.mxu0 0
        %2279 = vmatpush1.bf16.msra.mxu0 %v2259
        %2280 = vmatprep.subr.bf16.mxu0 0
        %2281 = vmatpush1.bf16.msra.mxu0 %v2260
        %2282 = vmatprep.subr.bf16.mxu0 0
        %2283 = vmatpush1.bf16.msra.mxu0 %v2261
        %2284 = vmatprep.subr.bf16.mxu0 0
        %2285 = vmatpush1.bf16.msra.mxu0 %v2262
        %2286 = vmatprep.subr.bf16.mxu0 0
        %2287 = vmatpush1.bf16.msra.mxu0 %v2263
        %2288 = vmatprep.subr.bf16.mxu0 0
        %2289 = vmatpush1.bf16.msra.mxu0 0
        %2290 = vmatprep.subr.bf16.mxu0 0
        %2291 = vmatpush1.bf16.msra.mxu0 0
        %2292 = vmatprep.subr.bf16.mxu0 0
        %2293 = vmatpush1.bf16.msra.mxu0 0
        %2294 = vmatprep.subr.bf16.mxu0 0
        %2295 = vmatpush1.bf16.msra.mxu0 0
        %2296 = vmatprep.subr.bf16.mxu0 0
        %2297 = vmatpush1.bf16.msra.mxu0 0
        %2298 = vmatprep.subr.bf16.mxu0 0
        %2299 = vmatpush1.bf16.msra.mxu0 0
        %2300 = vmatprep.subr.bf16.mxu0 0
        %2301 = vmatpush1.bf16.msra.mxu0 0
        %2302 = vmatprep.subr.bf16.mxu0 0
        %2303 = vmatpush1.bf16.msra.mxu0 0
        %2304 = vmatprep.mubr.bf16.mxu0 0
        %2305 = vmatmul.mubr.bf16.gmra.mrb[0].mxu0 %v2192
        %v2306 = vpop.f32.mrb[0].mxu0
        %v2307 = vadd.f32 %v2002, %v2306
        %v2308 = vpop.f32.mrb[0].mxu0
        %v2309 = vpop.f32.mrb[0].mxu0
        %v2310 = vadd.f32 %v2005, %v2309
        %v2311 = vpop.f32.mrb[0].mxu0
        %2312 = vmatprep.mubr.bf16.mxu0 0
        %2313 = vmatmul.mubr.bf16.gmra.mrb[0].mxu0 %v2193
        %v2314 = vpop.f32.mrb[0].mxu0
        %v2315 = vadd.f32 %v2010, %v2314
        %v2316 = vpop.f32.mrb[0].mxu0
        %v2317 = vpop.f32.mrb[0].mxu0
        %v2318 = vadd.f32 %v2013, %v2317
        %v2319 = vpop.f32.mrb[0].mxu0
        %2320 = vmatprep.mubr.bf16.mxu0 0
        %2321 = vmatmul.mubr.bf16.gmra.mrb[0].mxu0 %v2194
        %v2322 = vpop.f32.mrb[0].mxu0
        %v2323 = vadd.f32 %v2018, %v2322
        %v2324 = vpop.f32.mrb[0].mxu0
        %v2325 = vpop.f32.mrb[0].mxu0
        %v2326 = vadd.f32 %v2021, %v2325
        %v2327 = vpop.f32.mrb[0].mxu0
        %2328 = vmatprep.mubr.bf16.mxu0 0
        %2329 = vmatmul.mubr.bf16.gmra.mrb[0].mxu0 %v2195
        %v2330 = vpop.f32.mrb[0].mxu0
        %v2331 = vadd.f32 %v2026, %v2330
        %v2332 = vpop.f32.mrb[0].mxu0
        %v2333 = vpop.f32.mrb[0].mxu0
        %v2334 = vadd.f32 %v2029, %v2333
        %v2335 = vpop.f32.mrb[0].mxu0
        %2336 = vmatprep.mubr.bf16.mxu0 0
        %2337 = vmatmul.mubr.bf16.gmra.mrb[0].mxu0 %v2196
        %v2338 = vpop.f32.mrb[0].mxu0
        %v2339 = vadd.f32 %v2034, %v2338
        %v2340 = vpop.f32.mrb[0].mxu0
        %v2341 = vpop.f32.mrb[0].mxu0
        %v2342 = vadd.f32 %v2037, %v2341
        %v2343 = vpop.f32.mrb[0].mxu0
        %2344 = vmatprep.mubr.bf16.mxu0 0
        %2345 = vmatmul.mubr.bf16.gmra.mrb[0].mxu0 %v2197
        %v2346 = vpop.f32.mrb[0].mxu0
        %v2347 = vadd.f32 %v2042, %v2346
        %v2348 = vpop.f32.mrb[0].mxu0
        %v2349 = vpop.f32.mrb[0].mxu0
        %v2350 = vadd.f32 %v2045, %v2349
        %v2351 = vpop.f32.mrb[0].mxu0
        %2352 = vmatprep.mubr.bf16.mxu0 0
        %2353 = vmatmul.mubr.bf16.gmra.mrb[0].mxu0 %v2198
        %v2354 = vpop.f32.mrb[0].mxu0
        %v2355 = vadd.f32 %v2050, %v2354
        %v2356 = vpop.f32.mrb[0].mxu0
        %v2357 = vpop.f32.mrb[0].mxu0
        %v2358 = vadd.f32 %v2053, %v2357
        %v2359 = vpop.f32.mrb[0].mxu0
        %2360 = vmatprep.mubr.bf16.mxu0 0
        %2361 = vmatmul.mubr.bf16.gmra.mrb[0].mxu0 %v2199
        %v2362 = vpop.f32.mrb[0].mxu0
        %v2363 = vadd.f32 %v2058, %v2362
        %v2364 = vpop.f32.mrb[0].mxu0
        %v2365 = vpop.f32.mrb[0].mxu0
        %v2366 = vadd.f32 %v2061, %v2365
        %v2367 = vpop.f32.mrb[0].mxu0
        %2368 = vmatprep.mubr.bf16.mxu0 0
        %2369 = vmatmul.mubr.bf16.gmra.mrb[0].mxu0 %v2200
        %v2370 = vpop.f32.mrb[0].mxu0
        %v2371 = vadd.f32 %v2066, %v2370
        %v2372 = vpop.f32.mrb[0].mxu0
        %v2373 = vpop.f32.mrb[0].mxu0
        %v2374 = vadd.f32 %v2069, %v2373
        %v2375 = vpop.f32.mrb[0].mxu0
        %2376 = vmatprep.mubr.bf16.mxu0 0
        %2377 = vmatmul.mubr.bf16.gmra.mrb[0].mxu0 %v2201
        %v2378 = vpop.f32.mrb[0].mxu0
        %v2379 = vadd.f32 %v2074, %v2378
        %v2380 = vpop.f32.mrb[0].mxu0
        %v2381 = vpop.f32.mrb[0].mxu0
        %v2382 = vadd.f32 %v2077, %v2381
        %v2383 = vpop.f32.mrb[0].mxu0
        %2384 = vmatprep.mubr.bf16.mxu0 0
        %2385 = vmatmul.mubr.bf16.gmra.mrb[0].mxu0 %v2202
        %v2386 = vpop.f32.mrb[0].mxu0
        %v2387 = vadd.f32 %v2082, %v2386
        %v2388 = vpop.f32.mrb[0].mxu0
        %v2389 = vpop.f32.mrb[0].mxu0
        %v2390 = vadd.f32 %v2085, %v2389
        %v2391 = vpop.f32.mrb[0].mxu0
        %2392 = vmatprep.mubr.bf16.mxu0 0
        %2393 = vmatmul.mubr.bf16.gmra.mrb[0].mxu0 %v2203
        %v2394 = vpop.f32.mrb[0].mxu0
        %v2395 = vadd.f32 %v2090, %v2394
        %v2396 = vpop.f32.mrb[0].mxu0
        %v2397 = vpop.f32.mrb[0].mxu0
        %v2398 = vadd.f32 %v2093, %v2397
        %v2399 = vpop.f32.mrb[0].mxu0
        %2400 = vmatprep.mubr.bf16.mxu0 0
        %2401 = vmatmul.mubr.bf16.gmra.mrb[0].mxu0 %v2204
        %v2402 = vpop.f32.mrb[0].mxu0
        %v2403 = vadd.f32 %v2098, %v2402
        %v2404 = vpop.f32.mrb[0].mxu0
        %v2405 = vpop.f32.mrb[0].mxu0
        %v2406 = vadd.f32 %v2101, %v2405
        %v2407 = vpop.f32.mrb[0].mxu0
        %2408 = vmatprep.mubr.bf16.mxu0 0
        %2409 = vmatmul.mubr.bf16.gmra.mrb[0].mxu0 %v2205
        %v2410 = vpop.f32.mrb[0].mxu0
        %v2411 = vadd.f32 %v2106, %v2410
        %v2412 = vpop.f32.mrb[0].mxu0
        %v2413 = vpop.f32.mrb[0].mxu0
        %v2414 = vadd.f32 %v2109, %v2413
        %v2415 = vpop.f32.mrb[0].mxu0
        %2416 = vmatprep.mubr.bf16.mxu0 0
        %2417 = vmatmul.mubr.bf16.gmra.mrb[0].mxu0 %v2206
        %v2418 = vpop.f32.mrb[0].mxu0
        %v2419 = vadd.f32 %v2114, %v2418
        %v2420 = vpop.f32.mrb[0].mxu0
        %v2421 = vpop.f32.mrb[0].mxu0
        %v2422 = vadd.f32 %v2117, %v2421
        %v2423 = vpop.f32.mrb[0].mxu0
        %2424 = vmatprep.mubr.bf16.mxu0 0
        %2425 = vmatmul.mubr.bf16.gmra.mrb[0].mxu0 %v2207
        %v2426 = vpop.f32.mrb[0].mxu0
        %v2427 = vadd.f32 %v2122, %v2426
        %v2428 = vpop.f32.mrb[0].mxu0
        %v2429 = vpop.f32.mrb[0].mxu0
        %v2430 = vadd.f32 %v2125, %v2429
        %v2431 = vpop.f32.mrb[0].mxu0
        %2432 = vdwg.mxu0
        %v2433 = vld [vmem:[#allocation2] sm:$0xe]
        %v2434 = vld [vmem:[#allocation2 + $0xc] sm:$0xe]
        %v2435 = vld [vmem:[#allocation2 + $0x18] sm:$0xe]
        %v2436 = vld [vmem:[#allocation2 + $0x24] sm:$0xe]
        %v2437 = vld [vmem:[#allocation2 + $0x30] sm:$0xe]
        %v2438 = vld [vmem:[#allocation2 + $0x3c] sm:$0xe]
        %v2439 = vld [vmem:[#allocation2 + $0x48] sm:$0xe]
        %v2440 = vld [vmem:[#allocation2 + $0x54] sm:$0xe]
        %v2441 = vld [vmem:[#allocation2 + $0x60] sm:$0xe]
        %v2442 = vld [vmem:[#allocation2 + $0x6c] sm:$0xe]
        %v2443 = vld [vmem:[#allocation2 + $0x78] sm:$0xe]
        %v2444 = vld [vmem:[#allocation2 + $0x84] sm:$0xe]
        %v2445 = vld [vmem:[#allocation2 + $0x90] sm:$0xe]
        %v2446 = vld [vmem:[#allocation2 + $0x9c] sm:$0xe]
        %v2447 = vld [vmem:[#allocation2 + $0xa8] sm:$0xe]
        %v2448 = vld [vmem:[#allocation2 + $0xb4] sm:$0xe]
        %vm2481 = vcmask 1042432
        %vm2482 = vcmask 1046532
        %vm2483 = vmor %vm2481, %vm2482
        %v2484 = vrot.slane %v2433, 5
        %v2485 = vrot.slane %v2484, 4
        %v2486 = vrot.slane %v1388, 5
        %v2487 = vsel %vm2483, %v2485, %v2486
        %v2488 = vrot.slane %v2486, 4
        %v2489 = vrot.slane %v1435, 5
        %v2490 = vsel %vm2483, %v2488, %v2489
        %v2491 = vrot.slane %v2434, 5
        %v2492 = vrot.slane %v2491, 4
        %v2493 = vrot.slane %v1390, 5
        %v2494 = vsel %vm2483, %v2492, %v2493
        %v2495 = vrot.slane %v2493, 4
        %v2496 = vrot.slane %v1436, 5
        %v2497 = vsel %vm2483, %v2495, %v2496
        %v2498 = vrot.slane %v2435, 5
        %v2499 = vrot.slane %v2498, 4
        %v2500 = vrot.slane %v1392, 5
        %v2501 = vsel %vm2483, %v2499, %v2500
        %v2502 = vrot.slane %v2500, 4
        %v2503 = vrot.slane %v1437, 5
        %v2504 = vsel %vm2483, %v2502, %v2503
        %v2505 = vrot.slane %v2436, 5
        %v2506 = vrot.slane %v2505, 4
        %v2507 = vrot.slane %v1394, 5
        %v2508 = vsel %vm2483, %v2506, %v2507
        %v2509 = vrot.slane %v2507, 4
        %v2510 = vrot.slane %v1438, 5
        %v2511 = vsel %vm2483, %v2509, %v2510
        %v2512 = vrot.slane %v2437, 5
        %v2513 = vrot.slane %v2512, 4
        %v2514 = vrot.slane %v1396, 5
        %v2515 = vsel %vm2483, %v2513, %v2514
        %v2516 = vrot.slane %v2514, 4
        %v2517 = vrot.slane %v1439, 5
        %v2518 = vsel %vm2483, %v2516, %v2517
        %v2519 = vrot.slane %v2438, 5
        %v2520 = vrot.slane %v2519, 4
        %v2521 = vrot.slane %v1398, 5
        %v2522 = vsel %vm2483, %v2520, %v2521
        %v2523 = vrot.slane %v2521, 4
        %v2524 = vrot.slane %v1440, 5
        %v2525 = vsel %vm2483, %v2523, %v2524
        %v2526 = vrot.slane %v2439, 5
        %v2527 = vrot.slane %v2526, 4
        %v2528 = vrot.slane %v1400, 5
        %v2529 = vsel %vm2483, %v2527, %v2528
        %v2530 = vrot.slane %v2528, 4
        %v2531 = vrot.slane %v1441, 5
        %v2532 = vsel %vm2483, %v2530, %v2531
        %v2533 = vrot.slane %v2440, 5
        %v2534 = vrot.slane %v2533, 4
        %v2535 = vrot.slane %v1402, 5
        %v2536 = vsel %vm2483, %v2534, %v2535
        %v2537 = vrot.slane %v2535, 4
        %v2538 = vrot.slane %v1442, 5
        %v2539 = vsel %vm2483, %v2537, %v2538
        %v2540 = vrot.slane %v2441, 5
        %v2541 = vrot.slane %v2540, 4
        %v2542 = vrot.slane %v1404, 5
        %v2543 = vsel %vm2483, %v2541, %v2542
        %v2544 = vrot.slane %v2542, 4
        %v2545 = vrot.slane %v1443, 5
        %v2546 = vsel %vm2483, %v2544, %v2545
        %v2547 = vrot.slane %v2442, 5
        %v2548 = vrot.slane %v2547, 4
        %v2549 = vrot.slane %v1406, 5
        %v2550 = vsel %vm2483, %v2548, %v2549
        %v2551 = vrot.slane %v2549, 4
        %v2552 = vrot.slane %v1444, 5
        %v2553 = vsel %vm2483, %v2551, %v2552
        %v2554 = vrot.slane %v2443, 5
        %v2555 = vrot.slane %v2554, 4
        %v2556 = vrot.slane %v1408, 5
        %v2557 = vsel %vm2483, %v2555, %v2556
        %v2558 = vrot.slane %v2556, 4
        %v2559 = vrot.slane %v1445, 5
        %v2560 = vsel %vm2483, %v2558, %v2559
        %v2561 = vrot.slane %v2444, 5
        %v2562 = vrot.slane %v2561, 4
        %v2563 = vrot.slane %v1410, 5
        %v2564 = vsel %vm2483, %v2562, %v2563
        %v2565 = vrot.slane %v2563, 4
        %v2566 = vrot.slane %v1446, 5
        %v2567 = vsel %vm2483, %v2565, %v2566
        %v2568 = vrot.slane %v2445, 5
        %v2569 = vrot.slane %v2568, 4
        %v2570 = vrot.slane %v1412, 5
        %v2571 = vsel %vm2483, %v2569, %v2570
        %v2572 = vrot.slane %v2570, 4
        %v2573 = vrot.slane %v1447, 5
        %v2574 = vsel %vm2483, %v2572, %v2573
        %v2575 = vrot.slane %v2446, 5
        %v2576 = vrot.slane %v2575, 4
        %v2577 = vrot.slane %v1414, 5
        %v2578 = vsel %vm2483, %v2576, %v2577
        %v2579 = vrot.slane %v2577, 4
        %v2580 = vrot.slane %v1448, 5
        %v2581 = vsel %vm2483, %v2579, %v2580
        %v2582 = vrot.slane %v2447, 5
        %v2583 = vrot.slane %v2582, 4
        %v2584 = vrot.slane %v1416, 5
        %v2585 = vsel %vm2483, %v2583, %v2584
        %v2586 = vrot.slane %v2584, 4
        %v2587 = vrot.slane %v1449, 5
        %v2588 = vsel %vm2483, %v2586, %v2587
        %v2589 = vrot.slane %v2448, 5
        %v2590 = vrot.slane %v2589, 4
        %v2591 = vrot.slane %v1418, 5
        %v2592 = vsel %vm2483, %v2590, %v2591
        %v2593 = vrot.slane %v2591, 4
        %v2594 = vrot.slane %v1450, 5
        %v2595 = vsel %vm2483, %v2593, %v2594
        %s2596 = scalar_lea.vmem [#allocation8], 128
        %v2597 = vld [vmem:[%s2596] sm:$0xf]
        %v2598 = vld [vmem:[%s2596 + $0x4] sm:$0xf]
        %v2599 = vld [vmem:[%s2596 + $0x8] sm:$0xf]
        %v2600 = vld [vmem:[%s2596 + $0xc] sm:$0xf]
        %v2601 = vld [vmem:[%s2596 + $0x10] sm:$0xf]
        %v2602 = vld [vmem:[%s2596 + $0x14] sm:$0xf]
        %v2603 = vld [vmem:[%s2596 + $0x18] sm:$0xf]
        %v2604 = vld [vmem:[%s2596 + $0x1c] sm:$0xf]
        %v2605 = vld [vmem:[%s2596 + $0x20] sm:$0xf]
        %v2606 = vld [vmem:[%s2596 + $0x24] sm:$0xf]
        %v2607 = vld [vmem:[%s2596 + $0x28] sm:$0xf]
        %v2608 = vld [vmem:[%s2596 + $0x2c] sm:$0xf]
        %v2609 = vld [vmem:[%s2596 + $0x30] sm:$0xf]
        %v2610 = vld [vmem:[%s2596 + $0x34] sm:$0xf]
        %v2611 = vld [vmem:[%s2596 + $0x38] sm:$0xf]
        %v2612 = vld [vmem:[%s2596 + $0x3c] sm:$0xf]
        %v2613 = vunpack.c.l.b16 %v2487
        %v2614 = vunpack.c.l.b16 %v2490
        %v2615 = vunpack.c.l.b16 %v2494
        %v2616 = vunpack.c.l.b16 %v2497
        %v2617 = vunpack.c.l.b16 %v2501
        %v2618 = vunpack.c.l.b16 %v2504
        %v2619 = vunpack.c.l.b16 %v2508
        %v2620 = vunpack.c.l.b16 %v2511
        %v2621 = vunpack.c.l.b16 %v2515
        %v2622 = vunpack.c.l.b16 %v2518
        %v2623 = vunpack.c.l.b16 %v2522
        %v2624 = vunpack.c.l.b16 %v2525
        %v2625 = vunpack.c.l.b16 %v2529
        %v2626 = vunpack.c.l.b16 %v2532
        %v2627 = vunpack.c.l.b16 %v2536
        %v2628 = vunpack.c.l.b16 %v2539
        %v2629 = vunpack.c.l.b16 %v2543
        %v2630 = vunpack.c.l.b16 %v2546
        %v2631 = vunpack.c.l.b16 %v2550
        %v2632 = vunpack.c.l.b16 %v2553
        %v2633 = vunpack.c.l.b16 %v2557
        %v2634 = vunpack.c.l.b16 %v2560
        %v2635 = vunpack.c.l.b16 %v2564
        %v2636 = vunpack.c.l.b16 %v2567
        %v2637 = vunpack.c.l.b16 %v2571
        %v2638 = vunpack.c.l.b16 %v2574
        %v2639 = vunpack.c.l.b16 %v2578
        %v2640 = vunpack.c.l.b16 %v2581
        %v2641 = vunpack.c.l.b16 %v2585
        %v2642 = vunpack.c.l.b16 %v2588
        %v2643 = vunpack.c.l.b16 %v2592
        %v2644 = vunpack.c.l.b16 %v2595
        %v2645 = vpack.c.b16 %v2614, %v2613
        %v2646 = vpack.c.b16 %v2616, %v2615
        %v2647 = vpack.c.b16 %v2618, %v2617
        %v2648 = vpack.c.b16 %v2620, %v2619
        %v2649 = vpack.c.b16 %v2622, %v2621
        %v2650 = vpack.c.b16 %v2624, %v2623
        %v2651 = vpack.c.b16 %v2626, %v2625
        %v2652 = vpack.c.b16 %v2628, %v2627
        %v2653 = vpack.c.b16 %v2630, %v2629
        %v2654 = vpack.c.b16 %v2632, %v2631
        %v2655 = vpack.c.b16 %v2634, %v2633
        %v2656 = vpack.c.b16 %v2636, %v2635
        %v2657 = vpack.c.b16 %v2638, %v2637
        %v2658 = vpack.c.b16 %v2640, %v2639
        %v2659 = vpack.c.b16 %v2642, %v2641
        %v2660 = vpack.c.b16 %v2644, %v2643
        %v2693 = vunpack.c.l.b16 %v2597
        %v2694 = vunpack.c.l.b16 %v2598
        %v2695 = vunpack.c.l.b16 %v2599
        %v2696 = vunpack.c.l.b16 %v2600
        %v2697 = vunpack.c.l.b16 %v2601
        %v2698 = vunpack.c.l.b16 %v2602
        %v2699 = vunpack.c.l.b16 %v2603
        %v2700 = vunpack.c.l.b16 %v2604
        %v2701 = vunpack.c.l.b16 %v2605
        %v2702 = vunpack.c.l.b16 %v2606
        %v2703 = vunpack.c.l.b16 %v2607
        %v2704 = vunpack.c.l.b16 %v2608
        %v2705 = vunpack.c.l.b16 %v2609
        %v2706 = vunpack.c.l.b16 %v2610
        %v2707 = vunpack.c.l.b16 %v2611
        %v2708 = vunpack.c.l.b16 %v2612
        %v2709 = vpack.c.b16 %v2694, %v2693
        %v2710 = vpack.c.b16 %v2696, %v2695
        %v2711 = vpack.c.b16 %v2698, %v2697
        %v2712 = vpack.c.b16 %v2700, %v2699
        %v2713 = vpack.c.b16 %v2702, %v2701
        %v2714 = vpack.c.b16 %v2704, %v2703
        %v2715 = vpack.c.b16 %v2706, %v2705
        %v2716 = vpack.c.b16 %v2708, %v2707
        %2725 = vmatprep.subr.bf16.mxu0 0
        %2726 = vmatpush1.bf16.msra.mxu0 %v2709
        %2727 = vmatprep.subr.bf16.mxu0 0
        %2728 = vmatpush1.bf16.msra.mxu0 %v2710
        %2729 = vmatprep.subr.bf16.mxu0 0
        %2730 = vmatpush1.bf16.msra.mxu0 %v2711
        %2731 = vmatprep.subr.bf16.mxu0 0
        %2732 = vmatpush1.bf16.msra.mxu0 %v2712
        %2733 = vmatprep.subr.bf16.mxu0 0
        %2734 = vmatpush1.bf16.msra.mxu0 %v2713
        %2735 = vmatprep.subr.bf16.mxu0 0
        %2736 = vmatpush1.bf16.msra.mxu0 %v2714
        %2737 = vmatprep.subr.bf16.mxu0 0
        %2738 = vmatpush1.bf16.msra.mxu0 %v2715
        %2739 = vmatprep.subr.bf16.mxu0 0
        %2740 = vmatpush1.bf16.msra.mxu0 %v2716
        %2741 = vmatprep.subr.bf16.mxu0 0
        %2742 = vmatpush1.bf16.msra.mxu0 0
        %2743 = vmatprep.subr.bf16.mxu0 0
        %2744 = vmatpush1.bf16.msra.mxu0 0
        %2745 = vmatprep.subr.bf16.mxu0 0
        %2746 = vmatpush1.bf16.msra.mxu0 0
        %2747 = vmatprep.subr.bf16.mxu0 0
        %2748 = vmatpush1.bf16.msra.mxu0 0
        %2749 = vmatprep.subr.bf16.mxu0 0
        %2750 = vmatpush1.bf16.msra.mxu0 0
        %2751 = vmatprep.subr.bf16.mxu0 0
        %2752 = vmatpush1.bf16.msra.mxu0 0
        %2753 = vmatprep.subr.bf16.mxu0 0
        %2754 = vmatpush1.bf16.msra.mxu0 0
        %2755 = vmatprep.subr.bf16.mxu0 0
        %2756 = vmatpush1.bf16.msra.mxu0 0
        %2757 = vmatprep.mubr.bf16.mxu0 0
        %2758 = vmatmul.mubr.bf16.gmra.mrb[0].mxu0 %v2645
        %v2759 = vpop.f32.mrb[0].mxu0
        %v2760 = vadd.f32 0.0, %v2759
        %v2761 = vpop.f32.mrb[0].mxu0
        %v2762 = vpop.f32.mrb[0].mxu0
        %v2763 = vadd.f32 0.0, %v2762
        %v2764 = vpop.f32.mrb[0].mxu0
        %2765 = vmatprep.mubr.bf16.mxu0 0
        %2766 = vmatmul.mubr.bf16.gmra.mrb[0].mxu0 %v2646
        %v2767 = vpop.f32.mrb[0].mxu0
        %v2768 = vadd.f32 0.0, %v2767
        %v2769 = vpop.f32.mrb[0].mxu0
        %v2770 = vpop.f32.mrb[0].mxu0
        %v2771 = vadd.f32 0.0, %v2770
        %v2772 = vpop.f32.mrb[0].mxu0
        %2773 = vmatprep.mubr.bf16.mxu0 0
        %2774 = vmatmul.mubr.bf16.gmra.mrb[0].mxu0 %v2647
        %v2775 = vpop.f32.mrb[0].mxu0
        %v2776 = vadd.f32 0.0, %v2775
        %v2777 = vpop.f32.mrb[0].mxu0
        %v2778 = vpop.f32.mrb[0].mxu0
        %v2779 = vadd.f32 0.0, %v2778
        %v2780 = vpop.f32.mrb[0].mxu0
        %2781 = vmatprep.mubr.bf16.mxu0 0
        %2782 = vmatmul.mubr.bf16.gmra.mrb[0].mxu0 %v2648
        %v2783 = vpop.f32.mrb[0].mxu0
        %v2784 = vadd.f32 0.0, %v2783
        %v2785 = vpop.f32.mrb[0].mxu0
        %v2786 = vpop.f32.mrb[0].mxu0
        %v2787 = vadd.f32 0.0, %v2786
        %v2788 = vpop.f32.mrb[0].mxu0
        %2789 = vmatprep.mubr.bf16.mxu0 0
        %2790 = vmatmul.mubr.bf16.gmra.mrb[0].mxu0 %v2649
        %v2791 = vpop.f32.mrb[0].mxu0
        %v2792 = vadd.f32 0.0, %v2791
        %v2793 = vpop.f32.mrb[0].mxu0
        %v2794 = vpop.f32.mrb[0].mxu0
        %v2795 = vadd.f32 0.0, %v2794
        %v2796 = vpop.f32.mrb[0].mxu0
        %2797 = vmatprep.mubr.bf16.mxu0 0
        %2798 = vmatmul.mubr.bf16.gmra.mrb[0].mxu0 %v2650
        %v2799 = vpop.f32.mrb[0].mxu0
        %v2800 = vadd.f32 0.0, %v2799
        %v2801 = vpop.f32.mrb[0].mxu0
        %v2802 = vpop.f32.mrb[0].mxu0
        %v2803 = vadd.f32 0.0, %v2802
        %v2804 = vpop.f32.mrb[0].mxu0
        %2805 = vmatprep.mubr.bf16.mxu0 0
        %2806 = vmatmul.mubr.bf16.gmra.mrb[0].mxu0 %v2651
        %v2807 = vpop.f32.mrb[0].mxu0
        %v2808 = vadd.f32 0.0, %v2807
        %v2809 = vpop.f32.mrb[0].mxu0
        %v2810 = vpop.f32.mrb[0].mxu0
        %v2811 = vadd.f32 0.0, %v2810
        %v2812 = vpop.f32.mrb[0].mxu0
        %2813 = vmatprep.mubr.bf16.mxu0 0
        %2814 = vmatmul.mubr.bf16.gmra.mrb[0].mxu0 %v2652
        %v2815 = vpop.f32.mrb[0].mxu0
        %v2816 = vadd.f32 0.0, %v2815
        %v2817 = vpop.f32.mrb[0].mxu0
        %v2818 = vpop.f32.mrb[0].mxu0
        %v2819 = vadd.f32 0.0, %v2818
        %v2820 = vpop.f32.mrb[0].mxu0
        %2821 = vmatprep.mubr.bf16.mxu0 0
        %2822 = vmatmul.mubr.bf16.gmra.mrb[0].mxu0 %v2653
        %v2823 = vpop.f32.mrb[0].mxu0
        %v2824 = vadd.f32 0.0, %v2823
        %v2825 = vpop.f32.mrb[0].mxu0
        %v2826 = vpop.f32.mrb[0].mxu0
        %v2827 = vadd.f32 0.0, %v2826
        %v2828 = vpop.f32.mrb[0].mxu0
        %2829 = vmatprep.mubr.bf16.mxu0 0
        %2830 = vmatmul.mubr.bf16.gmra.mrb[0].mxu0 %v2654
        %v2831 = vpop.f32.mrb[0].mxu0
        %v2832 = vadd.f32 0.0, %v2831
        %v2833 = vpop.f32.mrb[0].mxu0
        %v2834 = vpop.f32.mrb[0].mxu0
        %v2835 = vadd.f32 0.0, %v2834
        %v2836 = vpop.f32.mrb[0].mxu0
        %2837 = vmatprep.mubr.bf16.mxu0 0
        %2838 = vmatmul.mubr.bf16.gmra.mrb[0].mxu0 %v2655
        %v2839 = vpop.f32.mrb[0].mxu0
        %v2840 = vadd.f32 0.0, %v2839
        %v2841 = vpop.f32.mrb[0].mxu0
        %v2842 = vpop.f32.mrb[0].mxu0
        %v2843 = vadd.f32 0.0, %v2842
        %v2844 = vpop.f32.mrb[0].mxu0
        %2845 = vmatprep.mubr.bf16.mxu0 0
        %2846 = vmatmul.mubr.bf16.gmra.mrb[0].mxu0 %v2656
        %v2847 = vpop.f32.mrb[0].mxu0
        %v2848 = vadd.f32 0.0, %v2847
        %v2849 = vpop.f32.mrb[0].mxu0
        %v2850 = vpop.f32.mrb[0].mxu0
        %v2851 = vadd.f32 0.0, %v2850
        %v2852 = vpop.f32.mrb[0].mxu0
        %2853 = vmatprep.mubr.bf16.mxu0 0
        %2854 = vmatmul.mubr.bf16.gmra.mrb[0].mxu0 %v2657
        %v2855 = vpop.f32.mrb[0].mxu0
        %v2856 = vadd.f32 0.0, %v2855
        %v2857 = vpop.f32.mrb[0].mxu0
        %v2858 = vpop.f32.mrb[0].mxu0
        %v2859 = vadd.f32 0.0, %v2858
        %v2860 = vpop.f32.mrb[0].mxu0
        %2861 = vmatprep.mubr.bf16.mxu0 0
        %2862 = vmatmul.mubr.bf16.gmra.mrb[0].mxu0 %v2658
        %v2863 = vpop.f32.mrb[0].mxu0
        %v2864 = vadd.f32 0.0, %v2863
        %v2865 = vpop.f32.mrb[0].mxu0
        %v2866 = vpop.f32.mrb[0].mxu0
        %v2867 = vadd.f32 0.0, %v2866
        %v2868 = vpop.f32.mrb[0].mxu0
        %2869 = vmatprep.mubr.bf16.mxu0 0
        %2870 = vmatmul.mubr.bf16.gmra.mrb[0].mxu0 %v2659
        %v2871 = vpop.f32.mrb[0].mxu0
        %v2872 = vadd.f32 0.0, %v2871
        %v2873 = vpop.f32.mrb[0].mxu0
        %v2874 = vpop.f32.mrb[0].mxu0
        %v2875 = vadd.f32 0.0, %v2874
        %v2876 = vpop.f32.mrb[0].mxu0
        %2877 = vmatprep.mubr.bf16.mxu0 0
        %2878 = vmatmul.mubr.bf16.gmra.mrb[0].mxu0 %v2660
        %v2879 = vpop.f32.mrb[0].mxu0
        %v2880 = vadd.f32 0.0, %v2879
        %v2881 = vpop.f32.mrb[0].mxu0
        %v2882 = vpop.f32.mrb[0].mxu0
        %v2883 = vadd.f32 0.0, %v2882
        %v2884 = vpop.f32.mrb[0].mxu0
        %2885 = vdwg.mxu0
        %v2886 = vadd.f32 %v2307, %v2760
        %v2887 = vadd.f32 %v2310, %v2763
        %v2888 = vadd.f32 %v2315, %v2768
        %v2889 = vadd.f32 %v2318, %v2771
        %v2890 = vadd.f32 %v2323, %v2776
        %v2891 = vadd.f32 %v2326, %v2779
        %v2892 = vadd.f32 %v2331, %v2784
        %v2893 = vadd.f32 %v2334, %v2787
        %v2894 = vadd.f32 %v2339, %v2792
        %v2895 = vadd.f32 %v2342, %v2795
        %v2896 = vadd.f32 %v2347, %v2800
        %v2897 = vadd.f32 %v2350, %v2803
        %v2898 = vadd.f32 %v2355, %v2808
        %v2899 = vadd.f32 %v2358, %v2811
        %v2900 = vadd.f32 %v2363, %v2816
        %v2901 = vadd.f32 %v2366, %v2819
        %v2902 = vadd.f32 %v2371, %v2824
        %v2903 = vadd.f32 %v2374, %v2827
        %v2904 = vadd.f32 %v2379, %v2832
        %v2905 = vadd.f32 %v2382, %v2835
        %v2906 = vadd.f32 %v2387, %v2840
        %v2907 = vadd.f32 %v2390, %v2843
        %v2908 = vadd.f32 %v2395, %v2848
        %v2909 = vadd.f32 %v2398, %v2851
        %v2910 = vadd.f32 %v2403, %v2856
        %v2911 = vadd.f32 %v2406, %v2859
        %v2912 = vadd.f32 %v2411, %v2864
        %v2913 = vadd.f32 %v2414, %v2867
        %v2914 = vadd.f32 %v2419, %v2872
        %v2915 = vadd.f32 %v2422, %v2875
        %v2916 = vadd.f32 %v2427, %v2880
        %v2917 = vadd.f32 %v2430, %v2883
        %v2918 = vld [vmem:[%s1272] sm:$0xf]
        %v2919 = vld [vmem:[%s1272 + $0x4] sm:$0xf]
        %v2920 = vld [vmem:[%s1272 + $0xc] sm:$0xf]
        %v2921 = vld [vmem:[%s1272 + $0x10] sm:$0xf]
        %v2922 = vld [vmem:[%s1272 + $0x18] sm:$0xf]
        %v2923 = vld [vmem:[%s1272 + $0x1c] sm:$0xf]
        %v2924 = vld [vmem:[%s1272 + $0x24] sm:$0xf]
        %v2925 = vld [vmem:[%s1272 + $0x28] sm:$0xf]
        %v2926 = vld [vmem:[%s1272 + $0x30] sm:$0xf]
        %v2927 = vld [vmem:[%s1272 + $0x34] sm:$0xf]
        %v2928 = vld [vmem:[%s1272 + $0x3c] sm:$0xf]
        %v2929 = vld [vmem:[%s1272 + $0x40] sm:$0xf]
        %v2930 = vld [vmem:[%s1272 + $0x48] sm:$0xf]
        %v2931 = vld [vmem:[%s1272 + $0x4c] sm:$0xf]
        %v2932 = vld [vmem:[%s1272 + $0x54] sm:$0xf]
        %v2933 = vld [vmem:[%s1272 + $0x58] sm:$0xf]
        %v2934 = vld [vmem:[%s1272 + $0x60] sm:$0xf]
        %v2935 = vld [vmem:[%s1272 + $0x64] sm:$0xf]
        %v2936 = vld [vmem:[%s1272 + $0x6c] sm:$0xf]
        %v2937 = vld [vmem:[%s1272 + $0x70] sm:$0xf]
        %v2938 = vld [vmem:[%s1272 + $0x78] sm:$0xf]
        %v2939 = vld [vmem:[%s1272 + $0x7c] sm:$0xf]
        %v2940 = vld [vmem:[%s1272 + $0x84] sm:$0xf]
        %v2941 = vld [vmem:[%s1272 + $0x88] sm:$0xf]
        %v2942 = vld [vmem:[%s1272 + $0x90] sm:$0xf]
        %v2943 = vld [vmem:[%s1272 + $0x94] sm:$0xf]
        %v2944 = vld [vmem:[%s1272 + $0x9c] sm:$0xf]
        %v2945 = vld [vmem:[%s1272 + $0xa0] sm:$0xf]
        %v2946 = vld [vmem:[%s1272 + $0xa8] sm:$0xf]
        %v2947 = vld [vmem:[%s1272 + $0xac] sm:$0xf]
        %v2948 = vld [vmem:[%s1272 + $0xb4] sm:$0xf]
        %v2949 = vld [vmem:[%s1272 + $0xb8] sm:$0xf]
        %s2950 = scalar_lea.vmem [#allocation8], 192
        %v2951 = vld [vmem:[%s2950] sm:$0xf]
        %v2952 = vld [vmem:[%s2950 + $0x4] sm:$0xf]
        %v2953 = vld [vmem:[%s2950 + $0x8] sm:$0xf]
        %v2954 = vld [vmem:[%s2950 + $0xc] sm:$0xf]
        %v2955 = vld [vmem:[%s2950 + $0x10] sm:$0xf]
        %v2956 = vld [vmem:[%s2950 + $0x14] sm:$0xf]
        %v2957 = vld [vmem:[%s2950 + $0x18] sm:$0xf]
        %v2958 = vld [vmem:[%s2950 + $0x1c] sm:$0xf]
        %v2959 = vld [vmem:[%s2950 + $0x20] sm:$0xf]
        %v2960 = vld [vmem:[%s2950 + $0x24] sm:$0xf]
        %v2961 = vld [vmem:[%s2950 + $0x28] sm:$0xf]
        %v2962 = vld [vmem:[%s2950 + $0x2c] sm:$0xf]
        %v2963 = vld [vmem:[%s2950 + $0x30] sm:$0xf]
        %v2964 = vld [vmem:[%s2950 + $0x34] sm:$0xf]
        %v2965 = vld [vmem:[%s2950 + $0x38] sm:$0xf]
        %v2966 = vld [vmem:[%s2950 + $0x3c] sm:$0xf]
        %v2999 = vunpack.c.l.b16 %v2918
        %v3000 = vunpack.c.l.b16 %v2919
        %v3001 = vunpack.c.l.b16 %v2920
        %v3002 = vunpack.c.l.b16 %v2921
        %v3003 = vunpack.c.l.b16 %v2922
        %v3004 = vunpack.c.l.b16 %v2923
        %v3005 = vunpack.c.l.b16 %v2924
        %v3006 = vunpack.c.l.b16 %v2925
        %v3007 = vunpack.c.l.b16 %v2926
        %v3008 = vunpack.c.l.b16 %v2927
        %v3009 = vunpack.c.l.b16 %v2928
        %v3010 = vunpack.c.l.b16 %v2929
        %v3011 = vunpack.c.l.b16 %v2930
        %v3012 = vunpack.c.l.b16 %v2931
        %v3013 = vunpack.c.l.b16 %v2932
        %v3014 = vunpack.c.l.b16 %v2933
        %v3015 = vunpack.c.l.b16 %v2934
        %v3016 = vunpack.c.l.b16 %v2935
        %v3017 = vunpack.c.l.b16 %v2936
        %v3018 = vunpack.c.l.b16 %v2937
        %v3019 = vunpack.c.l.b16 %v2938
        %v3020 = vunpack.c.l.b16 %v2939
        %v3021 = vunpack.c.l.b16 %v2940
        %v3022 = vunpack.c.l.b16 %v2941
        %v3023 = vunpack.c.l.b16 %v2942
        %v3024 = vunpack.c.l.b16 %v2943
        %v3025 = vunpack.c.l.b16 %v2944
        %v3026 = vunpack.c.l.b16 %v2945
        %v3027 = vunpack.c.l.b16 %v2946
        %v3028 = vunpack.c.l.b16 %v2947
        %v3029 = vunpack.c.l.b16 %v2948
        %v3030 = vunpack.c.l.b16 %v2949
        %v3031 = vpack.c.b16 %v3000, %v2999
        %v3032 = vpack.c.b16 %v3002, %v3001
        %v3033 = vpack.c.b16 %v3004, %v3003
        %v3034 = vpack.c.b16 %v3006, %v3005
        %v3035 = vpack.c.b16 %v3008, %v3007
        %v3036 = vpack.c.b16 %v3010, %v3009
        %v3037 = vpack.c.b16 %v3012, %v3011
        %v3038 = vpack.c.b16 %v3014, %v3013
        %v3039 = vpack.c.b16 %v3016, %v3015
        %v3040 = vpack.c.b16 %v3018, %v3017
        %v3041 = vpack.c.b16 %v3020, %v3019
        %v3042 = vpack.c.b16 %v3022, %v3021
        %v3043 = vpack.c.b16 %v3024, %v3023
        %v3044 = vpack.c.b16 %v3026, %v3025
        %v3045 = vpack.c.b16 %v3028, %v3027
        %v3046 = vpack.c.b16 %v3030, %v3029
        %v3079 = vunpack.c.l.b16 %v2951
        %v3080 = vunpack.c.l.b16 %v2952
        %v3081 = vunpack.c.l.b16 %v2953
        %v3082 = vunpack.c.l.b16 %v2954
        %v3083 = vunpack.c.l.b16 %v2955
        %v3084 = vunpack.c.l.b16 %v2956
        %v3085 = vunpack.c.l.b16 %v2957
        %v3086 = vunpack.c.l.b16 %v2958
        %v3087 = vunpack.c.l.b16 %v2959
        %v3088 = vunpack.c.l.b16 %v2960
        %v3089 = vunpack.c.l.b16 %v2961
        %v3090 = vunpack.c.l.b16 %v2962
        %v3091 = vunpack.c.l.b16 %v2963
        %v3092 = vunpack.c.l.b16 %v2964
        %v3093 = vunpack.c.l.b16 %v2965
        %v3094 = vunpack.c.l.b16 %v2966
        %v3095 = vpack.c.b16 %v3080, %v3079
        %v3096 = vpack.c.b16 %v3082, %v3081
        %v3097 = vpack.c.b16 %v3084, %v3083
        %v3098 = vpack.c.b16 %v3086, %v3085
        %v3099 = vpack.c.b16 %v3088, %v3087
        %v3100 = vpack.c.b16 %v3090, %v3089
        %v3101 = vpack.c.b16 %v3092, %v3091
        %v3102 = vpack.c.b16 %v3094, %v3093
        %3111 = vmatprep.subr.bf16.mxu0 0
        %3112 = vmatpush1.bf16.msra.mxu0 %v3095
        %3113 = vmatprep.subr.bf16.mxu0 0
        %3114 = vmatpush1.bf16.msra.mxu0 %v3096
        %3115 = vmatprep.subr.bf16.mxu0 0
        %3116 = vmatpush1.bf16.msra.mxu0 %v3097
        %3117 = vmatprep.subr.bf16.mxu0 0
        %3118 = vmatpush1.bf16.msra.mxu0 %v3098
        %3119 = vmatprep.subr.bf16.mxu0 0
        %3120 = vmatpush1.bf16.msra.mxu0 %v3099
        %3121 = vmatprep.subr.bf16.mxu0 0
        %3122 = vmatpush1.bf16.msra.mxu0 %v3100
        %3123 = vmatprep.subr.bf16.mxu0 0
        %3124 = vmatpush1.bf16.msra.mxu0 %v3101
        %3125 = vmatprep.subr.bf16.mxu0 0
        %3126 = vmatpush1.bf16.msra.mxu0 %v3102
        %3127 = vmatprep.subr.bf16.mxu0 0
        %3128 = vmatpush1.bf16.msra.mxu0 0
        %3129 = vmatprep.subr.bf16.mxu0 0
        %3130 = vmatpush1.bf16.msra.mxu0 0
        %3131 = vmatprep.subr.bf16.mxu0 0
        %3132 = vmatpush1.bf16.msra.mxu0 0
        %3133 = vmatprep.subr.bf16.mxu0 0
        %3134 = vmatpush1.bf16.msra.mxu0 0
        %3135 = vmatprep.subr.bf16.mxu0 0
        %3136 = vmatpush1.bf16.msra.mxu0 0
        %3137 = vmatprep.subr.bf16.mxu0 0
        %3138 = vmatpush1.bf16.msra.mxu0 0
        %3139 = vmatprep.subr.bf16.mxu0 0
        %3140 = vmatpush1.bf16.msra.mxu0 0
        %3141 = vmatprep.subr.bf16.mxu0 0
        %3142 = vmatpush1.bf16.msra.mxu0 0
        %3143 = vmatprep.mubr.bf16.mxu0 0
        %3144 = vmatmul.mubr.bf16.gmra.mrb[0].mxu0 %v3031
        %v3145 = vpop.f32.mrb[0].mxu0
        %v3146 = vadd.f32 0.0, %v3145
        %v3147 = vpop.f32.mrb[0].mxu0
        %v3148 = vpop.f32.mrb[0].mxu0
        %v3149 = vadd.f32 0.0, %v3148
        %v3150 = vpop.f32.mrb[0].mxu0
        %3151 = vmatprep.mubr.bf16.mxu0 0
        %3152 = vmatmul.mubr.bf16.gmra.mrb[0].mxu0 %v3032
        %v3153 = vpop.f32.mrb[0].mxu0
        %v3154 = vadd.f32 0.0, %v3153
        %v3155 = vpop.f32.mrb[0].mxu0
        %v3156 = vpop.f32.mrb[0].mxu0
        %v3157 = vadd.f32 0.0, %v3156
        %v3158 = vpop.f32.mrb[0].mxu0
        %3159 = vmatprep.mubr.bf16.mxu0 0
        %3160 = vmatmul.mubr.bf16.gmra.mrb[0].mxu0 %v3033
        %v3161 = vpop.f32.mrb[0].mxu0
        %v3162 = vadd.f32 0.0, %v3161
        %v3163 = vpop.f32.mrb[0].mxu0
        %v3164 = vpop.f32.mrb[0].mxu0
        %v3165 = vadd.f32 0.0, %v3164
        %v3166 = vpop.f32.mrb[0].mxu0
        %3167 = vmatprep.mubr.bf16.mxu0 0
        %3168 = vmatmul.mubr.bf16.gmra.mrb[0].mxu0 %v3034
        %v3169 = vpop.f32.mrb[0].mxu0
        %v3170 = vadd.f32 0.0, %v3169
        %v3171 = vpop.f32.mrb[0].mxu0
        %v3172 = vpop.f32.mrb[0].mxu0
        %v3173 = vadd.f32 0.0, %v3172
        %v3174 = vpop.f32.mrb[0].mxu0
        %3175 = vmatprep.mubr.bf16.mxu0 0
        %3176 = vmatmul.mubr.bf16.gmra.mrb[0].mxu0 %v3035
        %v3177 = vpop.f32.mrb[0].mxu0
        %v3178 = vadd.f32 0.0, %v3177
        %v3179 = vpop.f32.mrb[0].mxu0
        %v3180 = vpop.f32.mrb[0].mxu0
        %v3181 = vadd.f32 0.0, %v3180
        %v3182 = vpop.f32.mrb[0].mxu0
        %3183 = vmatprep.mubr.bf16.mxu0 0
        %3184 = vmatmul.mubr.bf16.gmra.mrb[0].mxu0 %v3036
        %v3185 = vpop.f32.mrb[0].mxu0
        %v3186 = vadd.f32 0.0, %v3185
        %v3187 = vpop.f32.mrb[0].mxu0
        %v3188 = vpop.f32.mrb[0].mxu0
        %v3189 = vadd.f32 0.0, %v3188
        %v3190 = vpop.f32.mrb[0].mxu0
        %3191 = vmatprep.mubr.bf16.mxu0 0
        %3192 = vmatmul.mubr.bf16.gmra.mrb[0].mxu0 %v3037
        %v3193 = vpop.f32.mrb[0].mxu0
        %v3194 = vadd.f32 0.0, %v3193
        %v3195 = vpop.f32.mrb[0].mxu0
        %v3196 = vpop.f32.mrb[0].mxu0
        %v3197 = vadd.f32 0.0, %v3196
        %v3198 = vpop.f32.mrb[0].mxu0
        %3199 = vmatprep.mubr.bf16.mxu0 0
        %3200 = vmatmul.mubr.bf16.gmra.mrb[0].mxu0 %v3038
        %v3201 = vpop.f32.mrb[0].mxu0
        %v3202 = vadd.f32 0.0, %v3201
        %v3203 = vpop.f32.mrb[0].mxu0
        %v3204 = vpop.f32.mrb[0].mxu0
        %v3205 = vadd.f32 0.0, %v3204
        %v3206 = vpop.f32.mrb[0].mxu0
        %3207 = vmatprep.mubr.bf16.mxu0 0
        %3208 = vmatmul.mubr.bf16.gmra.mrb[0].mxu0 %v3039
        %v3209 = vpop.f32.mrb[0].mxu0
        %v3210 = vadd.f32 0.0, %v3209
        %v3211 = vpop.f32.mrb[0].mxu0
        %v3212 = vpop.f32.mrb[0].mxu0
        %v3213 = vadd.f32 0.0, %v3212
        %v3214 = vpop.f32.mrb[0].mxu0
        %3215 = vmatprep.mubr.bf16.mxu0 0
        %3216 = vmatmul.mubr.bf16.gmra.mrb[0].mxu0 %v3040
        %v3217 = vpop.f32.mrb[0].mxu0
        %v3218 = vadd.f32 0.0, %v3217
        %v3219 = vpop.f32.mrb[0].mxu0
        %v3220 = vpop.f32.mrb[0].mxu0
        %v3221 = vadd.f32 0.0, %v3220
        %v3222 = vpop.f32.mrb[0].mxu0
        %3223 = vmatprep.mubr.bf16.mxu0 0
        %3224 = vmatmul.mubr.bf16.gmra.mrb[0].mxu0 %v3041
        %v3225 = vpop.f32.mrb[0].mxu0
        %v3226 = vadd.f32 0.0, %v3225
        %v3227 = vpop.f32.mrb[0].mxu0
        %v3228 = vpop.f32.mrb[0].mxu0
        %v3229 = vadd.f32 0.0, %v3228
        %v3230 = vpop.f32.mrb[0].mxu0
        %3231 = vmatprep.mubr.bf16.mxu0 0
        %3232 = vmatmul.mubr.bf16.gmra.mrb[0].mxu0 %v3042
        %v3233 = vpop.f32.mrb[0].mxu0
        %v3234 = vadd.f32 0.0, %v3233
        %v3235 = vpop.f32.mrb[0].mxu0
        %v3236 = vpop.f32.mrb[0].mxu0
        %v3237 = vadd.f32 0.0, %v3236
        %v3238 = vpop.f32.mrb[0].mxu0
        %3239 = vmatprep.mubr.bf16.mxu0 0
        %3240 = vmatmul.mubr.bf16.gmra.mrb[0].mxu0 %v3043
        %v3241 = vpop.f32.mrb[0].mxu0
        %v3242 = vadd.f32 0.0, %v3241
        %v3243 = vpop.f32.mrb[0].mxu0
        %v3244 = vpop.f32.mrb[0].mxu0
        %v3245 = vadd.f32 0.0, %v3244
        %v3246 = vpop.f32.mrb[0].mxu0
        %3247 = vmatprep.mubr.bf16.mxu0 0
        %3248 = vmatmul.mubr.bf16.gmra.mrb[0].mxu0 %v3044
        %v3249 = vpop.f32.mrb[0].mxu0
        %v3250 = vadd.f32 0.0, %v3249
        %v3251 = vpop.f32.mrb[0].mxu0
        %v3252 = vpop.f32.mrb[0].mxu0
        %v3253 = vadd.f32 0.0, %v3252
        %v3254 = vpop.f32.mrb[0].mxu0
        %3255 = vmatprep.mubr.bf16.mxu0 0
        %3256 = vmatmul.mubr.bf16.gmra.mrb[0].mxu0 %v3045
        %v3257 = vpop.f32.mrb[0].mxu0
        %v3258 = vadd.f32 0.0, %v3257
        %v3259 = vpop.f32.mrb[0].mxu0
        %v3260 = vpop.f32.mrb[0].mxu0
        %v3261 = vadd.f32 0.0, %v3260
        %v3262 = vpop.f32.mrb[0].mxu0
        %3263 = vmatprep.mubr.bf16.mxu0 0
        %3264 = vmatmul.mubr.bf16.gmra.mrb[0].mxu0 %v3046
        %v3265 = vpop.f32.mrb[0].mxu0
        %v3266 = vadd.f32 0.0, %v3265
        %v3267 = vpop.f32.mrb[0].mxu0
        %v3268 = vpop.f32.mrb[0].mxu0
        %v3269 = vadd.f32 0.0, %v3268
        %v3270 = vpop.f32.mrb[0].mxu0
        %3271 = vdwg.mxu0
        %v3272 = vadd.f32 %v2886, %v3146
        %v3273 = vadd.f32 %v2887, %v3149
        %v3274 = vadd.f32 %v2888, %v3154
        %v3275 = vadd.f32 %v2889, %v3157
        %v3276 = vadd.f32 %v2890, %v3162
        %v3277 = vadd.f32 %v2891, %v3165
        %v3278 = vadd.f32 %v2892, %v3170
        %v3279 = vadd.f32 %v2893, %v3173
        %v3280 = vadd.f32 %v2894, %v3178
        %v3281 = vadd.f32 %v2895, %v3181
        %v3282 = vadd.f32 %v2896, %v3186
        %v3283 = vadd.f32 %v2897, %v3189
        %v3284 = vadd.f32 %v2898, %v3194
        %v3285 = vadd.f32 %v2899, %v3197
        %v3286 = vadd.f32 %v2900, %v3202
        %v3287 = vadd.f32 %v2901, %v3205
        %v3288 = vadd.f32 %v2902, %v3210
        %v3289 = vadd.f32 %v2903, %v3213
        %v3290 = vadd.f32 %v2904, %v3218
        %v3291 = vadd.f32 %v2905, %v3221
        %v3292 = vadd.f32 %v2906, %v3226
        %v3293 = vadd.f32 %v2907, %v3229
        %v3294 = vadd.f32 %v2908, %v3234
        %v3295 = vadd.f32 %v2909, %v3237
        %v3296 = vadd.f32 %v2910, %v3242
        %v3297 = vadd.f32 %v2911, %v3245
        %v3298 = vadd.f32 %v2912, %v3250
        %v3299 = vadd.f32 %v2913, %v3253
        %v3300 = vadd.f32 %v2914, %v3258
        %v3301 = vadd.f32 %v2915, %v3261
        %v3302 = vadd.f32 %v2916, %v3266
        %v3303 = vadd.f32 %v2917, %v3269
        %v3304 = vld [vmem:[%s1272] sm:$0xf]
        %v3305 = vld [vmem:[%s1272 + $0x4] sm:$0xf]
        %v3306 = vld [vmem:[%s1272 + $0x8] sm:$0x1]
        %v3307 = vld [vmem:[%s1272 + $0xc] sm:$0xf]
        %v3308 = vld [vmem:[%s1272 + $0x10] sm:$0xf]
        %v3309 = vld [vmem:[%s1272 + $0x14] sm:$0x1]
        %v3310 = vld [vmem:[%s1272 + $0x18] sm:$0xf]
        %v3311 = vld [vmem:[%s1272 + $0x1c] sm:$0xf]
        %v3312 = vld [vmem:[%s1272 + $0x20] sm:$0x1]
        %v3313 = vld [vmem:[%s1272 + $0x24] sm:$0xf]
        %v3314 = vld [vmem:[%s1272 + $0x28] sm:$0xf]
        %v3315 = vld [vmem:[%s1272 + $0x2c] sm:$0x1]
        %v3316 = vld [vmem:[%s1272 + $0x30] sm:$0xf]
        %v3317 = vld [vmem:[%s1272 + $0x34] sm:$0xf]
        %v3318 = vld [vmem:[%s1272 + $0x38] sm:$0x1]
        %v3319 = vld [vmem:[%s1272 + $0x3c] sm:$0xf]
        %v3320 = vld [vmem:[%s1272 + $0x40] sm:$0xf]
        %v3321 = vld [vmem:[%s1272 + $0x44] sm:$0x1]
        %v3322 = vld [vmem:[%s1272 + $0x48] sm:$0xf]
        %v3323 = vld [vmem:[%s1272 + $0x4c] sm:$0xf]
        %v3324 = vld [vmem:[%s1272 + $0x50] sm:$0x1]
        %v3325 = vld [vmem:[%s1272 + $0x54] sm:$0xf]
        %v3326 = vld [vmem:[%s1272 + $0x58] sm:$0xf]
        %v3327 = vld [vmem:[%s1272 + $0x5c] sm:$0x1]
        %v3328 = vld [vmem:[%s1272 + $0x60] sm:$0xf]
        %v3329 = vld [vmem:[%s1272 + $0x64] sm:$0xf]
        %v3330 = vld [vmem:[%s1272 + $0x68] sm:$0x1]
        %v3331 = vld [vmem:[%s1272 + $0x6c] sm:$0xf]
        %v3332 = vld [vmem:[%s1272 + $0x70] sm:$0xf]
        %v3333 = vld [vmem:[%s1272 + $0x74] sm:$0x1]
        %v3334 = vld [vmem:[%s1272 + $0x78] sm:$0xf]
        %v3335 = vld [vmem:[%s1272 + $0x7c] sm:$0xf]
        %v3336 = vld [vmem:[%s1272 + $0x80] sm:$0x1]
        %v3337 = vld [vmem:[%s1272 + $0x84] sm:$0xf]
        %v3338 = vld [vmem:[%s1272 + $0x88] sm:$0xf]
        %v3339 = vld [vmem:[%s1272 + $0x8c] sm:$0x1]
        %v3340 = vld [vmem:[%s1272 + $0x90] sm:$0xf]
        %v3341 = vld [vmem:[%s1272 + $0x94] sm:$0xf]
        %v3342 = vld [vmem:[%s1272 + $0x98] sm:$0x1]
        %v3343 = vld [vmem:[%s1272 + $0x9c] sm:$0xf]
        %v3344 = vld [vmem:[%s1272 + $0xa0] sm:$0xf]
        %v3345 = vld [vmem:[%s1272 + $0xa4] sm:$0x1]
        %v3346 = vld [vmem:[%s1272 + $0xa8] sm:$0xf]
        %v3347 = vld [vmem:[%s1272 + $0xac] sm:$0xf]
        %v3348 = vld [vmem:[%s1272 + $0xb0] sm:$0x1]
        %v3349 = vld [vmem:[%s1272 + $0xb4] sm:$0xf]
        %v3350 = vld [vmem:[%s1272 + $0xb8] sm:$0xf]
        %v3351 = vld [vmem:[%s1272 + $0xbc] sm:$0x1]
        %v3353 = vshrl.u32 %v3304, 16
        %v3355 = vrot.slane %v3353, 4
        %v3356 = vshll.u32 %v3304, 16
        %v3358 = vrot.slane %v3356, 5
        %v3359 = vor.u32 %v3355, %v3358
        %v3360 = vrot.slane %v3359, 4
        %v3362 = vshll.u32 %v3305, 16
        %v3364 = vrot.slane %v3362, 5
        %v3365 = vsel %vm1453, %v3360, %v3364
        %v3366 = vshrl.u32 %v3305, 16
        %v3368 = vrot.slane %v3366, 4
        %v3369 = vor.u32 %v3368, %v3364
        %v3370 = vrot.slane %v3369, 4
        %v3372 = vshll.u32 %v3306, 16
        %v3374 = vrot.slane %v3372, 5
        %v3375 = vsel %vm1453, %v3370, %v3374
        %v3377 = vshrl.u32 %v3307, 16
        %v3379 = vrot.slane %v3377, 4
        %v3380 = vshll.u32 %v3307, 16
        %v3382 = vrot.slane %v3380, 5
        %v3383 = vor.u32 %v3379, %v3382
        %v3384 = vrot.slane %v3383, 4
        %v3386 = vshll.u32 %v3308, 16
        %v3388 = vrot.slane %v3386, 5
        %v3389 = vsel %vm1453, %v3384, %v3388
        %v3390 = vshrl.u32 %v3308, 16
        %v3392 = vrot.slane %v3390, 4
        %v3393 = vor.u32 %v3392, %v3388
        %v3394 = vrot.slane %v3393, 4
        %v3396 = vshll.u32 %v3309, 16
        %v3398 = vrot.slane %v3396, 5
        %v3399 = vsel %vm1453, %v3394, %v3398
        %v3401 = vshrl.u32 %v3310, 16
        %v3403 = vrot.slane %v3401, 4
        %v3404 = vshll.u32 %v3310, 16
        %v3406 = vrot.slane %v3404, 5
        %v3407 = vor.u32 %v3403, %v3406
        %v3408 = vrot.slane %v3407, 4
        %v3410 = vshll.u32 %v3311, 16
        %v3412 = vrot.slane %v3410, 5
        %v3413 = vsel %vm1453, %v3408, %v3412
        %v3414 = vshrl.u32 %v3311, 16
        %v3416 = vrot.slane %v3414, 4
        %v3417 = vor.u32 %v3416, %v3412
        %v3418 = vrot.slane %v3417, 4
        %v3420 = vshll.u32 %v3312, 16
        %v3422 = vrot.slane %v3420, 5
        %v3423 = vsel %vm1453, %v3418, %v3422
        %v3425 = vshrl.u32 %v3313, 16
        %v3427 = vrot.slane %v3425, 4
        %v3428 = vshll.u32 %v3313, 16
        %v3430 = vrot.slane %v3428, 5
        %v3431 = vor.u32 %v3427, %v3430
        %v3432 = vrot.slane %v3431, 4
        %v3434 = vshll.u32 %v3314, 16
        %v3436 = vrot.slane %v3434, 5
        %v3437 = vsel %vm1453, %v3432, %v3436
        %v3438 = vshrl.u32 %v3314, 16
        %v3440 = vrot.slane %v3438, 4
        %v3441 = vor.u32 %v3440, %v3436
        %v3442 = vrot.slane %v3441, 4
        %v3444 = vshll.u32 %v3315, 16
        %v3446 = vrot.slane %v3444, 5
        %v3447 = vsel %vm1453, %v3442, %v3446
        %v3449 = vshrl.u32 %v3316, 16
        %v3451 = vrot.slane %v3449, 4
        %v3452 = vshll.u32 %v3316, 16
        %v3454 = vrot.slane %v3452, 5
        %v3455 = vor.u32 %v3451, %v3454
        %v3456 = vrot.slane %v3455, 4
        %v3458 = vshll.u32 %v3317, 16
        %v3460 = vrot.slane %v3458, 5
        %v3461 = vsel %vm1453, %v3456, %v3460
        %v3462 = vshrl.u32 %v3317, 16
        %v3464 = vrot.slane %v3462, 4
        %v3465 = vor.u32 %v3464, %v3460
        %v3466 = vrot.slane %v3465, 4
        %v3468 = vshll.u32 %v3318, 16
        %v3470 = vrot.slane %v3468, 5
        %v3471 = vsel %vm1453, %v3466, %v3470
        %v3473 = vshrl.u32 %v3319, 16
        %v3475 = vrot.slane %v3473, 4
        %v3476 = vshll.u32 %v3319, 16
        %v3478 = vrot.slane %v3476, 5
        %v3479 = vor.u32 %v3475, %v3478
        %v3480 = vrot.slane %v3479, 4
        %v3482 = vshll.u32 %v3320, 16
        %v3484 = vrot.slane %v3482, 5
        %v3485 = vsel %vm1453, %v3480, %v3484
        %v3486 = vshrl.u32 %v3320, 16
        %v3488 = vrot.slane %v3486, 4
        %v3489 = vor.u32 %v3488, %v3484
        %v3490 = vrot.slane %v3489, 4
        %v3492 = vshll.u32 %v3321, 16
        %v3494 = vrot.slane %v3492, 5
        %v3495 = vsel %vm1453, %v3490, %v3494
        %v3497 = vshrl.u32 %v3322, 16
        %v3499 = vrot.slane %v3497, 4
        %v3500 = vshll.u32 %v3322, 16
        %v3502 = vrot.slane %v3500, 5
        %v3503 = vor.u32 %v3499, %v3502
        %v3504 = vrot.slane %v3503, 4
        %v3506 = vshll.u32 %v3323, 16
        %v3508 = vrot.slane %v3506, 5
        %v3509 = vsel %vm1453, %v3504, %v3508
        %v3510 = vshrl.u32 %v3323, 16
        %v3512 = vrot.slane %v3510, 4
        %v3513 = vor.u32 %v3512, %v3508
        %v3514 = vrot.slane %v3513, 4
        %v3516 = vshll.u32 %v3324, 16
        %v3518 = vrot.slane %v3516, 5
        %v3519 = vsel %vm1453, %v3514, %v3518
        %v3521 = vshrl.u32 %v3325, 16
        %v3523 = vrot.slane %v3521, 4
        %v3524 = vshll.u32 %v3325, 16
        %v3526 = vrot.slane %v3524, 5
        %v3527 = vor.u32 %v3523, %v3526
        %v3528 = vrot.slane %v3527, 4
        %v3530 = vshll.u32 %v3326, 16
        %v3532 = vrot.slane %v3530, 5
        %v3533 = vsel %vm1453, %v3528, %v3532
        %v3534 = vshrl.u32 %v3326, 16
        %v3536 = vrot.slane %v3534, 4
        %v3537 = vor.u32 %v3536, %v3532
        %v3538 = vrot.slane %v3537, 4
        %v3540 = vshll.u32 %v3327, 16
        %v3542 = vrot.slane %v3540, 5
        %v3543 = vsel %vm1453, %v3538, %v3542
        %v3545 = vshrl.u32 %v3328, 16
        %v3547 = vrot.slane %v3545, 4
        %v3548 = vshll.u32 %v3328, 16
        %v3550 = vrot.slane %v3548, 5
        %v3551 = vor.u32 %v3547, %v3550
        %v3552 = vrot.slane %v3551, 4
        %v3554 = vshll.u32 %v3329, 16
        %v3556 = vrot.slane %v3554, 5
        %v3557 = vsel %vm1453, %v3552, %v3556
        %v3558 = vshrl.u32 %v3329, 16
        %v3560 = vrot.slane %v3558, 4
        %v3561 = vor.u32 %v3560, %v3556
        %v3562 = vrot.slane %v3561, 4
        %v3564 = vshll.u32 %v3330, 16
        %v3566 = vrot.slane %v3564, 5
        %v3567 = vsel %vm1453, %v3562, %v3566
        %v3569 = vshrl.u32 %v3331, 16
        %v3571 = vrot.slane %v3569, 4
        %v3572 = vshll.u32 %v3331, 16
        %v3574 = vrot.slane %v3572, 5
        %v3575 = vor.u32 %v3571, %v3574
        %v3576 = vrot.slane %v3575, 4
        %v3578 = vshll.u32 %v3332, 16
        %v3580 = vrot.slane %v3578, 5
        %v3581 = vsel %vm1453, %v3576, %v3580
        %v3582 = vshrl.u32 %v3332, 16
        %v3584 = vrot.slane %v3582, 4
        %v3585 = vor.u32 %v3584, %v3580
        %v3586 = vrot.slane %v3585, 4
        %v3588 = vshll.u32 %v3333, 16
        %v3590 = vrot.slane %v3588, 5
        %v3591 = vsel %vm1453, %v3586, %v3590
        %v3593 = vshrl.u32 %v3334, 16
        %v3595 = vrot.slane %v3593, 4
        %v3596 = vshll.u32 %v3334, 16
        %v3598 = vrot.slane %v3596, 5
        %v3599 = vor.u32 %v3595, %v3598
        %v3600 = vrot.slane %v3599, 4
        %v3602 = vshll.u32 %v3335, 16
        %v3604 = vrot.slane %v3602, 5
        %v3605 = vsel %vm1453, %v3600, %v3604
        %v3606 = vshrl.u32 %v3335, 16
        %v3608 = vrot.slane %v3606, 4
        %v3609 = vor.u32 %v3608, %v3604
        %v3610 = vrot.slane %v3609, 4
        %v3612 = vshll.u32 %v3336, 16
        %v3614 = vrot.slane %v3612, 5
        %v3615 = vsel %vm1453, %v3610, %v3614
        %v3617 = vshrl.u32 %v3337, 16
        %v3619 = vrot.slane %v3617, 4
        %v3620 = vshll.u32 %v3337, 16
        %v3622 = vrot.slane %v3620, 5
        %v3623 = vor.u32 %v3619, %v3622
        %v3624 = vrot.slane %v3623, 4
        %v3626 = vshll.u32 %v3338, 16
        %v3628 = vrot.slane %v3626, 5
        %v3629 = vsel %vm1453, %v3624, %v3628
        %v3630 = vshrl.u32 %v3338, 16
        %v3632 = vrot.slane %v3630, 4
        %v3633 = vor.u32 %v3632, %v3628
        %v3634 = vrot.slane %v3633, 4
        %v3636 = vshll.u32 %v3339, 16
        %v3638 = vrot.slane %v3636, 5
        %v3639 = vsel %vm1453, %v3634, %v3638
        %v3641 = vshrl.u32 %v3340, 16
        %v3643 = vrot.slane %v3641, 4
        %v3644 = vshll.u32 %v3340, 16
        %v3646 = vrot.slane %v3644, 5
        %v3647 = vor.u32 %v3643, %v3646
        %v3648 = vrot.slane %v3647, 4
        %v3650 = vshll.u32 %v3341, 16
        %v3652 = vrot.slane %v3650, 5
        %v3653 = vsel %vm1453, %v3648, %v3652
        %v3654 = vshrl.u32 %v3341, 16
        %v3656 = vrot.slane %v3654, 4
        %v3657 = vor.u32 %v3656, %v3652
        %v3658 = vrot.slane %v3657, 4
        %v3660 = vshll.u32 %v3342, 16
        %v3662 = vrot.slane %v3660, 5
        %v3663 = vsel %vm1453, %v3658, %v3662
        %v3665 = vshrl.u32 %v3343, 16
        %v3667 = vrot.slane %v3665, 4
        %v3668 = vshll.u32 %v3343, 16
        %v3670 = vrot.slane %v3668, 5
        %v3671 = vor.u32 %v3667, %v3670
        %v3672 = vrot.slane %v3671, 4
        %v3674 = vshll.u32 %v3344, 16
        %v3676 = vrot.slane %v3674, 5
        %v3677 = vsel %vm1453, %v3672, %v3676
        %v3678 = vshrl.u32 %v3344, 16
        %v3680 = vrot.slane %v3678, 4
        %v3681 = vor.u32 %v3680, %v3676
        %v3682 = vrot.slane %v3681, 4
        %v3684 = vshll.u32 %v3345, 16
        %v3686 = vrot.slane %v3684, 5
        %v3687 = vsel %vm1453, %v3682, %v3686
        %v3689 = vshrl.u32 %v3346, 16
        %v3691 = vrot.slane %v3689, 4
        %v3692 = vshll.u32 %v3346, 16
        %v3694 = vrot.slane %v3692, 5
        %v3695 = vor.u32 %v3691, %v3694
        %v3696 = vrot.slane %v3695, 4
        %v3698 = vshll.u32 %v3347, 16
        %v3700 = vrot.slane %v3698, 5
        %v3701 = vsel %vm1453, %v3696, %v3700
        %v3702 = vshrl.u32 %v3347, 16
        %v3704 = vrot.slane %v3702, 4
        %v3705 = vor.u32 %v3704, %v3700
        %v3706 = vrot.slane %v3705, 4
        %v3708 = vshll.u32 %v3348, 16
        %v3710 = vrot.slane %v3708, 5
        %v3711 = vsel %vm1453, %v3706, %v3710
        %v3713 = vshrl.u32 %v3349, 16
        %v3715 = vrot.slane %v3713, 4
        %v3716 = vshll.u32 %v3349, 16
        %v3718 = vrot.slane %v3716, 5
        %v3719 = vor.u32 %v3715, %v3718
        %v3720 = vrot.slane %v3719, 4
        %v3722 = vshll.u32 %v3350, 16
        %v3724 = vrot.slane %v3722, 5
        %v3725 = vsel %vm1453, %v3720, %v3724
        %v3726 = vshrl.u32 %v3350, 16
        %v3728 = vrot.slane %v3726, 4
        %v3729 = vor.u32 %v3728, %v3724
        %v3730 = vrot.slane %v3729, 4
        %v3732 = vshll.u32 %v3351, 16
        %v3734 = vrot.slane %v3732, 5
        %v3735 = vsel %vm1453, %v3730, %v3734
        %s3736 = scalar_lea.vmem [#allocation8], 256
        %v3737 = vld [vmem:[%s3736] sm:$0xf]
        %v3738 = vld [vmem:[%s3736 + $0x4] sm:$0xf]
        %v3739 = vld [vmem:[%s3736 + $0x8] sm:$0xf]
        %v3740 = vld [vmem:[%s3736 + $0xc] sm:$0xf]
        %v3741 = vld [vmem:[%s3736 + $0x10] sm:$0xf]
        %v3742 = vld [vmem:[%s3736 + $0x14] sm:$0xf]
        %v3743 = vld [vmem:[%s3736 + $0x18] sm:$0xf]
        %v3744 = vld [vmem:[%s3736 + $0x1c] sm:$0xf]
        %v3745 = vld [vmem:[%s3736 + $0x20] sm:$0xf]
        %v3746 = vld [vmem:[%s3736 + $0x24] sm:$0xf]
        %v3747 = vld [vmem:[%s3736 + $0x28] sm:$0xf]
        %v3748 = vld [vmem:[%s3736 + $0x2c] sm:$0xf]
        %v3749 = vld [vmem:[%s3736 + $0x30] sm:$0xf]
        %v3750 = vld [vmem:[%s3736 + $0x34] sm:$0xf]
        %v3751 = vld [vmem:[%s3736 + $0x38] sm:$0xf]
        %v3752 = vld [vmem:[%s3736 + $0x3c] sm:$0xf]
        %v3753 = vunpack.c.l.b16 %v3365
        %v3754 = vunpack.c.l.b16 %v3375
        %v3755 = vunpack.c.l.b16 %v3389
        %v3756 = vunpack.c.l.b16 %v3399
        %v3757 = vunpack.c.l.b16 %v3413
        %v3758 = vunpack.c.l.b16 %v3423
        %v3759 = vunpack.c.l.b16 %v3437
        %v3760 = vunpack.c.l.b16 %v3447
        %v3761 = vunpack.c.l.b16 %v3461
        %v3762 = vunpack.c.l.b16 %v3471
        %v3763 = vunpack.c.l.b16 %v3485
        %v3764 = vunpack.c.l.b16 %v3495
        %v3765 = vunpack.c.l.b16 %v3509
        %v3766 = vunpack.c.l.b16 %v3519
        %v3767 = vunpack.c.l.b16 %v3533
        %v3768 = vunpack.c.l.b16 %v3543
        %v3769 = vunpack.c.l.b16 %v3557
        %v3770 = vunpack.c.l.b16 %v3567
        %v3771 = vunpack.c.l.b16 %v3581
        %v3772 = vunpack.c.l.b16 %v3591
        %v3773 = vunpack.c.l.b16 %v3605
        %v3774 = vunpack.c.l.b16 %v3615
        %v3775 = vunpack.c.l.b16 %v3629
        %v3776 = vunpack.c.l.b16 %v3639
        %v3777 = vunpack.c.l.b16 %v3653
        %v3778 = vunpack.c.l.b16 %v3663
        %v3779 = vunpack.c.l.b16 %v3677
        %v3780 = vunpack.c.l.b16 %v3687
        %v3781 = vunpack.c.l.b16 %v3701
        %v3782 = vunpack.c.l.b16 %v3711
        %v3783 = vunpack.c.l.b16 %v3725
        %v3784 = vunpack.c.l.b16 %v3735
        %v3785 = vpack.c.b16 %v3754, %v3753
        %v3786 = vpack.c.b16 %v3756, %v3755
        %v3787 = vpack.c.b16 %v3758, %v3757
        %v3788 = vpack.c.b16 %v3760, %v3759
        %v3789 = vpack.c.b16 %v3762, %v3761
        %v3790 = vpack.c.b16 %v3764, %v3763
        %v3791 = vpack.c.b16 %v3766, %v3765
        %v3792 = vpack.c.b16 %v3768, %v3767
        %v3793 = vpack.c.b16 %v3770, %v3769
        %v3794 = vpack.c.b16 %v3772, %v3771
        %v3795 = vpack.c.b16 %v3774, %v3773
        %v3796 = vpack.c.b16 %v3776, %v3775
        %v3797 = vpack.c.b16 %v3778, %v3777
        %v3798 = vpack.c.b16 %v3780, %v3779
        %v3799 = vpack.c.b16 %v3782, %v3781
        %v3800 = vpack.c.b16 %v3784, %v3783
        %v3833 = vunpack.c.l.b16 %v3737
        %v3834 = vunpack.c.l.b16 %v3738
        %v3835 = vunpack.c.l.b16 %v3739
        %v3836 = vunpack.c.l.b16 %v3740
        %v3837 = vunpack.c.l.b16 %v3741
        %v3838 = vunpack.c.l.b16 %v3742
        %v3839 = vunpack.c.l.b16 %v3743
        %v3840 = vunpack.c.l.b16 %v3744
        %v3841 = vunpack.c.l.b16 %v3745
        %v3842 = vunpack.c.l.b16 %v3746
        %v3843 = vunpack.c.l.b16 %v3747
        %v3844 = vunpack.c.l.b16 %v3748
        %v3845 = vunpack.c.l.b16 %v3749
        %v3846 = vunpack.c.l.b16 %v3750
        %v3847 = vunpack.c.l.b16 %v3751
        %v3848 = vunpack.c.l.b16 %v3752
        %v3849 = vpack.c.b16 %v3834, %v3833
        %v3850 = vpack.c.b16 %v3836, %v3835
        %v3851 = vpack.c.b16 %v3838, %v3837
        %v3852 = vpack.c.b16 %v3840, %v3839
        %v3853 = vpack.c.b16 %v3842, %v3841
        %v3854 = vpack.c.b16 %v3844, %v3843
        %v3855 = vpack.c.b16 %v3846, %v3845
        %v3856 = vpack.c.b16 %v3848, %v3847
        %3865 = vmatprep.subr.bf16.mxu0 0
        %3866 = vmatpush1.bf16.msra.mxu0 %v3849
        %3867 = vmatprep.subr.bf16.mxu0 0
        %3868 = vmatpush1.bf16.msra.mxu0 %v3850
        %3869 = vmatprep.subr.bf16.mxu0 0
        %3870 = vmatpush1.bf16.msra.mxu0 %v3851
        %3871 = vmatprep.subr.bf16.mxu0 0
        %3872 = vmatpush1.bf16.msra.mxu0 %v3852
        %3873 = vmatprep.subr.bf16.mxu0 0
        %3874 = vmatpush1.bf16.msra.mxu0 %v3853
        %3875 = vmatprep.subr.bf16.mxu0 0
        %3876 = vmatpush1.bf16.msra.mxu0 %v3854
        %3877 = vmatprep.subr.bf16.mxu0 0
        %3878 = vmatpush1.bf16.msra.mxu0 %v3855
        %3879 = vmatprep.subr.bf16.mxu0 0
        %3880 = vmatpush1.bf16.msra.mxu0 %v3856
        %3881 = vmatprep.subr.bf16.mxu0 0
        %3882 = vmatpush1.bf16.msra.mxu0 0
        %3883 = vmatprep.subr.bf16.mxu0 0
        %3884 = vmatpush1.bf16.msra.mxu0 0
        %3885 = vmatprep.subr.bf16.mxu0 0
        %3886 = vmatpush1.bf16.msra.mxu0 0
        %3887 = vmatprep.subr.bf16.mxu0 0
        %3888 = vmatpush1.bf16.msra.mxu0 0
        %3889 = vmatprep.subr.bf16.mxu0 0
        %3890 = vmatpush1.bf16.msra.mxu0 0
        %3891 = vmatprep.subr.bf16.mxu0 0
        %3892 = vmatpush1.bf16.msra.mxu0 0
        %3893 = vmatprep.subr.bf16.mxu0 0
        %3894 = vmatpush1.bf16.msra.mxu0 0
        %3895 = vmatprep.subr.bf16.mxu0 0
        %3896 = vmatpush1.bf16.msra.mxu0 0
        %3897 = vmatprep.mubr.bf16.mxu0 0
        %3898 = vmatmul.mubr.bf16.gmra.mrb[0].mxu0 %v3785
        %v3899 = vpop.f32.mrb[0].mxu0
        %v3900 = vadd.f32 0.0, %v3899
        %v3901 = vpop.f32.mrb[0].mxu0
        %v3902 = vpop.f32.mrb[0].mxu0
        %v3903 = vadd.f32 0.0, %v3902
        %v3904 = vpop.f32.mrb[0].mxu0
        %3905 = vmatprep.mubr.bf16.mxu0 0
        %3906 = vmatmul.mubr.bf16.gmra.mrb[0].mxu0 %v3786
        %v3907 = vpop.f32.mrb[0].mxu0
        %v3908 = vadd.f32 0.0, %v3907
        %v3909 = vpop.f32.mrb[0].mxu0
        %v3910 = vpop.f32.mrb[0].mxu0
        %v3911 = vadd.f32 0.0, %v3910
        %v3912 = vpop.f32.mrb[0].mxu0
        %3913 = vmatprep.mubr.bf16.mxu0 0
        %3914 = vmatmul.mubr.bf16.gmra.mrb[0].mxu0 %v3787
        %v3915 = vpop.f32.mrb[0].mxu0
        %v3916 = vadd.f32 0.0, %v3915
        %v3917 = vpop.f32.mrb[0].mxu0
        %v3918 = vpop.f32.mrb[0].mxu0
        %v3919 = vadd.f32 0.0, %v3918
        %v3920 = vpop.f32.mrb[0].mxu0
        %3921 = vmatprep.mubr.bf16.mxu0 0
        %3922 = vmatmul.mubr.bf16.gmra.mrb[0].mxu0 %v3788
        %v3923 = vpop.f32.mrb[0].mxu0
        %v3924 = vadd.f32 0.0, %v3923
        %v3925 = vpop.f32.mrb[0].mxu0
        %v3926 = vpop.f32.mrb[0].mxu0
        %v3927 = vadd.f32 0.0, %v3926
        %v3928 = vpop.f32.mrb[0].mxu0
        %3929 = vmatprep.mubr.bf16.mxu0 0
        %3930 = vmatmul.mubr.bf16.gmra.mrb[0].mxu0 %v3789
        %v3931 = vpop.f32.mrb[0].mxu0
        %v3932 = vadd.f32 0.0, %v3931
        %v3933 = vpop.f32.mrb[0].mxu0
        %v3934 = vpop.f32.mrb[0].mxu0
        %v3935 = vadd.f32 0.0, %v3934
        %v3936 = vpop.f32.mrb[0].mxu0
        %3937 = vmatprep.mubr.bf16.mxu0 0
        %3938 = vmatmul.mubr.bf16.gmra.mrb[0].mxu0 %v3790
        %v3939 = vpop.f32.mrb[0].mxu0
        %v3940 = vadd.f32 0.0, %v3939
        %v3941 = vpop.f32.mrb[0].mxu0
        %v3942 = vpop.f32.mrb[0].mxu0
        %v3943 = vadd.f32 0.0, %v3942
        %v3944 = vpop.f32.mrb[0].mxu0
        %3945 = vmatprep.mubr.bf16.mxu0 0
        %3946 = vmatmul.mubr.bf16.gmra.mrb[0].mxu0 %v3791
        %v3947 = vpop.f32.mrb[0].mxu0
        %v3948 = vadd.f32 0.0, %v3947
        %v3949 = vpop.f32.mrb[0].mxu0
        %v3950 = vpop.f32.mrb[0].mxu0
        %v3951 = vadd.f32 0.0, %v3950
        %v3952 = vpop.f32.mrb[0].mxu0
        %3953 = vmatprep.mubr.bf16.mxu0 0
        %3954 = vmatmul.mubr.bf16.gmra.mrb[0].mxu0 %v3792
        %v3955 = vpop.f32.mrb[0].mxu0
        %v3956 = vadd.f32 0.0, %v3955
        %v3957 = vpop.f32.mrb[0].mxu0
        %v3958 = vpop.f32.mrb[0].mxu0
        %v3959 = vadd.f32 0.0, %v3958
        %v3960 = vpop.f32.mrb[0].mxu0
        %3961 = vmatprep.mubr.bf16.mxu0 0
        %3962 = vmatmul.mubr.bf16.gmra.mrb[0].mxu0 %v3793
        %v3963 = vpop.f32.mrb[0].mxu0
        %v3964 = vadd.f32 0.0, %v3963
        %v3965 = vpop.f32.mrb[0].mxu0
        %v3966 = vpop.f32.mrb[0].mxu0
        %v3967 = vadd.f32 0.0, %v3966
        %v3968 = vpop.f32.mrb[0].mxu0
        %3969 = vmatprep.mubr.bf16.mxu0 0
        %3970 = vmatmul.mubr.bf16.gmra.mrb[0].mxu0 %v3794
        %v3971 = vpop.f32.mrb[0].mxu0
        %v3972 = vadd.f32 0.0, %v3971
        %v3973 = vpop.f32.mrb[0].mxu0
        %v3974 = vpop.f32.mrb[0].mxu0
        %v3975 = vadd.f32 0.0, %v3974
        %v3976 = vpop.f32.mrb[0].mxu0
        %3977 = vmatprep.mubr.bf16.mxu0 0
        %3978 = vmatmul.mubr.bf16.gmra.mrb[0].mxu0 %v3795
        %v3979 = vpop.f32.mrb[0].mxu0
        %v3980 = vadd.f32 0.0, %v3979
        %v3981 = vpop.f32.mrb[0].mxu0
        %v3982 = vpop.f32.mrb[0].mxu0
        %v3983 = vadd.f32 0.0, %v3982
        %v3984 = vpop.f32.mrb[0].mxu0
        %3985 = vmatprep.mubr.bf16.mxu0 0
        %3986 = vmatmul.mubr.bf16.gmra.mrb[0].mxu0 %v3796
        %v3987 = vpop.f32.mrb[0].mxu0
        %v3988 = vadd.f32 0.0, %v3987
        %v3989 = vpop.f32.mrb[0].mxu0
        %v3990 = vpop.f32.mrb[0].mxu0
        %v3991 = vadd.f32 0.0, %v3990
        %v3992 = vpop.f32.mrb[0].mxu0
        %3993 = vmatprep.mubr.bf16.mxu0 0
        %3994 = vmatmul.mubr.bf16.gmra.mrb[0].mxu0 %v3797
        %v3995 = vpop.f32.mrb[0].mxu0
        %v3996 = vadd.f32 0.0, %v3995
        %v3997 = vpop.f32.mrb[0].mxu0
        %v3998 = vpop.f32.mrb[0].mxu0
        %v3999 = vadd.f32 0.0, %v3998
        %v4000 = vpop.f32.mrb[0].mxu0
        %4001 = vmatprep.mubr.bf16.mxu0 0
        %4002 = vmatmul.mubr.bf16.gmra.mrb[0].mxu0 %v3798
        %v4003 = vpop.f32.mrb[0].mxu0
        %v4004 = vadd.f32 0.0, %v4003
        %v4005 = vpop.f32.mrb[0].mxu0
        %v4006 = vpop.f32.mrb[0].mxu0
        %v4007 = vadd.f32 0.0, %v4006
        %v4008 = vpop.f32.mrb[0].mxu0
        %4009 = vmatprep.mubr.bf16.mxu0 0
        %4010 = vmatmul.mubr.bf16.gmra.mrb[0].mxu0 %v3799
        %v4011 = vpop.f32.mrb[0].mxu0
        %v4012 = vadd.f32 0.0, %v4011
        %v4013 = vpop.f32.mrb[0].mxu0
        %v4014 = vpop.f32.mrb[0].mxu0
        %v4015 = vadd.f32 0.0, %v4014
        %v4016 = vpop.f32.mrb[0].mxu0
        %4017 = vmatprep.mubr.bf16.mxu0 0
        %4018 = vmatmul.mubr.bf16.gmra.mrb[0].mxu0 %v3800
        %v4019 = vpop.f32.mrb[0].mxu0
        %v4020 = vadd.f32 0.0, %v4019
        %v4021 = vpop.f32.mrb[0].mxu0
        %v4022 = vpop.f32.mrb[0].mxu0
        %v4023 = vadd.f32 0.0, %v4022
        %v4024 = vpop.f32.mrb[0].mxu0
        %4025 = vdwg.mxu0
        %v4026 = vadd.f32 %v3272, %v3900
        %v4027 = vadd.f32 %v3273, %v3903
        %v4028 = vadd.f32 %v3274, %v3908
        %v4029 = vadd.f32 %v3275, %v3911
        %v4030 = vadd.f32 %v3276, %v3916
        %v4031 = vadd.f32 %v3277, %v3919
        %v4032 = vadd.f32 %v3278, %v3924
        %v4033 = vadd.f32 %v3279, %v3927
        %v4034 = vadd.f32 %v3280, %v3932
        %v4035 = vadd.f32 %v3281, %v3935
        %v4036 = vadd.f32 %v3282, %v3940
        %v4037 = vadd.f32 %v3283, %v3943
        %v4038 = vadd.f32 %v3284, %v3948
        %v4039 = vadd.f32 %v3285, %v3951
        %v4040 = vadd.f32 %v3286, %v3956
        %v4041 = vadd.f32 %v3287, %v3959
        %v4042 = vadd.f32 %v3288, %v3964
        %v4043 = vadd.f32 %v3289, %v3967
        %v4044 = vadd.f32 %v3290, %v3972
        %v4045 = vadd.f32 %v3291, %v3975
        %v4046 = vadd.f32 %v3292, %v3980
        %v4047 = vadd.f32 %v3293, %v3983
        %v4048 = vadd.f32 %v3294, %v3988
        %v4049 = vadd.f32 %v3295, %v3991
        %v4050 = vadd.f32 %v3296, %v3996
        %v4051 = vadd.f32 %v3297, %v3999
        %v4052 = vadd.f32 %v3298, %v4004
        %v4053 = vadd.f32 %v3299, %v4007
        %v4054 = vadd.f32 %v3300, %v4012
        %v4055 = vadd.f32 %v3301, %v4015
        %v4056 = vadd.f32 %v3302, %v4020
        %v4057 = vadd.f32 %v3303, %v4023
        %v4058 = vld [vmem:[%s1272] sm:$0xe]
        %v4059 = vld [vmem:[%s1272 + $0xc] sm:$0xe]
        %v4060 = vld [vmem:[%s1272 + $0x18] sm:$0xe]
        %v4061 = vld [vmem:[%s1272 + $0x24] sm:$0xe]
        %v4062 = vld [vmem:[%s1272 + $0x30] sm:$0xe]
        %v4063 = vld [vmem:[%s1272 + $0x3c] sm:$0xe]
        %v4064 = vld [vmem:[%s1272 + $0x48] sm:$0xe]
        %v4065 = vld [vmem:[%s1272 + $0x54] sm:$0xe]
        %v4066 = vld [vmem:[%s1272 + $0x60] sm:$0xe]
        %v4067 = vld [vmem:[%s1272 + $0x6c] sm:$0xe]
        %v4068 = vld [vmem:[%s1272 + $0x78] sm:$0xe]
        %v4069 = vld [vmem:[%s1272 + $0x84] sm:$0xe]
        %v4070 = vld [vmem:[%s1272 + $0x90] sm:$0xe]
        %v4071 = vld [vmem:[%s1272 + $0x9c] sm:$0xe]
        %v4072 = vld [vmem:[%s1272 + $0xa8] sm:$0xe]
        %v4073 = vld [vmem:[%s1272 + $0xb4] sm:$0xe]
        %v4122 = vrot.slane %v4058, 5
        %v4123 = vrot.slane %v4122, 4
        %v4124 = vrot.slane %v3305, 5
        %v4125 = vsel %vm2483, %v4123, %v4124
        %v4126 = vrot.slane %v4124, 4
        %v4127 = vrot.slane %v3306, 5
        %v4128 = vsel %vm2483, %v4126, %v4127
        %v4129 = vrot.slane %v4059, 5
        %v4130 = vrot.slane %v4129, 4
        %v4131 = vrot.slane %v3308, 5
        %v4132 = vsel %vm2483, %v4130, %v4131
        %v4133 = vrot.slane %v4131, 4
        %v4134 = vrot.slane %v3309, 5
        %v4135 = vsel %vm2483, %v4133, %v4134
        %v4136 = vrot.slane %v4060, 5
        %v4137 = vrot.slane %v4136, 4
        %v4138 = vrot.slane %v3311, 5
        %v4139 = vsel %vm2483, %v4137, %v4138
        %v4140 = vrot.slane %v4138, 4
        %v4141 = vrot.slane %v3312, 5
        %v4142 = vsel %vm2483, %v4140, %v4141
        %v4143 = vrot.slane %v4061, 5
        %v4144 = vrot.slane %v4143, 4
        %v4145 = vrot.slane %v3314, 5
        %v4146 = vsel %vm2483, %v4144, %v4145
        %v4147 = vrot.slane %v4145, 4
        %v4148 = vrot.slane %v3315, 5
        %v4149 = vsel %vm2483, %v4147, %v4148
        %v4150 = vrot.slane %v4062, 5
        %v4151 = vrot.slane %v4150, 4
        %v4152 = vrot.slane %v3317, 5
        %v4153 = vsel %vm2483, %v4151, %v4152
        %v4154 = vrot.slane %v4152, 4
        %v4155 = vrot.slane %v3318, 5
        %v4156 = vsel %vm2483, %v4154, %v4155
        %v4157 = vrot.slane %v4063, 5
        %v4158 = vrot.slane %v4157, 4
        %v4159 = vrot.slane %v3320, 5
        %v4160 = vsel %vm2483, %v4158, %v4159
        %v4161 = vrot.slane %v4159, 4
        %v4162 = vrot.slane %v3321, 5
        %v4163 = vsel %vm2483, %v4161, %v4162
        %v4164 = vrot.slane %v4064, 5
        %v4165 = vrot.slane %v4164, 4
        %v4166 = vrot.slane %v3323, 5
        %v4167 = vsel %vm2483, %v4165, %v4166
        %v4168 = vrot.slane %v4166, 4
        %v4169 = vrot.slane %v3324, 5
        %v4170 = vsel %vm2483, %v4168, %v4169
        %v4171 = vrot.slane %v4065, 5
        %v4172 = vrot.slane %v4171, 4
        %v4173 = vrot.slane %v3326, 5
        %v4174 = vsel %vm2483, %v4172, %v4173
        %v4175 = vrot.slane %v4173, 4
        %v4176 = vrot.slane %v3327, 5
        %v4177 = vsel %vm2483, %v4175, %v4176
        %v4178 = vrot.slane %v4066, 5
        %v4179 = vrot.slane %v4178, 4
        %v4180 = vrot.slane %v3329, 5
        %v4181 = vsel %vm2483, %v4179, %v4180
        %v4182 = vrot.slane %v4180, 4
        %v4183 = vrot.slane %v3330, 5
        %v4184 = vsel %vm2483, %v4182, %v4183
        %v4185 = vrot.slane %v4067, 5
        %v4186 = vrot.slane %v4185, 4
        %v4187 = vrot.slane %v3332, 5
        %v4188 = vsel %vm2483, %v4186, %v4187
        %v4189 = vrot.slane %v4187, 4
        %v4190 = vrot.slane %v3333, 5
        %v4191 = vsel %vm2483, %v4189, %v4190
        %v4192 = vrot.slane %v4068, 5
        %v4193 = vrot.slane %v4192, 4
        %v4194 = vrot.slane %v3335, 5
        %v4195 = vsel %vm2483, %v4193, %v4194
        %v4196 = vrot.slane %v4194, 4
        %v4197 = vrot.slane %v3336, 5
        %v4198 = vsel %vm2483, %v4196, %v4197
        %v4199 = vrot.slane %v4069, 5
        %v4200 = vrot.slane %v4199, 4
        %v4201 = vrot.slane %v3338, 5
        %v4202 = vsel %vm2483, %v4200, %v4201
        %v4203 = vrot.slane %v4201, 4
        %v4204 = vrot.slane %v3339, 5
        %v4205 = vsel %vm2483, %v4203, %v4204
        %v4206 = vrot.slane %v4070, 5
        %v4207 = vrot.slane %v4206, 4
        %v4208 = vrot.slane %v3341, 5
        %v4209 = vsel %vm2483, %v4207, %v4208
        %v4210 = vrot.slane %v4208, 4
        %v4211 = vrot.slane %v3342, 5
        %v4212 = vsel %vm2483, %v4210, %v4211
        %v4213 = vrot.slane %v4071, 5
        %v4214 = vrot.slane %v4213, 4
        %v4215 = vrot.slane %v3344, 5
        %v4216 = vsel %vm2483, %v4214, %v4215
        %v4217 = vrot.slane %v4215, 4
        %v4218 = vrot.slane %v3345, 5
        %v4219 = vsel %vm2483, %v4217, %v4218
        %v4220 = vrot.slane %v4072, 5
        %v4221 = vrot.slane %v4220, 4
        %v4222 = vrot.slane %v3347, 5
        %v4223 = vsel %vm2483, %v4221, %v4222
        %v4224 = vrot.slane %v4222, 4
        %v4225 = vrot.slane %v3348, 5
        %v4226 = vsel %vm2483, %v4224, %v4225
        %v4227 = vrot.slane %v4073, 5
        %v4228 = vrot.slane %v4227, 4
        %v4229 = vrot.slane %v3350, 5
        %v4230 = vsel %vm2483, %v4228, %v4229
        %v4231 = vrot.slane %v4229, 4
        %v4232 = vrot.slane %v3351, 5
        %v4233 = vsel %vm2483, %v4231, %v4232
        %s4234 = scalar_lea.vmem [#allocation8], 320
        %v4235 = vld [vmem:[%s4234] sm:$0xf]
        %v4236 = vld [vmem:[%s4234 + $0x4] sm:$0xf]
        %v4237 = vld [vmem:[%s4234 + $0x8] sm:$0xf]
        %v4238 = vld [vmem:[%s4234 + $0xc] sm:$0xf]
        %v4239 = vld [vmem:[%s4234 + $0x10] sm:$0xf]
        %v4240 = vld [vmem:[%s4234 + $0x14] sm:$0xf]
        %v4241 = vld [vmem:[%s4234 + $0x18] sm:$0xf]
        %v4242 = vld [vmem:[%s4234 + $0x1c] sm:$0xf]
        %v4243 = vld [vmem:[%s4234 + $0x20] sm:$0xf]
        %v4244 = vld [vmem:[%s4234 + $0x24] sm:$0xf]
        %v4245 = vld [vmem:[%s4234 + $0x28] sm:$0xf]
        %v4246 = vld [vmem:[%s4234 + $0x2c] sm:$0xf]
        %v4247 = vld [vmem:[%s4234 + $0x30] sm:$0xf]
        %v4248 = vld [vmem:[%s4234 + $0x34] sm:$0xf]
        %v4249 = vld [vmem:[%s4234 + $0x38] sm:$0xf]
        %v4250 = vld [vmem:[%s4234 + $0x3c] sm:$0xf]
        %v4251 = vunpack.c.l.b16 %v4125
        %v4252 = vunpack.c.l.b16 %v4128
        %v4253 = vunpack.c.l.b16 %v4132
        %v4254 = vunpack.c.l.b16 %v4135
        %v4255 = vunpack.c.l.b16 %v4139
        %v4256 = vunpack.c.l.b16 %v4142
        %v4257 = vunpack.c.l.b16 %v4146
        %v4258 = vunpack.c.l.b16 %v4149
        %v4259 = vunpack.c.l.b16 %v4153
        %v4260 = vunpack.c.l.b16 %v4156
        %v4261 = vunpack.c.l.b16 %v4160
        %v4262 = vunpack.c.l.b16 %v4163
        %v4263 = vunpack.c.l.b16 %v4167
        %v4264 = vunpack.c.l.b16 %v4170
        %v4265 = vunpack.c.l.b16 %v4174
        %v4266 = vunpack.c.l.b16 %v4177
        %v4267 = vunpack.c.l.b16 %v4181
        %v4268 = vunpack.c.l.b16 %v4184
        %v4269 = vunpack.c.l.b16 %v4188
        %v4270 = vunpack.c.l.b16 %v4191
        %v4271 = vunpack.c.l.b16 %v4195
        %v4272 = vunpack.c.l.b16 %v4198
        %v4273 = vunpack.c.l.b16 %v4202
        %v4274 = vunpack.c.l.b16 %v4205
        %v4275 = vunpack.c.l.b16 %v4209
        %v4276 = vunpack.c.l.b16 %v4212
        %v4277 = vunpack.c.l.b16 %v4216
        %v4278 = vunpack.c.l.b16 %v4219
        %v4279 = vunpack.c.l.b16 %v4223
        %v4280 = vunpack.c.l.b16 %v4226
        %v4281 = vunpack.c.l.b16 %v4230
        %v4282 = vunpack.c.l.b16 %v4233
        %v4283 = vpack.c.b16 %v4252, %v4251
        %v4284 = vpack.c.b16 %v4254, %v4253
        %v4285 = vpack.c.b16 %v4256, %v4255
        %v4286 = vpack.c.b16 %v4258, %v4257
        %v4287 = vpack.c.b16 %v4260, %v4259
        %v4288 = vpack.c.b16 %v4262, %v4261
        %v4289 = vpack.c.b16 %v4264, %v4263
        %v4290 = vpack.c.b16 %v4266, %v4265
        %v4291 = vpack.c.b16 %v4268, %v4267
        %v4292 = vpack.c.b16 %v4270, %v4269
        %v4293 = vpack.c.b16 %v4272, %v4271
        %v4294 = vpack.c.b16 %v4274, %v4273
        %v4295 = vpack.c.b16 %v4276, %v4275
        %v4296 = vpack.c.b16 %v4278, %v4277
        %v4297 = vpack.c.b16 %v4280, %v4279
        %v4298 = vpack.c.b16 %v4282, %v4281
        %v4331 = vunpack.c.l.b16 %v4235
        %v4332 = vunpack.c.l.b16 %v4236
        %v4333 = vunpack.c.l.b16 %v4237
        %v4334 = vunpack.c.l.b16 %v4238
        %v4335 = vunpack.c.l.b16 %v4239
        %v4336 = vunpack.c.l.b16 %v4240
        %v4337 = vunpack.c.l.b16 %v4241
        %v4338 = vunpack.c.l.b16 %v4242
        %v4339 = vunpack.c.l.b16 %v4243
        %v4340 = vunpack.c.l.b16 %v4244
        %v4341 = vunpack.c.l.b16 %v4245
        %v4342 = vunpack.c.l.b16 %v4246
        %v4343 = vunpack.c.l.b16 %v4247
        %v4344 = vunpack.c.l.b16 %v4248
        %v4345 = vunpack.c.l.b16 %v4249
        %v4346 = vunpack.c.l.b16 %v4250
        %v4347 = vpack.c.b16 %v4332, %v4331
        %v4348 = vpack.c.b16 %v4334, %v4333
        %v4349 = vpack.c.b16 %v4336, %v4335
        %v4350 = vpack.c.b16 %v4338, %v4337
        %v4351 = vpack.c.b16 %v4340, %v4339
        %v4352 = vpack.c.b16 %v4342, %v4341
        %v4353 = vpack.c.b16 %v4344, %v4343
        %v4354 = vpack.c.b16 %v4346, %v4345
        %4363 = vmatprep.subr.bf16.mxu0 0
        %4364 = vmatpush1.bf16.msra.mxu0 %v4347
        %4365 = vmatprep.subr.bf16.mxu0 0
        %4366 = vmatpush1.bf16.msra.mxu0 %v4348
        %4367 = vmatprep.subr.bf16.mxu0 0
        %4368 = vmatpush1.bf16.msra.mxu0 %v4349
        %4369 = vmatprep.subr.bf16.mxu0 0
        %4370 = vmatpush1.bf16.msra.mxu0 %v4350
        %4371 = vmatprep.subr.bf16.mxu0 0
        %4372 = vmatpush1.bf16.msra.mxu0 %v4351
        %4373 = vmatprep.subr.bf16.mxu0 0
        %4374 = vmatpush1.bf16.msra.mxu0 %v4352
        %4375 = vmatprep.subr.bf16.mxu0 0
        %4376 = vmatpush1.bf16.msra.mxu0 %v4353
        %4377 = vmatprep.subr.bf16.mxu0 0
        %4378 = vmatpush1.bf16.msra.mxu0 %v4354
        %4379 = vmatprep.subr.bf16.mxu0 0
        %4380 = vmatpush1.bf16.msra.mxu0 0
        %4381 = vmatprep.subr.bf16.mxu0 0
        %4382 = vmatpush1.bf16.msra.mxu0 0
        %4383 = vmatprep.subr.bf16.mxu0 0
        %4384 = vmatpush1.bf16.msra.mxu0 0
        %4385 = vmatprep.subr.bf16.mxu0 0
        %4386 = vmatpush1.bf16.msra.mxu0 0
        %4387 = vmatprep.subr.bf16.mxu0 0
        %4388 = vmatpush1.bf16.msra.mxu0 0
        %4389 = vmatprep.subr.bf16.mxu0 0
        %4390 = vmatpush1.bf16.msra.mxu0 0
        %4391 = vmatprep.subr.bf16.mxu0 0
        %4392 = vmatpush1.bf16.msra.mxu0 0
        %4393 = vmatprep.subr.bf16.mxu0 0
        %4394 = vmatpush1.bf16.msra.mxu0 0
        %4395 = vmatprep.mubr.bf16.mxu0 0
        %4396 = vmatmul.mubr.bf16.gmra.mrb[0].mxu0 %v4283
        %v4397 = vpop.f32.mrb[0].mxu0
        %v4398 = vadd.f32 0.0, %v4397
        %v4399 = vpop.f32.mrb[0].mxu0
        %v4400 = vpop.f32.mrb[0].mxu0
        %v4401 = vadd.f32 0.0, %v4400
        %v4402 = vpop.f32.mrb[0].mxu0
        %4403 = vmatprep.mubr.bf16.mxu0 0
        %4404 = vmatmul.mubr.bf16.gmra.mrb[0].mxu0 %v4284
        %v4405 = vpop.f32.mrb[0].mxu0
        %v4406 = vadd.f32 0.0, %v4405
        %v4407 = vpop.f32.mrb[0].mxu0
        %v4408 = vpop.f32.mrb[0].mxu0
        %v4409 = vadd.f32 0.0, %v4408
        %v4410 = vpop.f32.mrb[0].mxu0
        %4411 = vmatprep.mubr.bf16.mxu0 0
        %4412 = vmatmul.mubr.bf16.gmra.mrb[0].mxu0 %v4285
        %v4413 = vpop.f32.mrb[0].mxu0
        %v4414 = vadd.f32 0.0, %v4413
        %v4415 = vpop.f32.mrb[0].mxu0
        %v4416 = vpop.f32.mrb[0].mxu0
        %v4417 = vadd.f32 0.0, %v4416
        %v4418 = vpop.f32.mrb[0].mxu0
        %4419 = vmatprep.mubr.bf16.mxu0 0
        %4420 = vmatmul.mubr.bf16.gmra.mrb[0].mxu0 %v4286
        %v4421 = vpop.f32.mrb[0].mxu0
        %v4422 = vadd.f32 0.0, %v4421
        %v4423 = vpop.f32.mrb[0].mxu0
        %v4424 = vpop.f32.mrb[0].mxu0
        %v4425 = vadd.f32 0.0, %v4424
        %v4426 = vpop.f32.mrb[0].mxu0
        %4427 = vmatprep.mubr.bf16.mxu0 0
        %4428 = vmatmul.mubr.bf16.gmra.mrb[0].mxu0 %v4287
        %v4429 = vpop.f32.mrb[0].mxu0
        %v4430 = vadd.f32 0.0, %v4429
        %v4431 = vpop.f32.mrb[0].mxu0
        %v4432 = vpop.f32.mrb[0].mxu0
        %v4433 = vadd.f32 0.0, %v4432
        %v4434 = vpop.f32.mrb[0].mxu0
        %4435 = vmatprep.mubr.bf16.mxu0 0
        %4436 = vmatmul.mubr.bf16.gmra.mrb[0].mxu0 %v4288
        %v4437 = vpop.f32.mrb[0].mxu0
        %v4438 = vadd.f32 0.0, %v4437
        %v4439 = vpop.f32.mrb[0].mxu0
        %v4440 = vpop.f32.mrb[0].mxu0
        %v4441 = vadd.f32 0.0, %v4440
        %v4442 = vpop.f32.mrb[0].mxu0
        %4443 = vmatprep.mubr.bf16.mxu0 0
        %4444 = vmatmul.mubr.bf16.gmra.mrb[0].mxu0 %v4289
        %v4445 = vpop.f32.mrb[0].mxu0
        %v4446 = vadd.f32 0.0, %v4445
        %v4447 = vpop.f32.mrb[0].mxu0
        %v4448 = vpop.f32.mrb[0].mxu0
        %v4449 = vadd.f32 0.0, %v4448
        %v4450 = vpop.f32.mrb[0].mxu0
        %4451 = vmatprep.mubr.bf16.mxu0 0
        %4452 = vmatmul.mubr.bf16.gmra.mrb[0].mxu0 %v4290
        %v4453 = vpop.f32.mrb[0].mxu0
        %v4454 = vadd.f32 0.0, %v4453
        %v4455 = vpop.f32.mrb[0].mxu0
        %v4456 = vpop.f32.mrb[0].mxu0
        %v4457 = vadd.f32 0.0, %v4456
        %v4458 = vpop.f32.mrb[0].mxu0
        %4459 = vmatprep.mubr.bf16.mxu0 0
        %4460 = vmatmul.mubr.bf16.gmra.mrb[0].mxu0 %v4291
        %v4461 = vpop.f32.mrb[0].mxu0
        %v4462 = vadd.f32 0.0, %v4461
        %v4463 = vpop.f32.mrb[0].mxu0
        %v4464 = vpop.f32.mrb[0].mxu0
        %v4465 = vadd.f32 0.0, %v4464
        %v4466 = vpop.f32.mrb[0].mxu0
        %4467 = vmatprep.mubr.bf16.mxu0 0
        %4468 = vmatmul.mubr.bf16.gmra.mrb[0].mxu0 %v4292
        %v4469 = vpop.f32.mrb[0].mxu0
        %v4470 = vadd.f32 0.0, %v4469
        %v4471 = vpop.f32.mrb[0].mxu0
        %v4472 = vpop.f32.mrb[0].mxu0
        %v4473 = vadd.f32 0.0, %v4472
        %v4474 = vpop.f32.mrb[0].mxu0
        %4475 = vmatprep.mubr.bf16.mxu0 0
        %4476 = vmatmul.mubr.bf16.gmra.mrb[0].mxu0 %v4293
        %v4477 = vpop.f32.mrb[0].mxu0
        %v4478 = vadd.f32 0.0, %v4477
        %v4479 = vpop.f32.mrb[0].mxu0
        %v4480 = vpop.f32.mrb[0].mxu0
        %v4481 = vadd.f32 0.0, %v4480
        %v4482 = vpop.f32.mrb[0].mxu0
        %4483 = vmatprep.mubr.bf16.mxu0 0
        %4484 = vmatmul.mubr.bf16.gmra.mrb[0].mxu0 %v4294
        %v4485 = vpop.f32.mrb[0].mxu0
        %v4486 = vadd.f32 0.0, %v4485
        %v4487 = vpop.f32.mrb[0].mxu0
        %v4488 = vpop.f32.mrb[0].mxu0
        %v4489 = vadd.f32 0.0, %v4488
        %v4490 = vpop.f32.mrb[0].mxu0
        %4491 = vmatprep.mubr.bf16.mxu0 0
        %4492 = vmatmul.mubr.bf16.gmra.mrb[0].mxu0 %v4295
        %v4493 = vpop.f32.mrb[0].mxu0
        %v4494 = vadd.f32 0.0, %v4493
        %v4495 = vpop.f32.mrb[0].mxu0
        %v4496 = vpop.f32.mrb[0].mxu0
        %v4497 = vadd.f32 0.0, %v4496
        %v4498 = vpop.f32.mrb[0].mxu0
        %4499 = vmatprep.mubr.bf16.mxu0 0
        %4500 = vmatmul.mubr.bf16.gmra.mrb[0].mxu0 %v4296
        %v4501 = vpop.f32.mrb[0].mxu0
        %v4502 = vadd.f32 0.0, %v4501
        %v4503 = vpop.f32.mrb[0].mxu0
        %v4504 = vpop.f32.mrb[0].mxu0
        %v4505 = vadd.f32 0.0, %v4504
        %v4506 = vpop.f32.mrb[0].mxu0
        %4507 = vmatprep.mubr.bf16.mxu0 0
        %4508 = vmatmul.mubr.bf16.gmra.mrb[0].mxu0 %v4297
        %v4509 = vpop.f32.mrb[0].mxu0
        %v4510 = vadd.f32 0.0, %v4509
        %v4511 = vpop.f32.mrb[0].mxu0
        %v4512 = vpop.f32.mrb[0].mxu0
        %v4513 = vadd.f32 0.0, %v4512
        %v4514 = vpop.f32.mrb[0].mxu0
        %4515 = vmatprep.mubr.bf16.mxu0 0
        %4516 = vmatmul.mubr.bf16.gmra.mrb[0].mxu0 %v4298
        %v4517 = vpop.f32.mrb[0].mxu0
        %v4518 = vadd.f32 0.0, %v4517
        %v4519 = vpop.f32.mrb[0].mxu0
        %v4520 = vpop.f32.mrb[0].mxu0
        %v4521 = vadd.f32 0.0, %v4520
        %v4522 = vpop.f32.mrb[0].mxu0
        %4523 = vdwg.mxu0
        %v4524 = vadd.f32 %v4026, %v4398
        %v4525 = vadd.f32 %v4027, %v4401
        %v4526 = vadd.f32 %v4028, %v4406
        %v4527 = vadd.f32 %v4029, %v4409
        %v4528 = vadd.f32 %v4030, %v4414
        %v4529 = vadd.f32 %v4031, %v4417
        %v4530 = vadd.f32 %v4032, %v4422
        %v4531 = vadd.f32 %v4033, %v4425
        %v4532 = vadd.f32 %v4034, %v4430
        %v4533 = vadd.f32 %v4035, %v4433
        %v4534 = vadd.f32 %v4036, %v4438
        %v4535 = vadd.f32 %v4037, %v4441
        %v4536 = vadd.f32 %v4038, %v4446
        %v4537 = vadd.f32 %v4039, %v4449
        %v4538 = vadd.f32 %v4040, %v4454
        %v4539 = vadd.f32 %v4041, %v4457
        %v4540 = vadd.f32 %v4042, %v4462
        %v4541 = vadd.f32 %v4043, %v4465
        %v4542 = vadd.f32 %v4044, %v4470
        %v4543 = vadd.f32 %v4045, %v4473
        %v4544 = vadd.f32 %v4046, %v4478
        %v4545 = vadd.f32 %v4047, %v4481
        %v4546 = vadd.f32 %v4048, %v4486
        %v4547 = vadd.f32 %v4049, %v4489
        %v4548 = vadd.f32 %v4050, %v4494
        %v4549 = vadd.f32 %v4051, %v4497
        %v4550 = vadd.f32 %v4052, %v4502
        %v4551 = vadd.f32 %v4053, %v4505
        %v4552 = vadd.f32 %v4054, %v4510
        %v4553 = vadd.f32 %v4055, %v4513
        %v4554 = vadd.f32 %v4056, %v4518
        %v4555 = vadd.f32 %v4057, %v4521
        %s4556 = scalar_lea.vmem [#allocation2], 24
        %v4557 = vld [vmem:[%s4556] sm:$0xf]
        %v4558 = vld [vmem:[%s4556 + $0x4] sm:$0xf]
        %v4559 = vld [vmem:[%s4556 + $0xc] sm:$0xf]
        %v4560 = vld [vmem:[%s4556 + $0x10] sm:$0xf]
        %v4561 = vld [vmem:[%s4556 + $0x18] sm:$0xf]
        %v4562 = vld [vmem:[%s4556 + $0x1c] sm:$0xf]
        %v4563 = vld [vmem:[%s4556 + $0x24] sm:$0xf]
        %v4564 = vld [vmem:[%s4556 + $0x28] sm:$0xf]
        %v4565 = vld [vmem:[%s4556 + $0x30] sm:$0xf]
        %v4566 = vld [vmem:[%s4556 + $0x34] sm:$0xf]
        %v4567 = vld [vmem:[%s4556 + $0x3c] sm:$0xf]
        %v4568 = vld [vmem:[%s4556 + $0x40] sm:$0xf]
        %v4569 = vld [vmem:[%s4556 + $0x48] sm:$0xf]
        %v4570 = vld [vmem:[%s4556 + $0x4c] sm:$0xf]
        %v4571 = vld [vmem:[%s4556 + $0x54] sm:$0xf]
        %v4572 = vld [vmem:[%s4556 + $0x58] sm:$0xf]
        %v4573 = vld [vmem:[%s4556 + $0x60] sm:$0xf]
        %v4574 = vld [vmem:[%s4556 + $0x64] sm:$0xf]
        %v4575 = vld [vmem:[%s4556 + $0x6c] sm:$0xf]
        %v4576 = vld [vmem:[%s4556 + $0x70] sm:$0xf]
        %v4577 = vld [vmem:[%s4556 + $0x78] sm:$0xf]
        %v4578 = vld [vmem:[%s4556 + $0x7c] sm:$0xf]
        %v4579 = vld [vmem:[%s4556 + $0x84] sm:$0xf]
        %v4580 = vld [vmem:[%s4556 + $0x88] sm:$0xf]
        %v4581 = vld [vmem:[%s4556 + $0x90] sm:$0xf]
        %v4582 = vld [vmem:[%s4556 + $0x94] sm:$0xf]
        %v4583 = vld [vmem:[%s4556 + $0x9c] sm:$0xf]
        %v4584 = vld [vmem:[%s4556 + $0xa0] sm:$0xf]
        %v4585 = vld [vmem:[%s4556 + $0xa8] sm:$0xf]
        %v4586 = vld [vmem:[%s4556 + $0xac] sm:$0xf]
        %v4587 = vld [vmem:[%s4556 + $0xb4] sm:$0xf]
        %v4588 = vld [vmem:[%s4556 + $0xb8] sm:$0xf]
        %s4589 = scalar_lea.vmem [#allocation8], 384
        %v4590 = vld [vmem:[%s4589] sm:$0xf]
        %v4591 = vld [vmem:[%s4589 + $0x4] sm:$0xf]
        %v4592 = vld [vmem:[%s4589 + $0x8] sm:$0xf]
        %v4593 = vld [vmem:[%s4589 + $0xc] sm:$0xf]
        %v4594 = vld [vmem:[%s4589 + $0x10] sm:$0xf]
        %v4595 = vld [vmem:[%s4589 + $0x14] sm:$0xf]
        %v4596 = vld [vmem:[%s4589 + $0x18] sm:$0xf]
        %v4597 = vld [vmem:[%s4589 + $0x1c] sm:$0xf]
        %v4598 = vld [vmem:[%s4589 + $0x20] sm:$0xf]
        %v4599 = vld [vmem:[%s4589 + $0x24] sm:$0xf]
        %v4600 = vld [vmem:[%s4589 + $0x28] sm:$0xf]
        %v4601 = vld [vmem:[%s4589 + $0x2c] sm:$0xf]
        %v4602 = vld [vmem:[%s4589 + $0x30] sm:$0xf]
        %v4603 = vld [vmem:[%s4589 + $0x34] sm:$0xf]
        %v4604 = vld [vmem:[%s4589 + $0x38] sm:$0xf]
        %v4605 = vld [vmem:[%s4589 + $0x3c] sm:$0xf]
        %v4638 = vunpack.c.l.b16 %v4557
        %v4639 = vunpack.c.l.b16 %v4558
        %v4640 = vunpack.c.l.b16 %v4559
        %v4641 = vunpack.c.l.b16 %v4560
        %v4642 = vunpack.c.l.b16 %v4561
        %v4643 = vunpack.c.l.b16 %v4562
        %v4644 = vunpack.c.l.b16 %v4563
        %v4645 = vunpack.c.l.b16 %v4564
        %v4646 = vunpack.c.l.b16 %v4565
        %v4647 = vunpack.c.l.b16 %v4566
        %v4648 = vunpack.c.l.b16 %v4567
        %v4649 = vunpack.c.l.b16 %v4568
        %v4650 = vunpack.c.l.b16 %v4569
        %v4651 = vunpack.c.l.b16 %v4570
        %v4652 = vunpack.c.l.b16 %v4571
        %v4653 = vunpack.c.l.b16 %v4572
        %v4654 = vunpack.c.l.b16 %v4573
        %v4655 = vunpack.c.l.b16 %v4574
        %v4656 = vunpack.c.l.b16 %v4575
        %v4657 = vunpack.c.l.b16 %v4576
        %v4658 = vunpack.c.l.b16 %v4577
        %v4659 = vunpack.c.l.b16 %v4578
        %v4660 = vunpack.c.l.b16 %v4579
        %v4661 = vunpack.c.l.b16 %v4580
        %v4662 = vunpack.c.l.b16 %v4581
        %v4663 = vunpack.c.l.b16 %v4582
        %v4664 = vunpack.c.l.b16 %v4583
        %v4665 = vunpack.c.l.b16 %v4584
        %v4666 = vunpack.c.l.b16 %v4585
        %v4667 = vunpack.c.l.b16 %v4586
        %v4668 = vunpack.c.l.b16 %v4587
        %v4669 = vunpack.c.l.b16 %v4588
        %v4670 = vpack.c.b16 %v4639, %v4638
        %v4671 = vpack.c.b16 %v4641, %v4640
        %v4672 = vpack.c.b16 %v4643, %v4642
        %v4673 = vpack.c.b16 %v4645, %v4644
        %v4674 = vpack.c.b16 %v4647, %v4646
        %v4675 = vpack.c.b16 %v4649, %v4648
        %v4676 = vpack.c.b16 %v4651, %v4650
        %v4677 = vpack.c.b16 %v4653, %v4652
        %v4678 = vpack.c.b16 %v4655, %v4654
        %v4679 = vpack.c.b16 %v4657, %v4656
        %v4680 = vpack.c.b16 %v4659, %v4658
        %v4681 = vpack.c.b16 %v4661, %v4660
        %v4682 = vpack.c.b16 %v4663, %v4662
        %v4683 = vpack.c.b16 %v4665, %v4664
        %v4684 = vpack.c.b16 %v4667, %v4666
        %v4685 = vpack.c.b16 %v4669, %v4668
        %v4718 = vunpack.c.l.b16 %v4590
        %v4719 = vunpack.c.l.b16 %v4591
        %v4720 = vunpack.c.l.b16 %v4592
        %v4721 = vunpack.c.l.b16 %v4593
        %v4722 = vunpack.c.l.b16 %v4594
        %v4723 = vunpack.c.l.b16 %v4595
        %v4724 = vunpack.c.l.b16 %v4596
        %v4725 = vunpack.c.l.b16 %v4597
        %v4726 = vunpack.c.l.b16 %v4598
        %v4727 = vunpack.c.l.b16 %v4599
        %v4728 = vunpack.c.l.b16 %v4600
        %v4729 = vunpack.c.l.b16 %v4601
        %v4730 = vunpack.c.l.b16 %v4602
        %v4731 = vunpack.c.l.b16 %v4603
        %v4732 = vunpack.c.l.b16 %v4604
        %v4733 = vunpack.c.l.b16 %v4605
        %v4734 = vpack.c.b16 %v4719, %v4718
        %v4735 = vpack.c.b16 %v4721, %v4720
        %v4736 = vpack.c.b16 %v4723, %v4722
        %v4737 = vpack.c.b16 %v4725, %v4724
        %v4738 = vpack.c.b16 %v4727, %v4726
        %v4739 = vpack.c.b16 %v4729, %v4728
        %v4740 = vpack.c.b16 %v4731, %v4730
        %v4741 = vpack.c.b16 %v4733, %v4732
        %4750 = vmatprep.subr.bf16.mxu0 0
        %4751 = vmatpush1.bf16.msra.mxu0 %v4734
        %4752 = vmatprep.subr.bf16.mxu0 0
        %4753 = vmatpush1.bf16.msra.mxu0 %v4735
        %4754 = vmatprep.subr.bf16.mxu0 0
        %4755 = vmatpush1.bf16.msra.mxu0 %v4736
        %4756 = vmatprep.subr.bf16.mxu0 0
        %4757 = vmatpush1.bf16.msra.mxu0 %v4737
        %4758 = vmatprep.subr.bf16.mxu0 0
        %4759 = vmatpush1.bf16.msra.mxu0 %v4738
        %4760 = vmatprep.subr.bf16.mxu0 0
        %4761 = vmatpush1.bf16.msra.mxu0 %v4739
        %4762 = vmatprep.subr.bf16.mxu0 0
        %4763 = vmatpush1.bf16.msra.mxu0 %v4740
        %4764 = vmatprep.subr.bf16.mxu0 0
        %4765 = vmatpush1.bf16.msra.mxu0 %v4741
        %4766 = vmatprep.subr.bf16.mxu0 0
        %4767 = vmatpush1.bf16.msra.mxu0 0
        %4768 = vmatprep.subr.bf16.mxu0 0
        %4769 = vmatpush1.bf16.msra.mxu0 0
        %4770 = vmatprep.subr.bf16.mxu0 0
        %4771 = vmatpush1.bf16.msra.mxu0 0
        %4772 = vmatprep.subr.bf16.mxu0 0
        %4773 = vmatpush1.bf16.msra.mxu0 0
        %4774 = vmatprep.subr.bf16.mxu0 0
        %4775 = vmatpush1.bf16.msra.mxu0 0
        %4776 = vmatprep.subr.bf16.mxu0 0
        %4777 = vmatpush1.bf16.msra.mxu0 0
        %4778 = vmatprep.subr.bf16.mxu0 0
        %4779 = vmatpush1.bf16.msra.mxu0 0
        %4780 = vmatprep.subr.bf16.mxu0 0
        %4781 = vmatpush1.bf16.msra.mxu0 0
        %4782 = vmatprep.mubr.bf16.mxu0 0
        %4783 = vmatmul.mubr.bf16.gmra.mrb[0].mxu0 %v4670
        %v4784 = vpop.f32.mrb[0].mxu0
        %v4785 = vadd.f32 0.0, %v4784
        %v4786 = vpop.f32.mrb[0].mxu0
        %v4787 = vpop.f32.mrb[0].mxu0
        %v4788 = vadd.f32 0.0, %v4787
        %v4789 = vpop.f32.mrb[0].mxu0
        %4790 = vmatprep.mubr.bf16.mxu0 0
        %4791 = vmatmul.mubr.bf16.gmra.mrb[0].mxu0 %v4671
        %v4792 = vpop.f32.mrb[0].mxu0
        %v4793 = vadd.f32 0.0, %v4792
        %v4794 = vpop.f32.mrb[0].mxu0
        %v4795 = vpop.f32.mrb[0].mxu0
        %v4796 = vadd.f32 0.0, %v4795
        %v4797 = vpop.f32.mrb[0].mxu0
        %4798 = vmatprep.mubr.bf16.mxu0 0
        %4799 = vmatmul.mubr.bf16.gmra.mrb[0].mxu0 %v4672
        %v4800 = vpop.f32.mrb[0].mxu0
        %v4801 = vadd.f32 0.0, %v4800
        %v4802 = vpop.f32.mrb[0].mxu0
        %v4803 = vpop.f32.mrb[0].mxu0
        %v4804 = vadd.f32 0.0, %v4803
        %v4805 = vpop.f32.mrb[0].mxu0
        %4806 = vmatprep.mubr.bf16.mxu0 0
        %4807 = vmatmul.mubr.bf16.gmra.mrb[0].mxu0 %v4673
        %v4808 = vpop.f32.mrb[0].mxu0
        %v4809 = vadd.f32 0.0, %v4808
        %v4810 = vpop.f32.mrb[0].mxu0
        %v4811 = vpop.f32.mrb[0].mxu0
        %v4812 = vadd.f32 0.0, %v4811
        %v4813 = vpop.f32.mrb[0].mxu0
        %4814 = vmatprep.mubr.bf16.mxu0 0
        %4815 = vmatmul.mubr.bf16.gmra.mrb[0].mxu0 %v4674
        %v4816 = vpop.f32.mrb[0].mxu0
        %v4817 = vadd.f32 0.0, %v4816
        %v4818 = vpop.f32.mrb[0].mxu0
        %v4819 = vpop.f32.mrb[0].mxu0
        %v4820 = vadd.f32 0.0, %v4819
        %v4821 = vpop.f32.mrb[0].mxu0
        %4822 = vmatprep.mubr.bf16.mxu0 0
        %4823 = vmatmul.mubr.bf16.gmra.mrb[0].mxu0 %v4675
        %v4824 = vpop.f32.mrb[0].mxu0
        %v4825 = vadd.f32 0.0, %v4824
        %v4826 = vpop.f32.mrb[0].mxu0
        %v4827 = vpop.f32.mrb[0].mxu0
        %v4828 = vadd.f32 0.0, %v4827
        %v4829 = vpop.f32.mrb[0].mxu0
        %4830 = vmatprep.mubr.bf16.mxu0 0
        %4831 = vmatmul.mubr.bf16.gmra.mrb[0].mxu0 %v4676
        %v4832 = vpop.f32.mrb[0].mxu0
        %v4833 = vadd.f32 0.0, %v4832
        %v4834 = vpop.f32.mrb[0].mxu0
        %v4835 = vpop.f32.mrb[0].mxu0
        %v4836 = vadd.f32 0.0, %v4835
        %v4837 = vpop.f32.mrb[0].mxu0
        %4838 = vmatprep.mubr.bf16.mxu0 0
        %4839 = vmatmul.mubr.bf16.gmra.mrb[0].mxu0 %v4677
        %v4840 = vpop.f32.mrb[0].mxu0
        %v4841 = vadd.f32 0.0, %v4840
        %v4842 = vpop.f32.mrb[0].mxu0
        %v4843 = vpop.f32.mrb[0].mxu0
        %v4844 = vadd.f32 0.0, %v4843
        %v4845 = vpop.f32.mrb[0].mxu0
        %4846 = vmatprep.mubr.bf16.mxu0 0
        %4847 = vmatmul.mubr.bf16.gmra.mrb[0].mxu0 %v4678
        %v4848 = vpop.f32.mrb[0].mxu0
        %v4849 = vadd.f32 0.0, %v4848
        %v4850 = vpop.f32.mrb[0].mxu0
        %v4851 = vpop.f32.mrb[0].mxu0
        %v4852 = vadd.f32 0.0, %v4851
        %v4853 = vpop.f32.mrb[0].mxu0
        %4854 = vmatprep.mubr.bf16.mxu0 0
        %4855 = vmatmul.mubr.bf16.gmra.mrb[0].mxu0 %v4679
        %v4856 = vpop.f32.mrb[0].mxu0
        %v4857 = vadd.f32 0.0, %v4856
        %v4858 = vpop.f32.mrb[0].mxu0
        %v4859 = vpop.f32.mrb[0].mxu0
        %v4860 = vadd.f32 0.0, %v4859
        %v4861 = vpop.f32.mrb[0].mxu0
        %4862 = vmatprep.mubr.bf16.mxu0 0
        %4863 = vmatmul.mubr.bf16.gmra.mrb[0].mxu0 %v4680
        %v4864 = vpop.f32.mrb[0].mxu0
        %v4865 = vadd.f32 0.0, %v4864
        %v4866 = vpop.f32.mrb[0].mxu0
        %v4867 = vpop.f32.mrb[0].mxu0
        %v4868 = vadd.f32 0.0, %v4867
        %v4869 = vpop.f32.mrb[0].mxu0
        %4870 = vmatprep.mubr.bf16.mxu0 0
        %4871 = vmatmul.mubr.bf16.gmra.mrb[0].mxu0 %v4681
        %v4872 = vpop.f32.mrb[0].mxu0
        %v4873 = vadd.f32 0.0, %v4872
        %v4874 = vpop.f32.mrb[0].mxu0
        %v4875 = vpop.f32.mrb[0].mxu0
        %v4876 = vadd.f32 0.0, %v4875
        %v4877 = vpop.f32.mrb[0].mxu0
        %4878 = vmatprep.mubr.bf16.mxu0 0
        %4879 = vmatmul.mubr.bf16.gmra.mrb[0].mxu0 %v4682
        %v4880 = vpop.f32.mrb[0].mxu0
        %v4881 = vadd.f32 0.0, %v4880
        %v4882 = vpop.f32.mrb[0].mxu0
        %v4883 = vpop.f32.mrb[0].mxu0
        %v4884 = vadd.f32 0.0, %v4883
        %v4885 = vpop.f32.mrb[0].mxu0
        %4886 = vmatprep.mubr.bf16.mxu0 0
        %4887 = vmatmul.mubr.bf16.gmra.mrb[0].mxu0 %v4683
        %v4888 = vpop.f32.mrb[0].mxu0
        %v4889 = vadd.f32 0.0, %v4888
        %v4890 = vpop.f32.mrb[0].mxu0
        %v4891 = vpop.f32.mrb[0].mxu0
        %v4892 = vadd.f32 0.0, %v4891
        %v4893 = vpop.f32.mrb[0].mxu0
        %4894 = vmatprep.mubr.bf16.mxu0 0
        %4895 = vmatmul.mubr.bf16.gmra.mrb[0].mxu0 %v4684
        %v4896 = vpop.f32.mrb[0].mxu0
        %v4897 = vadd.f32 0.0, %v4896
        %v4898 = vpop.f32.mrb[0].mxu0
        %v4899 = vpop.f32.mrb[0].mxu0
        %v4900 = vadd.f32 0.0, %v4899
        %v4901 = vpop.f32.mrb[0].mxu0
        %4902 = vmatprep.mubr.bf16.mxu0 0
        %4903 = vmatmul.mubr.bf16.gmra.mrb[0].mxu0 %v4685
        %v4904 = vpop.f32.mrb[0].mxu0
        %v4905 = vadd.f32 0.0, %v4904
        %v4906 = vpop.f32.mrb[0].mxu0
        %v4907 = vpop.f32.mrb[0].mxu0
        %v4908 = vadd.f32 0.0, %v4907
        %v4909 = vpop.f32.mrb[0].mxu0
        %4910 = vdwg.mxu0
        %v4911 = vadd.f32 %v4524, %v4785
        %v4912 = vadd.f32 %v4525, %v4788
        %v4913 = vadd.f32 %v4526, %v4793
        %v4914 = vadd.f32 %v4527, %v4796
        %v4915 = vadd.f32 %v4528, %v4801
        %v4916 = vadd.f32 %v4529, %v4804
        %v4917 = vadd.f32 %v4530, %v4809
        %v4918 = vadd.f32 %v4531, %v4812
        %v4919 = vadd.f32 %v4532, %v4817
        %v4920 = vadd.f32 %v4533, %v4820
        %v4921 = vadd.f32 %v4534, %v4825
        %v4922 = vadd.f32 %v4535, %v4828
        %v4923 = vadd.f32 %v4536, %v4833
        %v4924 = vadd.f32 %v4537, %v4836
        %v4925 = vadd.f32 %v4538, %v4841
        %v4926 = vadd.f32 %v4539, %v4844
        %v4927 = vadd.f32 %v4540, %v4849
        %v4928 = vadd.f32 %v4541, %v4852
        %v4929 = vadd.f32 %v4542, %v4857
        %v4930 = vadd.f32 %v4543, %v4860
        %v4931 = vadd.f32 %v4544, %v4865
        %v4932 = vadd.f32 %v4545, %v4868
        %v4933 = vadd.f32 %v4546, %v4873
        %v4934 = vadd.f32 %v4547, %v4876
        %v4935 = vadd.f32 %v4548, %v4881
        %v4936 = vadd.f32 %v4549, %v4884
        %v4937 = vadd.f32 %v4550, %v4889
        %v4938 = vadd.f32 %v4551, %v4892
        %v4939 = vadd.f32 %v4552, %v4897
        %v4940 = vadd.f32 %v4553, %v4900
        %v4941 = vadd.f32 %v4554, %v4905
        %v4942 = vadd.f32 %v4555, %v4908
        %v4943 = vld [vmem:[%s4556] sm:$0xf]
        %v4944 = vld [vmem:[%s4556 + $0x4] sm:$0xf]
        %v4945 = vld [vmem:[%s4556 + $0x8] sm:$0x1]
        %v4946 = vld [vmem:[%s4556 + $0xc] sm:$0xf]
        %v4947 = vld [vmem:[%s4556 + $0x10] sm:$0xf]
        %v4948 = vld [vmem:[%s4556 + $0x14] sm:$0x1]
        %v4949 = vld [vmem:[%s4556 + $0x18] sm:$0xf]
        %v4950 = vld [vmem:[%s4556 + $0x1c] sm:$0xf]
        %v4951 = vld [vmem:[%s4556 + $0x20] sm:$0x1]
        %v4952 = vld [vmem:[%s4556 + $0x24] sm:$0xf]
        %v4953 = vld [vmem:[%s4556 + $0x28] sm:$0xf]
        %v4954 = vld [vmem:[%s4556 + $0x2c] sm:$0x1]
        %v4955 = vld [vmem:[%s4556 + $0x30] sm:$0xf]
        %v4956 = vld [vmem:[%s4556 + $0x34] sm:$0xf]
        %v4957 = vld [vmem:[%s4556 + $0x38] sm:$0x1]
        %v4958 = vld [vmem:[%s4556 + $0x3c] sm:$0xf]
        %v4959 = vld [vmem:[%s4556 + $0x40] sm:$0xf]
        %v4960 = vld [vmem:[%s4556 + $0x44] sm:$0x1]
        %v4961 = vld [vmem:[%s4556 + $0x48] sm:$0xf]
        %v4962 = vld [vmem:[%s4556 + $0x4c] sm:$0xf]
        %v4963 = vld [vmem:[%s4556 + $0x50] sm:$0x1]
        %v4964 = vld [vmem:[%s4556 + $0x54] sm:$0xf]
        %v4965 = vld [vmem:[%s4556 + $0x58] sm:$0xf]
        %v4966 = vld [vmem:[%s4556 + $0x5c] sm:$0x1]
        %v4967 = vld [vmem:[%s4556 + $0x60] sm:$0xf]
        %v4968 = vld [vmem:[%s4556 + $0x64] sm:$0xf]
        %v4969 = vld [vmem:[%s4556 + $0x68] sm:$0x1]
        %v4970 = vld [vmem:[%s4556 + $0x6c] sm:$0xf]
        %v4971 = vld [vmem:[%s4556 + $0x70] sm:$0xf]
        %v4972 = vld [vmem:[%s4556 + $0x74] sm:$0x1]
        %v4973 = vld [vmem:[%s4556 + $0x78] sm:$0xf]
        %v4974 = vld [vmem:[%s4556 + $0x7c] sm:$0xf]
        %v4975 = vld [vmem:[%s4556 + $0x80] sm:$0x1]
        %v4976 = vld [vmem:[%s4556 + $0x84] sm:$0xf]
        %v4977 = vld [vmem:[%s4556 + $0x88] sm:$0xf]
        %v4978 = vld [vmem:[%s4556 + $0x8c] sm:$0x1]
        %v4979 = vld [vmem:[%s4556 + $0x90] sm:$0xf]
        %v4980 = vld [vmem:[%s4556 + $0x94] sm:$0xf]
        %v4981 = vld [vmem:[%s4556 + $0x98] sm:$0x1]
        %v4982 = vld [vmem:[%s4556 + $0x9c] sm:$0xf]
        %v4983 = vld [vmem:[%s4556 + $0xa0] sm:$0xf]
        %v4984 = vld [vmem:[%s4556 + $0xa4] sm:$0x1]
        %v4985 = vld [vmem:[%s4556 + $0xa8] sm:$0xf]
        %v4986 = vld [vmem:[%s4556 + $0xac] sm:$0xf]
        %v4987 = vld [vmem:[%s4556 + $0xb0] sm:$0x1]
        %v4988 = vld [vmem:[%s4556 + $0xb4] sm:$0xf]
        %v4989 = vld [vmem:[%s4556 + $0xb8] sm:$0xf]
        %v4990 = vld [vmem:[%s4556 + $0xbc] sm:$0x1]
        %v4992 = vshrl.u32 %v4943, 16
        %v4994 = vrot.slane %v4992, 4
        %v4995 = vshll.u32 %v4943, 16
        %v4997 = vrot.slane %v4995, 5
        %v4998 = vor.u32 %v4994, %v4997
        %v4999 = vrot.slane %v4998, 4
        %v5001 = vshll.u32 %v4944, 16
        %v5003 = vrot.slane %v5001, 5
        %v5004 = vsel %vm1453, %v4999, %v5003
        %v5005 = vshrl.u32 %v4944, 16
        %v5007 = vrot.slane %v5005, 4
        %v5008 = vor.u32 %v5007, %v5003
        %v5009 = vrot.slane %v5008, 4
        %v5011 = vshll.u32 %v4945, 16
        %v5013 = vrot.slane %v5011, 5
        %v5014 = vsel %vm1453, %v5009, %v5013
        %v5016 = vshrl.u32 %v4946, 16
        %v5018 = vrot.slane %v5016, 4
        %v5019 = vshll.u32 %v4946, 16
        %v5021 = vrot.slane %v5019, 5
        %v5022 = vor.u32 %v5018, %v5021
        %v5023 = vrot.slane %v5022, 4
        %v5025 = vshll.u32 %v4947, 16
        %v5027 = vrot.slane %v5025, 5
        %v5028 = vsel %vm1453, %v5023, %v5027
        %v5029 = vshrl.u32 %v4947, 16
        %v5031 = vrot.slane %v5029, 4
        %v5032 = vor.u32 %v5031, %v5027
        %v5033 = vrot.slane %v5032, 4
        %v5035 = vshll.u32 %v4948, 16
        %v5037 = vrot.slane %v5035, 5
        %v5038 = vsel %vm1453, %v5033, %v5037
        %v5040 = vshrl.u32 %v4949, 16
        %v5042 = vrot.slane %v5040, 4
        %v5043 = vshll.u32 %v4949, 16
        %v5045 = vrot.slane %v5043, 5
        %v5046 = vor.u32 %v5042, %v5045
        %v5047 = vrot.slane %v5046, 4
        %v5049 = vshll.u32 %v4950, 16
        %v5051 = vrot.slane %v5049, 5
        %v5052 = vsel %vm1453, %v5047, %v5051
        %v5053 = vshrl.u32 %v4950, 16
        %v5055 = vrot.slane %v5053, 4
        %v5056 = vor.u32 %v5055, %v5051
        %v5057 = vrot.slane %v5056, 4
        %v5059 = vshll.u32 %v4951, 16
        %v5061 = vrot.slane %v5059, 5
        %v5062 = vsel %vm1453, %v5057, %v5061
        %v5064 = vshrl.u32 %v4952, 16
        %v5066 = vrot.slane %v5064, 4
        %v5067 = vshll.u32 %v4952, 16
        %v5069 = vrot.slane %v5067, 5
        %v5070 = vor.u32 %v5066, %v5069
        %v5071 = vrot.slane %v5070, 4
        %v5073 = vshll.u32 %v4953, 16
        %v5075 = vrot.slane %v5073, 5
        %v5076 = vsel %vm1453, %v5071, %v5075
        %v5077 = vshrl.u32 %v4953, 16
        %v5079 = vrot.slane %v5077, 4
        %v5080 = vor.u32 %v5079, %v5075
        %v5081 = vrot.slane %v5080, 4
        %v5083 = vshll.u32 %v4954, 16
        %v5085 = vrot.slane %v5083, 5
        %v5086 = vsel %vm1453, %v5081, %v5085
        %v5088 = vshrl.u32 %v4955, 16
        %v5090 = vrot.slane %v5088, 4
        %v5091 = vshll.u32 %v4955, 16
        %v5093 = vrot.slane %v5091, 5
        %v5094 = vor.u32 %v5090, %v5093
        %v5095 = vrot.slane %v5094, 4
        %v5097 = vshll.u32 %v4956, 16
        %v5099 = vrot.slane %v5097, 5
        %v5100 = vsel %vm1453, %v5095, %v5099
        %v5101 = vshrl.u32 %v4956, 16
        %v5103 = vrot.slane %v5101, 4
        %v5104 = vor.u32 %v5103, %v5099
        %v5105 = vrot.slane %v5104, 4
        %v5107 = vshll.u32 %v4957, 16
        %v5109 = vrot.slane %v5107, 5
        %v5110 = vsel %vm1453, %v5105, %v5109
        %v5112 = vshrl.u32 %v4958, 16
        %v5114 = vrot.slane %v5112, 4
        %v5115 = vshll.u32 %v4958, 16
        %v5117 = vrot.slane %v5115, 5
        %v5118 = vor.u32 %v5114, %v5117
        %v5119 = vrot.slane %v5118, 4
        %v5121 = vshll.u32 %v4959, 16
        %v5123 = vrot.slane %v5121, 5
        %v5124 = vsel %vm1453, %v5119, %v5123
        %v5125 = vshrl.u32 %v4959, 16
        %v5127 = vrot.slane %v5125, 4
        %v5128 = vor.u32 %v5127, %v5123
        %v5129 = vrot.slane %v5128, 4
        %v5131 = vshll.u32 %v4960, 16
        %v5133 = vrot.slane %v5131, 5
        %v5134 = vsel %vm1453, %v5129, %v5133
        %v5136 = vshrl.u32 %v4961, 16
        %v5138 = vrot.slane %v5136, 4
        %v5139 = vshll.u32 %v4961, 16
        %v5141 = vrot.slane %v5139, 5
        %v5142 = vor.u32 %v5138, %v5141
        %v5143 = vrot.slane %v5142, 4
        %v5145 = vshll.u32 %v4962, 16
        %v5147 = vrot.slane %v5145, 5
        %v5148 = vsel %vm1453, %v5143, %v5147
        %v5149 = vshrl.u32 %v4962, 16
        %v5151 = vrot.slane %v5149, 4
        %v5152 = vor.u32 %v5151, %v5147
        %v5153 = vrot.slane %v5152, 4
        %v5155 = vshll.u32 %v4963, 16
        %v5157 = vrot.slane %v5155, 5
        %v5158 = vsel %vm1453, %v5153, %v5157
        %v5160 = vshrl.u32 %v4964, 16
        %v5162 = vrot.slane %v5160, 4
        %v5163 = vshll.u32 %v4964, 16
        %v5165 = vrot.slane %v5163, 5
        %v5166 = vor.u32 %v5162, %v5165
        %v5167 = vrot.slane %v5166, 4
        %v5169 = vshll.u32 %v4965, 16
        %v5171 = vrot.slane %v5169, 5
        %v5172 = vsel %vm1453, %v5167, %v5171
        %v5173 = vshrl.u32 %v4965, 16
        %v5175 = vrot.slane %v5173, 4
        %v5176 = vor.u32 %v5175, %v5171
        %v5177 = vrot.slane %v5176, 4
        %v5179 = vshll.u32 %v4966, 16
        %v5181 = vrot.slane %v5179, 5
        %v5182 = vsel %vm1453, %v5177, %v5181
        %v5184 = vshrl.u32 %v4967, 16
        %v5186 = vrot.slane %v5184, 4
        %v5187 = vshll.u32 %v4967, 16
        %v5189 = vrot.slane %v5187, 5
        %v5190 = vor.u32 %v5186, %v5189
        %v5191 = vrot.slane %v5190, 4
        %v5193 = vshll.u32 %v4968, 16
        %v5195 = vrot.slane %v5193, 5
        %v5196 = vsel %vm1453, %v5191, %v5195
        %v5197 = vshrl.u32 %v4968, 16
        %v5199 = vrot.slane %v5197, 4
        %v5200 = vor.u32 %v5199, %v5195
        %v5201 = vrot.slane %v5200, 4
        %v5203 = vshll.u32 %v4969, 16
        %v5205 = vrot.slane %v5203, 5
        %v5206 = vsel %vm1453, %v5201, %v5205
        %v5208 = vshrl.u32 %v4970, 16
        %v5210 = vrot.slane %v5208, 4
        %v5211 = vshll.u32 %v4970, 16
        %v5213 = vrot.slane %v5211, 5
        %v5214 = vor.u32 %v5210, %v5213
        %v5215 = vrot.slane %v5214, 4
        %v5217 = vshll.u32 %v4971, 16
        %v5219 = vrot.slane %v5217, 5
        %v5220 = vsel %vm1453, %v5215, %v5219
        %v5221 = vshrl.u32 %v4971, 16
        %v5223 = vrot.slane %v5221, 4
        %v5224 = vor.u32 %v5223, %v5219
        %v5225 = vrot.slane %v5224, 4
        %v5227 = vshll.u32 %v4972, 16
        %v5229 = vrot.slane %v5227, 5
        %v5230 = vsel %vm1453, %v5225, %v5229
        %v5232 = vshrl.u32 %v4973, 16
        %v5234 = vrot.slane %v5232, 4
        %v5235 = vshll.u32 %v4973, 16
        %v5237 = vrot.slane %v5235, 5
        %v5238 = vor.u32 %v5234, %v5237
        %v5239 = vrot.slane %v5238, 4
        %v5241 = vshll.u32 %v4974, 16
        %v5243 = vrot.slane %v5241, 5
        %v5244 = vsel %vm1453, %v5239, %v5243
        %v5245 = vshrl.u32 %v4974, 16
        %v5247 = vrot.slane %v5245, 4
        %v5248 = vor.u32 %v5247, %v5243
        %v5249 = vrot.slane %v5248, 4
        %v5251 = vshll.u32 %v4975, 16
        %v5253 = vrot.slane %v5251, 5
        %v5254 = vsel %vm1453, %v5249, %v5253
        %v5256 = vshrl.u32 %v4976, 16
        %v5258 = vrot.slane %v5256, 4
        %v5259 = vshll.u32 %v4976, 16
        %v5261 = vrot.slane %v5259, 5
        %v5262 = vor.u32 %v5258, %v5261
        %v5263 = vrot.slane %v5262, 4
        %v5265 = vshll.u32 %v4977, 16
        %v5267 = vrot.slane %v5265, 5
        %v5268 = vsel %vm1453, %v5263, %v5267
        %v5269 = vshrl.u32 %v4977, 16
        %v5271 = vrot.slane %v5269, 4
        %v5272 = vor.u32 %v5271, %v5267
        %v5273 = vrot.slane %v5272, 4
        %v5275 = vshll.u32 %v4978, 16
        %v5277 = vrot.slane %v5275, 5
        %v5278 = vsel %vm1453, %v5273, %v5277
        %v5280 = vshrl.u32 %v4979, 16
        %v5282 = vrot.slane %v5280, 4
        %v5283 = vshll.u32 %v4979, 16
        %v5285 = vrot.slane %v5283, 5
        %v5286 = vor.u32 %v5282, %v5285
        %v5287 = vrot.slane %v5286, 4
        %v5289 = vshll.u32 %v4980, 16
        %v5291 = vrot.slane %v5289, 5
        %v5292 = vsel %vm1453, %v5287, %v5291
        %v5293 = vshrl.u32 %v4980, 16
        %v5295 = vrot.slane %v5293, 4
        %v5296 = vor.u32 %v5295, %v5291
        %v5297 = vrot.slane %v5296, 4
        %v5299 = vshll.u32 %v4981, 16
        %v5301 = vrot.slane %v5299, 5
        %v5302 = vsel %vm1453, %v5297, %v5301
        %v5304 = vshrl.u32 %v4982, 16
        %v5306 = vrot.slane %v5304, 4
        %v5307 = vshll.u32 %v4982, 16
        %v5309 = vrot.slane %v5307, 5
        %v5310 = vor.u32 %v5306, %v5309
        %v5311 = vrot.slane %v5310, 4
        %v5313 = vshll.u32 %v4983, 16
        %v5315 = vrot.slane %v5313, 5
        %v5316 = vsel %vm1453, %v5311, %v5315
        %v5317 = vshrl.u32 %v4983, 16
        %v5319 = vrot.slane %v5317, 4
        %v5320 = vor.u32 %v5319, %v5315
        %v5321 = vrot.slane %v5320, 4
        %v5323 = vshll.u32 %v4984, 16
        %v5325 = vrot.slane %v5323, 5
        %v5326 = vsel %vm1453, %v5321, %v5325
        %v5328 = vshrl.u32 %v4985, 16
        %v5330 = vrot.slane %v5328, 4
        %v5331 = vshll.u32 %v4985, 16
        %v5333 = vrot.slane %v5331, 5
        %v5334 = vor.u32 %v5330, %v5333
        %v5335 = vrot.slane %v5334, 4
        %v5337 = vshll.u32 %v4986, 16
        %v5339 = vrot.slane %v5337, 5
        %v5340 = vsel %vm1453, %v5335, %v5339
        %v5341 = vshrl.u32 %v4986, 16
        %v5343 = vrot.slane %v5341, 4
        %v5344 = vor.u32 %v5343, %v5339
        %v5345 = vrot.slane %v5344, 4
        %v5347 = vshll.u32 %v4987, 16
        %v5349 = vrot.slane %v5347, 5
        %v5350 = vsel %vm1453, %v5345, %v5349
        %v5352 = vshrl.u32 %v4988, 16
        %v5354 = vrot.slane %v5352, 4
        %v5355 = vshll.u32 %v4988, 16
        %v5357 = vrot.slane %v5355, 5
        %v5358 = vor.u32 %v5354, %v5357
        %v5359 = vrot.slane %v5358, 4
        %v5361 = vshll.u32 %v4989, 16
        %v5363 = vrot.slane %v5361, 5
        %v5364 = vsel %vm1453, %v5359, %v5363
        %v5365 = vshrl.u32 %v4989, 16
        %v5367 = vrot.slane %v5365, 4
        %v5368 = vor.u32 %v5367, %v5363
        %v5369 = vrot.slane %v5368, 4
        %v5371 = vshll.u32 %v4990, 16
        %v5373 = vrot.slane %v5371, 5
        %v5374 = vsel %vm1453, %v5369, %v5373
        %s5375 = scalar_lea.vmem [#allocation8], 448
        %v5376 = vld [vmem:[%s5375] sm:$0xf]
        %v5377 = vld [vmem:[%s5375 + $0x4] sm:$0xf]
        %v5378 = vld [vmem:[%s5375 + $0x8] sm:$0xf]
        %v5379 = vld [vmem:[%s5375 + $0xc] sm:$0xf]
        %v5380 = vld [vmem:[%s5375 + $0x10] sm:$0xf]
        %v5381 = vld [vmem:[%s5375 + $0x14] sm:$0xf]
        %v5382 = vld [vmem:[%s5375 + $0x18] sm:$0xf]
        %v5383 = vld [vmem:[%s5375 + $0x1c] sm:$0xf]
        %v5384 = vld [vmem:[%s5375 + $0x20] sm:$0xf]
        %v5385 = vld [vmem:[%s5375 + $0x24] sm:$0xf]
        %v5386 = vld [vmem:[%s5375 + $0x28] sm:$0xf]
        %v5387 = vld [vmem:[%s5375 + $0x2c] sm:$0xf]
        %v5388 = vld [vmem:[%s5375 + $0x30] sm:$0xf]
        %v5389 = vld [vmem:[%s5375 + $0x34] sm:$0xf]
        %v5390 = vld [vmem:[%s5375 + $0x38] sm:$0xf]
        %v5391 = vld [vmem:[%s5375 + $0x3c] sm:$0xf]
        %v5392 = vunpack.c.l.b16 %v5004
        %v5393 = vunpack.c.l.b16 %v5014
        %v5394 = vunpack.c.l.b16 %v5028
        %v5395 = vunpack.c.l.b16 %v5038
        %v5396 = vunpack.c.l.b16 %v5052
        %v5397 = vunpack.c.l.b16 %v5062
        %v5398 = vunpack.c.l.b16 %v5076
        %v5399 = vunpack.c.l.b16 %v5086
        %v5400 = vunpack.c.l.b16 %v5100
        %v5401 = vunpack.c.l.b16 %v5110
        %v5402 = vunpack.c.l.b16 %v5124
        %v5403 = vunpack.c.l.b16 %v5134
        %v5404 = vunpack.c.l.b16 %v5148
        %v5405 = vunpack.c.l.b16 %v5158
        %v5406 = vunpack.c.l.b16 %v5172
        %v5407 = vunpack.c.l.b16 %v5182
        %v5408 = vunpack.c.l.b16 %v5196
        %v5409 = vunpack.c.l.b16 %v5206
        %v5410 = vunpack.c.l.b16 %v5220
        %v5411 = vunpack.c.l.b16 %v5230
        %v5412 = vunpack.c.l.b16 %v5244
        %v5413 = vunpack.c.l.b16 %v5254
        %v5414 = vunpack.c.l.b16 %v5268
        %v5415 = vunpack.c.l.b16 %v5278
        %v5416 = vunpack.c.l.b16 %v5292
        %v5417 = vunpack.c.l.b16 %v5302
        %v5418 = vunpack.c.l.b16 %v5316
        %v5419 = vunpack.c.l.b16 %v5326
        %v5420 = vunpack.c.l.b16 %v5340
        %v5421 = vunpack.c.l.b16 %v5350
        %v5422 = vunpack.c.l.b16 %v5364
        %v5423 = vunpack.c.l.b16 %v5374
        %v5424 = vpack.c.b16 %v5393, %v5392
        %v5425 = vpack.c.b16 %v5395, %v5394
        %v5426 = vpack.c.b16 %v5397, %v5396
        %v5427 = vpack.c.b16 %v5399, %v5398
        %v5428 = vpack.c.b16 %v5401, %v5400
        %v5429 = vpack.c.b16 %v5403, %v5402
        %v5430 = vpack.c.b16 %v5405, %v5404
        %v5431 = vpack.c.b16 %v5407, %v5406
        %v5432 = vpack.c.b16 %v5409, %v5408
        %v5433 = vpack.c.b16 %v5411, %v5410
        %v5434 = vpack.c.b16 %v5413, %v5412
        %v5435 = vpack.c.b16 %v5415, %v5414
        %v5436 = vpack.c.b16 %v5417, %v5416
        %v5437 = vpack.c.b16 %v5419, %v5418
        %v5438 = vpack.c.b16 %v5421, %v5420
        %v5439 = vpack.c.b16 %v5423, %v5422
        %v5472 = vunpack.c.l.b16 %v5376
        %v5473 = vunpack.c.l.b16 %v5377
        %v5474 = vunpack.c.l.b16 %v5378
        %v5475 = vunpack.c.l.b16 %v5379
        %v5476 = vunpack.c.l.b16 %v5380
        %v5477 = vunpack.c.l.b16 %v5381
        %v5478 = vunpack.c.l.b16 %v5382
        %v5479 = vunpack.c.l.b16 %v5383
        %v5480 = vunpack.c.l.b16 %v5384
        %v5481 = vunpack.c.l.b16 %v5385
        %v5482 = vunpack.c.l.b16 %v5386
        %v5483 = vunpack.c.l.b16 %v5387
        %v5484 = vunpack.c.l.b16 %v5388
        %v5485 = vunpack.c.l.b16 %v5389
        %v5486 = vunpack.c.l.b16 %v5390
        %v5487 = vunpack.c.l.b16 %v5391
        %v5488 = vpack.c.b16 %v5473, %v5472
        %v5489 = vpack.c.b16 %v5475, %v5474
        %v5490 = vpack.c.b16 %v5477, %v5476
        %v5491 = vpack.c.b16 %v5479, %v5478
        %v5492 = vpack.c.b16 %v5481, %v5480
        %v5493 = vpack.c.b16 %v5483, %v5482
        %v5494 = vpack.c.b16 %v5485, %v5484
        %v5495 = vpack.c.b16 %v5487, %v5486
        %5504 = vmatprep.subr.bf16.mxu0 0
        %5505 = vmatpush1.bf16.msra.mxu0 %v5488
        %5506 = vmatprep.subr.bf16.mxu0 0
        %5507 = vmatpush1.bf16.msra.mxu0 %v5489
        %5508 = vmatprep.subr.bf16.mxu0 0
        %5509 = vmatpush1.bf16.msra.mxu0 %v5490
        %5510 = vmatprep.subr.bf16.mxu0 0
        %5511 = vmatpush1.bf16.msra.mxu0 %v5491
        %5512 = vmatprep.subr.bf16.mxu0 0
        %5513 = vmatpush1.bf16.msra.mxu0 %v5492
        %5514 = vmatprep.subr.bf16.mxu0 0
        %5515 = vmatpush1.bf16.msra.mxu0 %v5493
        %5516 = vmatprep.subr.bf16.mxu0 0
        %5517 = vmatpush1.bf16.msra.mxu0 %v5494
        %5518 = vmatprep.subr.bf16.mxu0 0
        %5519 = vmatpush1.bf16.msra.mxu0 %v5495
        %5520 = vmatprep.subr.bf16.mxu0 0
        %5521 = vmatpush1.bf16.msra.mxu0 0
        %5522 = vmatprep.subr.bf16.mxu0 0
        %5523 = vmatpush1.bf16.msra.mxu0 0
        %5524 = vmatprep.subr.bf16.mxu0 0
        %5525 = vmatpush1.bf16.msra.mxu0 0
        %5526 = vmatprep.subr.bf16.mxu0 0
        %5527 = vmatpush1.bf16.msra.mxu0 0
        %5528 = vmatprep.subr.bf16.mxu0 0
        %5529 = vmatpush1.bf16.msra.mxu0 0
        %5530 = vmatprep.subr.bf16.mxu0 0
        %5531 = vmatpush1.bf16.msra.mxu0 0
        %5532 = vmatprep.subr.bf16.mxu0 0
        %5533 = vmatpush1.bf16.msra.mxu0 0
        %5534 = vmatprep.subr.bf16.mxu0 0
        %5535 = vmatpush1.bf16.msra.mxu0 0
        %5536 = vmatprep.mubr.bf16.mxu0 0
        %5537 = vmatmul.mubr.bf16.gmra.mrb[0].mxu0 %v5424
        %v5538 = vpop.f32.mrb[0].mxu0
        %v5539 = vadd.f32 0.0, %v5538
        %v5540 = vpop.f32.mrb[0].mxu0
        %v5541 = vpop.f32.mrb[0].mxu0
        %v5542 = vadd.f32 0.0, %v5541
        %v5543 = vpop.f32.mrb[0].mxu0
        %5544 = vmatprep.mubr.bf16.mxu0 0
        %5545 = vmatmul.mubr.bf16.gmra.mrb[0].mxu0 %v5425
        %v5546 = vpop.f32.mrb[0].mxu0
        %v5547 = vadd.f32 0.0, %v5546
        %v5548 = vpop.f32.mrb[0].mxu0
        %v5549 = vpop.f32.mrb[0].mxu0
        %v5550 = vadd.f32 0.0, %v5549
        %v5551 = vpop.f32.mrb[0].mxu0
        %5552 = vmatprep.mubr.bf16.mxu0 0
        %5553 = vmatmul.mubr.bf16.gmra.mrb[0].mxu0 %v5426
        %v5554 = vpop.f32.mrb[0].mxu0
        %v5555 = vadd.f32 0.0, %v5554
        %v5556 = vpop.f32.mrb[0].mxu0
        %v5557 = vpop.f32.mrb[0].mxu0
        %v5558 = vadd.f32 0.0, %v5557
        %v5559 = vpop.f32.mrb[0].mxu0
        %5560 = vmatprep.mubr.bf16.mxu0 0
        %5561 = vmatmul.mubr.bf16.gmra.mrb[0].mxu0 %v5427
        %v5562 = vpop.f32.mrb[0].mxu0
        %v5563 = vadd.f32 0.0, %v5562
        %v5564 = vpop.f32.mrb[0].mxu0
        %v5565 = vpop.f32.mrb[0].mxu0
        %v5566 = vadd.f32 0.0, %v5565
        %v5567 = vpop.f32.mrb[0].mxu0
        %5568 = vmatprep.mubr.bf16.mxu0 0
        %5569 = vmatmul.mubr.bf16.gmra.mrb[0].mxu0 %v5428
        %v5570 = vpop.f32.mrb[0].mxu0
        %v5571 = vadd.f32 0.0, %v5570
        %v5572 = vpop.f32.mrb[0].mxu0
        %v5573 = vpop.f32.mrb[0].mxu0
        %v5574 = vadd.f32 0.0, %v5573
        %v5575 = vpop.f32.mrb[0].mxu0
        %5576 = vmatprep.mubr.bf16.mxu0 0
        %5577 = vmatmul.mubr.bf16.gmra.mrb[0].mxu0 %v5429
        %v5578 = vpop.f32.mrb[0].mxu0
        %v5579 = vadd.f32 0.0, %v5578
        %v5580 = vpop.f32.mrb[0].mxu0
        %v5581 = vpop.f32.mrb[0].mxu0
        %v5582 = vadd.f32 0.0, %v5581
        %v5583 = vpop.f32.mrb[0].mxu0
        %5584 = vmatprep.mubr.bf16.mxu0 0
        %5585 = vmatmul.mubr.bf16.gmra.mrb[0].mxu0 %v5430
        %v5586 = vpop.f32.mrb[0].mxu0
        %v5587 = vadd.f32 0.0, %v5586
        %v5588 = vpop.f32.mrb[0].mxu0
        %v5589 = vpop.f32.mrb[0].mxu0
        %v5590 = vadd.f32 0.0, %v5589
        %v5591 = vpop.f32.mrb[0].mxu0
        %5592 = vmatprep.mubr.bf16.mxu0 0
        %5593 = vmatmul.mubr.bf16.gmra.mrb[0].mxu0 %v5431
        %v5594 = vpop.f32.mrb[0].mxu0
        %v5595 = vadd.f32 0.0, %v5594
        %v5596 = vpop.f32.mrb[0].mxu0
        %v5597 = vpop.f32.mrb[0].mxu0
        %v5598 = vadd.f32 0.0, %v5597
        %v5599 = vpop.f32.mrb[0].mxu0
        %5600 = vmatprep.mubr.bf16.mxu0 0
        %5601 = vmatmul.mubr.bf16.gmra.mrb[0].mxu0 %v5432
        %v5602 = vpop.f32.mrb[0].mxu0
        %v5603 = vadd.f32 0.0, %v5602
        %v5604 = vpop.f32.mrb[0].mxu0
        %v5605 = vpop.f32.mrb[0].mxu0
        %v5606 = vadd.f32 0.0, %v5605
        %v5607 = vpop.f32.mrb[0].mxu0
        %5608 = vmatprep.mubr.bf16.mxu0 0
        %5609 = vmatmul.mubr.bf16.gmra.mrb[0].mxu0 %v5433
        %v5610 = vpop.f32.mrb[0].mxu0
        %v5611 = vadd.f32 0.0, %v5610
        %v5612 = vpop.f32.mrb[0].mxu0
        %v5613 = vpop.f32.mrb[0].mxu0
        %v5614 = vadd.f32 0.0, %v5613
        %v5615 = vpop.f32.mrb[0].mxu0
        %5616 = vmatprep.mubr.bf16.mxu0 0
        %5617 = vmatmul.mubr.bf16.gmra.mrb[0].mxu0 %v5434
        %v5618 = vpop.f32.mrb[0].mxu0
        %v5619 = vadd.f32 0.0, %v5618
        %v5620 = vpop.f32.mrb[0].mxu0
        %v5621 = vpop.f32.mrb[0].mxu0
        %v5622 = vadd.f32 0.0, %v5621
        %v5623 = vpop.f32.mrb[0].mxu0
        %5624 = vmatprep.mubr.bf16.mxu0 0
        %5625 = vmatmul.mubr.bf16.gmra.mrb[0].mxu0 %v5435
        %v5626 = vpop.f32.mrb[0].mxu0
        %v5627 = vadd.f32 0.0, %v5626
        %v5628 = vpop.f32.mrb[0].mxu0
        %v5629 = vpop.f32.mrb[0].mxu0
        %v5630 = vadd.f32 0.0, %v5629
        %v5631 = vpop.f32.mrb[0].mxu0
        %5632 = vmatprep.mubr.bf16.mxu0 0
        %5633 = vmatmul.mubr.bf16.gmra.mrb[0].mxu0 %v5436
        %v5634 = vpop.f32.mrb[0].mxu0
        %v5635 = vadd.f32 0.0, %v5634
        %v5636 = vpop.f32.mrb[0].mxu0
        %v5637 = vpop.f32.mrb[0].mxu0
        %v5638 = vadd.f32 0.0, %v5637
        %v5639 = vpop.f32.mrb[0].mxu0
        %5640 = vmatprep.mubr.bf16.mxu0 0
        %5641 = vmatmul.mubr.bf16.gmra.mrb[0].mxu0 %v5437
        %v5642 = vpop.f32.mrb[0].mxu0
        %v5643 = vadd.f32 0.0, %v5642
        %v5644 = vpop.f32.mrb[0].mxu0
        %v5645 = vpop.f32.mrb[0].mxu0
        %v5646 = vadd.f32 0.0, %v5645
        %v5647 = vpop.f32.mrb[0].mxu0
        %5648 = vmatprep.mubr.bf16.mxu0 0
        %5649 = vmatmul.mubr.bf16.gmra.mrb[0].mxu0 %v5438
        %v5650 = vpop.f32.mrb[0].mxu0
        %v5651 = vadd.f32 0.0, %v5650
        %v5652 = vpop.f32.mrb[0].mxu0
        %v5653 = vpop.f32.mrb[0].mxu0
        %v5654 = vadd.f32 0.0, %v5653
        %v5655 = vpop.f32.mrb[0].mxu0
        %5656 = vmatprep.mubr.bf16.mxu0 0
        %5657 = vmatmul.mubr.bf16.gmra.mrb[0].mxu0 %v5439
        %v5658 = vpop.f32.mrb[0].mxu0
        %v5659 = vadd.f32 0.0, %v5658
        %v5660 = vpop.f32.mrb[0].mxu0
        %v5661 = vpop.f32.mrb[0].mxu0
        %v5662 = vadd.f32 0.0, %v5661
        %v5663 = vpop.f32.mrb[0].mxu0
        %5664 = vdwg.mxu0
        %v5665 = vadd.f32 %v4911, %v5539
        %v5666 = vadd.f32 %v4912, %v5542
        %v5667 = vadd.f32 %v4913, %v5547
        %v5668 = vadd.f32 %v4914, %v5550
        %v5669 = vadd.f32 %v4915, %v5555
        %v5670 = vadd.f32 %v4916, %v5558
        %v5671 = vadd.f32 %v4917, %v5563
        %v5672 = vadd.f32 %v4918, %v5566
        %v5673 = vadd.f32 %v4919, %v5571
        %v5674 = vadd.f32 %v4920, %v5574
        %v5675 = vadd.f32 %v4921, %v5579
        %v5676 = vadd.f32 %v4922, %v5582
        %v5677 = vadd.f32 %v4923, %v5587
        %v5678 = vadd.f32 %v4924, %v5590
        %v5679 = vadd.f32 %v4925, %v5595
        %v5680 = vadd.f32 %v4926, %v5598
        %v5681 = vadd.f32 %v4927, %v5603
        %v5682 = vadd.f32 %v4928, %v5606
        %v5683 = vadd.f32 %v4929, %v5611
        %v5684 = vadd.f32 %v4930, %v5614
        %v5685 = vadd.f32 %v4931, %v5619
        %v5686 = vadd.f32 %v4932, %v5622
        %v5687 = vadd.f32 %v4933, %v5627
        %v5688 = vadd.f32 %v4934, %v5630
        %v5689 = vadd.f32 %v4935, %v5635
        %v5690 = vadd.f32 %v4936, %v5638
        %v5691 = vadd.f32 %v4937, %v5643
        %v5692 = vadd.f32 %v4938, %v5646
        %v5693 = vadd.f32 %v4939, %v5651
        %v5694 = vadd.f32 %v4940, %v5654
        %v5695 = vadd.f32 %v4941, %v5659
        %v5696 = vadd.f32 %v4942, %v5662
        %v5697 = vld [vmem:[%s4556] sm:$0xe]
        %v5698 = vld [vmem:[%s4556 + $0xc] sm:$0xe]
        %v5699 = vld [vmem:[%s4556 + $0x18] sm:$0xe]
        %v5700 = vld [vmem:[%s4556 + $0x24] sm:$0xe]
        %v5701 = vld [vmem:[%s4556 + $0x30] sm:$0xe]
        %v5702 = vld [vmem:[%s4556 + $0x3c] sm:$0xe]
        %v5703 = vld [vmem:[%s4556 + $0x48] sm:$0xe]
        %v5704 = vld [vmem:[%s4556 + $0x54] sm:$0xe]
        %v5705 = vld [vmem:[%s4556 + $0x60] sm:$0xe]
        %v5706 = vld [vmem:[%s4556 + $0x6c] sm:$0xe]
        %v5707 = vld [vmem:[%s4556 + $0x78] sm:$0xe]
        %v5708 = vld [vmem:[%s4556 + $0x84] sm:$0xe]
        %v5709 = vld [vmem:[%s4556 + $0x90] sm:$0xe]
        %v5710 = vld [vmem:[%s4556 + $0x9c] sm:$0xe]
        %v5711 = vld [vmem:[%s4556 + $0xa8] sm:$0xe]
        %v5712 = vld [vmem:[%s4556 + $0xb4] sm:$0xe]
        %v5761 = vrot.slane %v5697, 5
        %v5762 = vrot.slane %v5761, 4
        %v5763 = vrot.slane %v4944, 5
        %v5764 = vsel %vm2483, %v5762, %v5763
        %v5765 = vrot.slane %v5763, 4
        %v5766 = vrot.slane %v4945, 5
        %v5767 = vsel %vm2483, %v5765, %v5766
        %v5768 = vrot.slane %v5698, 5
        %v5769 = vrot.slane %v5768, 4
        %v5770 = vrot.slane %v4947, 5
        %v5771 = vsel %vm2483, %v5769, %v5770
        %v5772 = vrot.slane %v5770, 4
        %v5773 = vrot.slane %v4948, 5
        %v5774 = vsel %vm2483, %v5772, %v5773
        %v5775 = vrot.slane %v5699, 5
        %v5776 = vrot.slane %v5775, 4
        %v5777 = vrot.slane %v4950, 5
        %v5778 = vsel %vm2483, %v5776, %v5777
        %v5779 = vrot.slane %v5777, 4
        %v5780 = vrot.slane %v4951, 5
        %v5781 = vsel %vm2483, %v5779, %v5780
        %v5782 = vrot.slane %v5700, 5
        %v5783 = vrot.slane %v5782, 4
        %v5784 = vrot.slane %v4953, 5
        %v5785 = vsel %vm2483, %v5783, %v5784
        %v5786 = vrot.slane %v5784, 4
        %v5787 = vrot.slane %v4954, 5
        %v5788 = vsel %vm2483, %v5786, %v5787
        %v5789 = vrot.slane %v5701, 5
        %v5790 = vrot.slane %v5789, 4
        %v5791 = vrot.slane %v4956, 5
        %v5792 = vsel %vm2483, %v5790, %v5791
        %v5793 = vrot.slane %v5791, 4
        %v5794 = vrot.slane %v4957, 5
        %v5795 = vsel %vm2483, %v5793, %v5794
        %v5796 = vrot.slane %v5702, 5
        %v5797 = vrot.slane %v5796, 4
        %v5798 = vrot.slane %v4959, 5
        %v5799 = vsel %vm2483, %v5797, %v5798
        %v5800 = vrot.slane %v5798, 4
        %v5801 = vrot.slane %v4960, 5
        %v5802 = vsel %vm2483, %v5800, %v5801
        %v5803 = vrot.slane %v5703, 5
        %v5804 = vrot.slane %v5803, 4
        %v5805 = vrot.slane %v4962, 5
        %v5806 = vsel %vm2483, %v5804, %v5805
        %v5807 = vrot.slane %v5805, 4
        %v5808 = vrot.slane %v4963, 5
        %v5809 = vsel %vm2483, %v5807, %v5808
        %v5810 = vrot.slane %v5704, 5
        %v5811 = vrot.slane %v5810, 4
        %v5812 = vrot.slane %v4965, 5
        %v5813 = vsel %vm2483, %v5811, %v5812
        %v5814 = vrot.slane %v5812, 4
        %v5815 = vrot.slane %v4966, 5
        %v5816 = vsel %vm2483, %v5814, %v5815
        %v5817 = vrot.slane %v5705, 5
        %v5818 = vrot.slane %v5817, 4
        %v5819 = vrot.slane %v4968, 5
        %v5820 = vsel %vm2483, %v5818, %v5819
        %v5821 = vrot.slane %v5819, 4
        %v5822 = vrot.slane %v4969, 5
        %v5823 = vsel %vm2483, %v5821, %v5822
        %v5824 = vrot.slane %v5706, 5
        %v5825 = vrot.slane %v5824, 4
        %v5826 = vrot.slane %v4971, 5
        %v5827 = vsel %vm2483, %v5825, %v5826
        %v5828 = vrot.slane %v5826, 4
        %v5829 = vrot.slane %v4972, 5
        %v5830 = vsel %vm2483, %v5828, %v5829
        %v5831 = vrot.slane %v5707, 5
        %v5832 = vrot.slane %v5831, 4
        %v5833 = vrot.slane %v4974, 5
        %v5834 = vsel %vm2483, %v5832, %v5833
        %v5835 = vrot.slane %v5833, 4
        %v5836 = vrot.slane %v4975, 5
        %v5837 = vsel %vm2483, %v5835, %v5836
        %v5838 = vrot.slane %v5708, 5
        %v5839 = vrot.slane %v5838, 4
        %v5840 = vrot.slane %v4977, 5
        %v5841 = vsel %vm2483, %v5839, %v5840
        %v5842 = vrot.slane %v5840, 4
        %v5843 = vrot.slane %v4978, 5
        %v5844 = vsel %vm2483, %v5842, %v5843
        %v5845 = vrot.slane %v5709, 5
        %v5846 = vrot.slane %v5845, 4
        %v5847 = vrot.slane %v4980, 5
        %v5848 = vsel %vm2483, %v5846, %v5847
        %v5849 = vrot.slane %v5847, 4
        %v5850 = vrot.slane %v4981, 5
        %v5851 = vsel %vm2483, %v5849, %v5850
        %v5852 = vrot.slane %v5710, 5
        %v5853 = vrot.slane %v5852, 4
        %v5854 = vrot.slane %v4983, 5
        %v5855 = vsel %vm2483, %v5853, %v5854
        %v5856 = vrot.slane %v5854, 4
        %v5857 = vrot.slane %v4984, 5
        %v5858 = vsel %vm2483, %v5856, %v5857
        %v5859 = vrot.slane %v5711, 5
        %v5860 = vrot.slane %v5859, 4
        %v5861 = vrot.slane %v4986, 5
        %v5862 = vsel %vm2483, %v5860, %v5861
        %v5863 = vrot.slane %v5861, 4
        %v5864 = vrot.slane %v4987, 5
        %v5865 = vsel %vm2483, %v5863, %v5864
        %v5866 = vrot.slane %v5712, 5
        %v5867 = vrot.slane %v5866, 4
        %v5868 = vrot.slane %v4989, 5
        %v5869 = vsel %vm2483, %v5867, %v5868
        %v5870 = vrot.slane %v5868, 4
        %v5871 = vrot.slane %v4990, 5
        %v5872 = vsel %vm2483, %v5870, %v5871
        %s5873 = scalar_lea.vmem [#allocation8], 512
        %v5874 = vld [vmem:[%s5873] sm:$0xf]
        %v5875 = vld [vmem:[%s5873 + $0x4] sm:$0xf]
        %v5876 = vld [vmem:[%s5873 + $0x8] sm:$0xf]
        %v5877 = vld [vmem:[%s5873 + $0xc] sm:$0xf]
        %v5878 = vld [vmem:[%s5873 + $0x10] sm:$0xf]
        %v5879 = vld [vmem:[%s5873 + $0x14] sm:$0xf]
        %v5880 = vld [vmem:[%s5873 + $0x18] sm:$0xf]
        %v5881 = vld [vmem:[%s5873 + $0x1c] sm:$0xf]
        %v5882 = vld [vmem:[%s5873 + $0x20] sm:$0xf]
        %v5883 = vld [vmem:[%s5873 + $0x24] sm:$0xf]
        %v5884 = vld [vmem:[%s5873 + $0x28] sm:$0xf]
        %v5885 = vld [vmem:[%s5873 + $0x2c] sm:$0xf]
        %v5886 = vld [vmem:[%s5873 + $0x30] sm:$0xf]
        %v5887 = vld [vmem:[%s5873 + $0x34] sm:$0xf]
        %v5888 = vld [vmem:[%s5873 + $0x38] sm:$0xf]
        %v5889 = vld [vmem:[%s5873 + $0x3c] sm:$0xf]
        %v5890 = vunpack.c.l.b16 %v5764
        %v5891 = vunpack.c.l.b16 %v5767
        %v5892 = vunpack.c.l.b16 %v5771
        %v5893 = vunpack.c.l.b16 %v5774
        %v5894 = vunpack.c.l.b16 %v5778
        %v5895 = vunpack.c.l.b16 %v5781
        %v5896 = vunpack.c.l.b16 %v5785
        %v5897 = vunpack.c.l.b16 %v5788
        %v5898 = vunpack.c.l.b16 %v5792
        %v5899 = vunpack.c.l.b16 %v5795
        %v5900 = vunpack.c.l.b16 %v5799
        %v5901 = vunpack.c.l.b16 %v5802
        %v5902 = vunpack.c.l.b16 %v5806
        %v5903 = vunpack.c.l.b16 %v5809
        %v5904 = vunpack.c.l.b16 %v5813
        %v5905 = vunpack.c.l.b16 %v5816
        %v5906 = vunpack.c.l.b16 %v5820
        %v5907 = vunpack.c.l.b16 %v5823
        %v5908 = vunpack.c.l.b16 %v5827
        %v5909 = vunpack.c.l.b16 %v5830
        %v5910 = vunpack.c.l.b16 %v5834
        %v5911 = vunpack.c.l.b16 %v5837
        %v5912 = vunpack.c.l.b16 %v5841
        %v5913 = vunpack.c.l.b16 %v5844
        %v5914 = vunpack.c.l.b16 %v5848
        %v5915 = vunpack.c.l.b16 %v5851
        %v5916 = vunpack.c.l.b16 %v5855
        %v5917 = vunpack.c.l.b16 %v5858
        %v5918 = vunpack.c.l.b16 %v5862
        %v5919 = vunpack.c.l.b16 %v5865
        %v5920 = vunpack.c.l.b16 %v5869
        %v5921 = vunpack.c.l.b16 %v5872
        %v5922 = vpack.c.b16 %v5891, %v5890
        %v5923 = vpack.c.b16 %v5893, %v5892
        %v5924 = vpack.c.b16 %v5895, %v5894
        %v5925 = vpack.c.b16 %v5897, %v5896
        %v5926 = vpack.c.b16 %v5899, %v5898
        %v5927 = vpack.c.b16 %v5901, %v5900
        %v5928 = vpack.c.b16 %v5903, %v5902
        %v5929 = vpack.c.b16 %v5905, %v5904
        %v5930 = vpack.c.b16 %v5907, %v5906
        %v5931 = vpack.c.b16 %v5909, %v5908
        %v5932 = vpack.c.b16 %v5911, %v5910
        %v5933 = vpack.c.b16 %v5913, %v5912
        %v5934 = vpack.c.b16 %v5915, %v5914
        %v5935 = vpack.c.b16 %v5917, %v5916
        %v5936 = vpack.c.b16 %v5919, %v5918
        %v5937 = vpack.c.b16 %v5921, %v5920
        %v5970 = vunpack.c.l.b16 %v5874
        %v5971 = vunpack.c.l.b16 %v5875
        %v5972 = vunpack.c.l.b16 %v5876
        %v5973 = vunpack.c.l.b16 %v5877
        %v5974 = vunpack.c.l.b16 %v5878
        %v5975 = vunpack.c.l.b16 %v5879
        %v5976 = vunpack.c.l.b16 %v5880
        %v5977 = vunpack.c.l.b16 %v5881
        %v5978 = vunpack.c.l.b16 %v5882
        %v5979 = vunpack.c.l.b16 %v5883
        %v5980 = vunpack.c.l.b16 %v5884
        %v5981 = vunpack.c.l.b16 %v5885
        %v5982 = vunpack.c.l.b16 %v5886
        %v5983 = vunpack.c.l.b16 %v5887
        %v5984 = vunpack.c.l.b16 %v5888
        %v5985 = vunpack.c.l.b16 %v5889
        %v5986 = vpack.c.b16 %v5971, %v5970
        %v5987 = vpack.c.b16 %v5973, %v5972
        %v5988 = vpack.c.b16 %v5975, %v5974
        %v5989 = vpack.c.b16 %v5977, %v5976
        %v5990 = vpack.c.b16 %v5979, %v5978
        %v5991 = vpack.c.b16 %v5981, %v5980
        %v5992 = vpack.c.b16 %v5983, %v5982
        %v5993 = vpack.c.b16 %v5985, %v5984
        %6002 = vmatprep.subr.bf16.mxu0 0
        %6003 = vmatpush1.bf16.msra.mxu0 %v5986
        %6004 = vmatprep.subr.bf16.mxu0 0
        %6005 = vmatpush1.bf16.msra.mxu0 %v5987
        %6006 = vmatprep.subr.bf16.mxu0 0
        %6007 = vmatpush1.bf16.msra.mxu0 %v5988
        %6008 = vmatprep.subr.bf16.mxu0 0
        %6009 = vmatpush1.bf16.msra.mxu0 %v5989
        %6010 = vmatprep.subr.bf16.mxu0 0
        %6011 = vmatpush1.bf16.msra.mxu0 %v5990
        %6012 = vmatprep.subr.bf16.mxu0 0
        %6013 = vmatpush1.bf16.msra.mxu0 %v5991
        %6014 = vmatprep.subr.bf16.mxu0 0
        %6015 = vmatpush1.bf16.msra.mxu0 %v5992
        %6016 = vmatprep.subr.bf16.mxu0 0
        %6017 = vmatpush1.bf16.msra.mxu0 %v5993
        %6018 = vmatprep.subr.bf16.mxu0 0
        %6019 = vmatpush1.bf16.msra.mxu0 0
        %6020 = vmatprep.subr.bf16.mxu0 0
        %6021 = vmatpush1.bf16.msra.mxu0 0
        %6022 = vmatprep.subr.bf16.mxu0 0
        %6023 = vmatpush1.bf16.msra.mxu0 0
        %6024 = vmatprep.subr.bf16.mxu0 0
        %6025 = vmatpush1.bf16.msra.mxu0 0
        %6026 = vmatprep.subr.bf16.mxu0 0
        %6027 = vmatpush1.bf16.msra.mxu0 0
        %6028 = vmatprep.subr.bf16.mxu0 0
        %6029 = vmatpush1.bf16.msra.mxu0 0
        %6030 = vmatprep.subr.bf16.mxu0 0
        %6031 = vmatpush1.bf16.msra.mxu0 0
        %6032 = vmatprep.subr.bf16.mxu0 0
        %6033 = vmatpush1.bf16.msra.mxu0 0
        %6034 = vmatprep.mubr.bf16.mxu0 0
        %6035 = vmatmul.mubr.bf16.gmra.mrb[0].mxu0 %v5922
        %v6036 = vpop.f32.mrb[0].mxu0
        %v6037 = vadd.f32 0.0, %v6036
        %v6038 = vpop.f32.mrb[0].mxu0
        %v6039 = vpop.f32.mrb[0].mxu0
        %v6040 = vadd.f32 0.0, %v6039
        %v6041 = vpop.f32.mrb[0].mxu0
        %6042 = vmatprep.mubr.bf16.mxu0 0
        %6043 = vmatmul.mubr.bf16.gmra.mrb[0].mxu0 %v5923
        %v6044 = vpop.f32.mrb[0].mxu0
        %v6045 = vadd.f32 0.0, %v6044
        %v6046 = vpop.f32.mrb[0].mxu0
        %v6047 = vpop.f32.mrb[0].mxu0
        %v6048 = vadd.f32 0.0, %v6047
        %v6049 = vpop.f32.mrb[0].mxu0
        %6050 = vmatprep.mubr.bf16.mxu0 0
        %6051 = vmatmul.mubr.bf16.gmra.mrb[0].mxu0 %v5924
        %v6052 = vpop.f32.mrb[0].mxu0
        %v6053 = vadd.f32 0.0, %v6052
        %v6054 = vpop.f32.mrb[0].mxu0
        %v6055 = vpop.f32.mrb[0].mxu0
        %v6056 = vadd.f32 0.0, %v6055
        %v6057 = vpop.f32.mrb[0].mxu0
        %6058 = vmatprep.mubr.bf16.mxu0 0
        %6059 = vmatmul.mubr.bf16.gmra.mrb[0].mxu0 %v5925
        %v6060 = vpop.f32.mrb[0].mxu0
        %v6061 = vadd.f32 0.0, %v6060
        %v6062 = vpop.f32.mrb[0].mxu0
        %v6063 = vpop.f32.mrb[0].mxu0
        %v6064 = vadd.f32 0.0, %v6063
        %v6065 = vpop.f32.mrb[0].mxu0
        %6066 = vmatprep.mubr.bf16.mxu0 0
        %6067 = vmatmul.mubr.bf16.gmra.mrb[0].mxu0 %v5926
        %v6068 = vpop.f32.mrb[0].mxu0
        %v6069 = vadd.f32 0.0, %v6068
        %v6070 = vpop.f32.mrb[0].mxu0
        %v6071 = vpop.f32.mrb[0].mxu0
        %v6072 = vadd.f32 0.0, %v6071
        %v6073 = vpop.f32.mrb[0].mxu0
        %6074 = vmatprep.mubr.bf16.mxu0 0
        %6075 = vmatmul.mubr.bf16.gmra.mrb[0].mxu0 %v5927
        %v6076 = vpop.f32.mrb[0].mxu0
        %v6077 = vadd.f32 0.0, %v6076
        %v6078 = vpop.f32.mrb[0].mxu0
        %v6079 = vpop.f32.mrb[0].mxu0
        %v6080 = vadd.f32 0.0, %v6079
        %v6081 = vpop.f32.mrb[0].mxu0
        %6082 = vmatprep.mubr.bf16.mxu0 0
        %6083 = vmatmul.mubr.bf16.gmra.mrb[0].mxu0 %v5928
        %v6084 = vpop.f32.mrb[0].mxu0
        %v6085 = vadd.f32 0.0, %v6084
        %v6086 = vpop.f32.mrb[0].mxu0
        %v6087 = vpop.f32.mrb[0].mxu0
        %v6088 = vadd.f32 0.0, %v6087
        %v6089 = vpop.f32.mrb[0].mxu0
        %6090 = vmatprep.mubr.bf16.mxu0 0
        %6091 = vmatmul.mubr.bf16.gmra.mrb[0].mxu0 %v5929
        %v6092 = vpop.f32.mrb[0].mxu0
        %v6093 = vadd.f32 0.0, %v6092
        %v6094 = vpop.f32.mrb[0].mxu0
        %v6095 = vpop.f32.mrb[0].mxu0
        %v6096 = vadd.f32 0.0, %v6095
        %v6097 = vpop.f32.mrb[0].mxu0
        %6098 = vmatprep.mubr.bf16.mxu0 0
        %6099 = vmatmul.mubr.bf16.gmra.mrb[0].mxu0 %v5930
        %v6100 = vpop.f32.mrb[0].mxu0
        %v6101 = vadd.f32 0.0, %v6100
        %v6102 = vpop.f32.mrb[0].mxu0
        %v6103 = vpop.f32.mrb[0].mxu0
        %v6104 = vadd.f32 0.0, %v6103
        %v6105 = vpop.f32.mrb[0].mxu0
        %6106 = vmatprep.mubr.bf16.mxu0 0
        %6107 = vmatmul.mubr.bf16.gmra.mrb[0].mxu0 %v5931
        %v6108 = vpop.f32.mrb[0].mxu0
        %v6109 = vadd.f32 0.0, %v6108
        %v6110 = vpop.f32.mrb[0].mxu0
        %v6111 = vpop.f32.mrb[0].mxu0
        %v6112 = vadd.f32 0.0, %v6111
        %v6113 = vpop.f32.mrb[0].mxu0
        %6114 = vmatprep.mubr.bf16.mxu0 0
        %6115 = vmatmul.mubr.bf16.gmra.mrb[0].mxu0 %v5932
        %v6116 = vpop.f32.mrb[0].mxu0
        %v6117 = vadd.f32 0.0, %v6116
        %v6118 = vpop.f32.mrb[0].mxu0
        %v6119 = vpop.f32.mrb[0].mxu0
        %v6120 = vadd.f32 0.0, %v6119
        %v6121 = vpop.f32.mrb[0].mxu0
        %6122 = vmatprep.mubr.bf16.mxu0 0
        %6123 = vmatmul.mubr.bf16.gmra.mrb[0].mxu0 %v5933
        %v6124 = vpop.f32.mrb[0].mxu0
        %v6125 = vadd.f32 0.0, %v6124
        %v6126 = vpop.f32.mrb[0].mxu0
        %v6127 = vpop.f32.mrb[0].mxu0
        %v6128 = vadd.f32 0.0, %v6127
        %v6129 = vpop.f32.mrb[0].mxu0
        %6130 = vmatprep.mubr.bf16.mxu0 0
        %6131 = vmatmul.mubr.bf16.gmra.mrb[0].mxu0 %v5934
        %v6132 = vpop.f32.mrb[0].mxu0
        %v6133 = vadd.f32 0.0, %v6132
        %v6134 = vpop.f32.mrb[0].mxu0
        %v6135 = vpop.f32.mrb[0].mxu0
        %v6136 = vadd.f32 0.0, %v6135
        %v6137 = vpop.f32.mrb[0].mxu0
        %6138 = vmatprep.mubr.bf16.mxu0 0
        %6139 = vmatmul.mubr.bf16.gmra.mrb[0].mxu0 %v5935
        %v6140 = vpop.f32.mrb[0].mxu0
        %v6141 = vadd.f32 0.0, %v6140
        %v6142 = vpop.f32.mrb[0].mxu0
        %v6143 = vpop.f32.mrb[0].mxu0
        %v6144 = vadd.f32 0.0, %v6143
        %v6145 = vpop.f32.mrb[0].mxu0
        %6146 = vmatprep.mubr.bf16.mxu0 0
        %6147 = vmatmul.mubr.bf16.gmra.mrb[0].mxu0 %v5936
        %v6148 = vpop.f32.mrb[0].mxu0
        %v6149 = vadd.f32 0.0, %v6148
        %v6150 = vpop.f32.mrb[0].mxu0
        %v6151 = vpop.f32.mrb[0].mxu0
        %v6152 = vadd.f32 0.0, %v6151
        %v6153 = vpop.f32.mrb[0].mxu0
        %6154 = vmatprep.mubr.bf16.mxu0 0
        %6155 = vmatmul.mubr.bf16.gmra.mrb[0].mxu0 %v5937
        %v6156 = vpop.f32.mrb[0].mxu0
        %v6157 = vadd.f32 0.0, %v6156
        %v6158 = vpop.f32.mrb[0].mxu0
        %v6159 = vpop.f32.mrb[0].mxu0
        %v6160 = vadd.f32 0.0, %v6159
        %v6161 = vpop.f32.mrb[0].mxu0
        %6162 = vdwg.mxu0
        %v6163 = vadd.f32 %v5665, %v6037
        %v6164 = vadd.f32 %v5666, %v6040
        %v6165 = vadd.f32 %v5667, %v6045
        %v6166 = vadd.f32 %v5668, %v6048
        %v6167 = vadd.f32 %v5669, %v6053
        %v6168 = vadd.f32 %v5670, %v6056
        %v6169 = vadd.f32 %v5671, %v6061
        %v6170 = vadd.f32 %v5672, %v6064
        %v6171 = vadd.f32 %v5673, %v6069
        %v6172 = vadd.f32 %v5674, %v6072
        %v6173 = vadd.f32 %v5675, %v6077
        %v6174 = vadd.f32 %v5676, %v6080
        %v6175 = vadd.f32 %v5677, %v6085
        %v6176 = vadd.f32 %v5678, %v6088
        %v6177 = vadd.f32 %v5679, %v6093
        %v6178 = vadd.f32 %v5680, %v6096
        %v6179 = vadd.f32 %v5681, %v6101
        %v6180 = vadd.f32 %v5682, %v6104
        %v6181 = vadd.f32 %v5683, %v6109
        %v6182 = vadd.f32 %v5684, %v6112
        %v6183 = vadd.f32 %v5685, %v6117
        %v6184 = vadd.f32 %v5686, %v6120
        %v6185 = vadd.f32 %v5687, %v6125
        %v6186 = vadd.f32 %v5688, %v6128
        %v6187 = vadd.f32 %v5689, %v6133
        %v6188 = vadd.f32 %v5690, %v6136
        %v6189 = vadd.f32 %v5691, %v6141
        %v6190 = vadd.f32 %v5692, %v6144
        %v6191 = vadd.f32 %v5693, %v6149
        %v6192 = vadd.f32 %v5694, %v6152
        %v6193 = vadd.f32 %v5695, %v6157
        %v6194 = vadd.f32 %v5696, %v6160
        %v6195 = vld [vmem:[%s4] sm:$0x1]
        %v6197 = vlaneseq
        %v6198 = vshrl.u32 %v6197, 7
        %v6199 = vsub.s32 0, %v6198
        %v6200 = vrot.slane %v6195, %v6199
        %v6202 = vadd.f32 %v6163, %v6200
        %v6203 = vadd.f32 %v6164, %v6200
        %v6204 = vadd.f32 %v6165, %v6200
        %v6205 = vadd.f32 %v6166, %v6200
        %v6206 = vadd.f32 %v6167, %v6200
        %v6207 = vadd.f32 %v6168, %v6200
        %v6208 = vadd.f32 %v6169, %v6200
        %v6209 = vadd.f32 %v6170, %v6200
        %v6210 = vadd.f32 %v6171, %v6200
        %v6211 = vadd.f32 %v6172, %v6200
        %v6212 = vadd.f32 %v6173, %v6200
        %v6213 = vadd.f32 %v6174, %v6200
        %v6214 = vadd.f32 %v6175, %v6200
        %v6215 = vadd.f32 %v6176, %v6200
        %v6216 = vadd.f32 %v6177, %v6200
        %v6217 = vadd.f32 %v6178, %v6200
        %v6218 = vadd.f32 %v6179, %v6200
        %v6219 = vadd.f32 %v6180, %v6200
        %v6220 = vadd.f32 %v6181, %v6200
        %v6221 = vadd.f32 %v6182, %v6200
        %v6222 = vadd.f32 %v6183, %v6200
        %v6223 = vadd.f32 %v6184, %v6200
        %v6224 = vadd.f32 %v6185, %v6200
        %v6225 = vadd.f32 %v6186, %v6200
        %v6226 = vadd.f32 %v6187, %v6200
        %v6227 = vadd.f32 %v6188, %v6200
        %v6228 = vadd.f32 %v6189, %v6200
        %v6229 = vadd.f32 %v6190, %v6200
        %v6230 = vadd.f32 %v6191, %v6200
        %v6231 = vadd.f32 %v6192, %v6200
        %v6232 = vadd.f32 %v6193, %v6200
        %v6233 = vadd.f32 %v6194, %v6200
        %v6234 = vmax.f32 %v6202, 0.0
        %v6235 = vmax.f32 %v6203, 0.0
        %v6236 = vmax.f32 %v6204, 0.0
        %v6237 = vmax.f32 %v6205, 0.0
        %v6238 = vmax.f32 %v6206, 0.0
        %v6239 = vmax.f32 %v6207, 0.0
        %v6240 = vmax.f32 %v6208, 0.0
        %v6241 = vmax.f32 %v6209, 0.0
        %v6242 = vmax.f32 %v6210, 0.0
        %v6243 = vmax.f32 %v6211, 0.0
        %v6244 = vmax.f32 %v6212, 0.0
        %v6245 = vmax.f32 %v6213, 0.0
        %v6246 = vmax.f32 %v6214, 0.0
        %v6247 = vmax.f32 %v6215, 0.0
        %v6248 = vmax.f32 %v6216, 0.0
        %v6249 = vmax.f32 %v6217, 0.0
        %v6250 = vmax.f32 %v6218, 0.0
        %v6251 = vmax.f32 %v6219, 0.0
        %v6252 = vmax.f32 %v6220, 0.0
        %v6253 = vmax.f32 %v6221, 0.0
        %v6254 = vmax.f32 %v6222, 0.0
        %v6255 = vmax.f32 %v6223, 0.0
        %v6256 = vmax.f32 %v6224, 0.0
        %v6257 = vmax.f32 %v6225, 0.0
        %v6258 = vmax.f32 %v6226, 0.0
        %v6259 = vmax.f32 %v6227, 0.0
        %v6260 = vmax.f32 %v6228, 0.0
        %v6261 = vmax.f32 %v6229, 0.0
        %v6262 = vmax.f32 %v6230, 0.0
        %v6263 = vmax.f32 %v6231, 0.0
        %v6264 = vmax.f32 %v6232, 0.0
        %v6265 = vmax.f32 %v6233, 0.0
        %v6266 = vpack.c.bf16 %v6235, %v6234
        %v6267 = vpack.c.bf16 %v6237, %v6236
        %v6268 = vpack.c.bf16 %v6239, %v6238
        %v6269 = vpack.c.bf16 %v6241, %v6240
        %v6270 = vpack.c.bf16 %v6243, %v6242
        %v6271 = vpack.c.bf16 %v6245, %v6244
        %v6272 = vpack.c.bf16 %v6247, %v6246
        %v6273 = vpack.c.bf16 %v6249, %v6248
        %v6274 = vpack.c.bf16 %v6251, %v6250
        %v6275 = vpack.c.bf16 %v6253, %v6252
        %v6276 = vpack.c.bf16 %v6255, %v6254
        %v6277 = vpack.c.bf16 %v6257, %v6256
        %v6278 = vpack.c.bf16 %v6259, %v6258
        %v6279 = vpack.c.bf16 %v6261, %v6260
        %v6280 = vpack.c.bf16 %v6263, %v6262
        %v6281 = vpack.c.bf16 %v6265, %v6264
        %v6282 = vld [vmem:[#allocation9] sm:$0xf]
        %v6283 = vld [vmem:[#allocation9 + $0x4] sm:$0xf]
        %v6284 = vld [vmem:[#allocation9 + $0x8] sm:$0xf]
        %v6285 = vld [vmem:[#allocation9 + $0xc] sm:$0xf]
        %v6286 = vld [vmem:[#allocation9 + $0x10] sm:$0xf]
        %v6287 = vld [vmem:[#allocation9 + $0x14] sm:$0xf]
        %v6288 = vld [vmem:[#allocation9 + $0x18] sm:$0xf]
        %v6289 = vld [vmem:[#allocation9 + $0x1c] sm:$0xf]
        %v6290 = vld [vmem:[#allocation9 + $0x20] sm:$0xf]
        %v6291 = vld [vmem:[#allocation9 + $0x24] sm:$0xf]
        %v6292 = vld [vmem:[#allocation9 + $0x28] sm:$0xf]
        %v6293 = vld [vmem:[#allocation9 + $0x2c] sm:$0xf]
        %v6294 = vld [vmem:[#allocation9 + $0x30] sm:$0xf]
        %v6295 = vld [vmem:[#allocation9 + $0x34] sm:$0xf]
        %v6296 = vld [vmem:[#allocation9 + $0x38] sm:$0xf]
        %v6297 = vld [vmem:[#allocation9 + $0x3c] sm:$0xf]
        %v6298 = vld [vmem:[%s6] sm:$0x1]
        %v6300 = vlaneseq
        %v6301 = vshrl.u32 %v6300, 7
        %v6302 = vsub.s32 0, %v6301
        %v6303 = vrot.slane %v6298, %v6302
        %v6321 = vunpack.c.l.b16 %v6282
        %v6322 = vunpack.c.l.b16 %v6283
        %v6323 = vunpack.c.l.b16 %v6284
        %v6324 = vunpack.c.l.b16 %v6285
        %v6325 = vunpack.c.l.b16 %v6286
        %v6326 = vunpack.c.l.b16 %v6287
        %v6327 = vunpack.c.l.b16 %v6288
        %v6328 = vunpack.c.l.b16 %v6289
        %v6329 = vunpack.c.l.b16 %v6290
        %v6330 = vunpack.c.l.b16 %v6291
        %v6331 = vunpack.c.l.b16 %v6292
        %v6332 = vunpack.c.l.b16 %v6293
        %v6333 = vunpack.c.l.b16 %v6294
        %v6334 = vunpack.c.l.b16 %v6295
        %v6335 = vunpack.c.l.b16 %v6296
        %v6336 = vunpack.c.l.b16 %v6297
        %v6337 = vpack.c.b16 %v6322, %v6321
        %v6338 = vpack.c.b16 %v6324, %v6323
        %v6339 = vpack.c.b16 %v6326, %v6325
        %v6340 = vpack.c.b16 %v6328, %v6327
        %v6341 = vpack.c.b16 %v6330, %v6329
        %v6342 = vpack.c.b16 %v6332, %v6331
        %v6343 = vpack.c.b16 %v6334, %v6333
        %v6344 = vpack.c.b16 %v6336, %v6335
        %6353 = vmatprep.subr.bf16.mxu0 0
        %6354 = vmatpush1.bf16.msra.mxu0 %v6337
        %6355 = vmatprep.subr.bf16.mxu0 0
        %6356 = vmatpush1.bf16.msra.mxu0 %v6338
        %6357 = vmatprep.subr.bf16.mxu0 0
        %6358 = vmatpush1.bf16.msra.mxu0 %v6339
        %6359 = vmatprep.subr.bf16.mxu0 0
        %6360 = vmatpush1.bf16.msra.mxu0 %v6340
        %6361 = vmatprep.subr.bf16.mxu0 0
        %6362 = vmatpush1.bf16.msra.mxu0 %v6341
        %6363 = vmatprep.subr.bf16.mxu0 0
        %6364 = vmatpush1.bf16.msra.mxu0 %v6342
        %6365 = vmatprep.subr.bf16.mxu0 0
        %6366 = vmatpush1.bf16.msra.mxu0 %v6343
        %6367 = vmatprep.subr.bf16.mxu0 0
        %6368 = vmatpush1.bf16.msra.mxu0 %v6344
        %6369 = vmatprep.subr.bf16.mxu0 0
        %6370 = vmatpush1.bf16.msra.mxu0 0
        %6371 = vmatprep.subr.bf16.mxu0 0
        %6372 = vmatpush1.bf16.msra.mxu0 0
        %6373 = vmatprep.subr.bf16.mxu0 0
        %6374 = vmatpush1.bf16.msra.mxu0 0
        %6375 = vmatprep.subr.bf16.mxu0 0
        %6376 = vmatpush1.bf16.msra.mxu0 0
        %6377 = vmatprep.subr.bf16.mxu0 0
        %6378 = vmatpush1.bf16.msra.mxu0 0
        %6379 = vmatprep.subr.bf16.mxu0 0
        %6380 = vmatpush1.bf16.msra.mxu0 0
        %6381 = vmatprep.subr.bf16.mxu0 0
        %6382 = vmatpush1.bf16.msra.mxu0 0
        %6383 = vmatprep.subr.bf16.mxu0 0
        %6384 = vmatpush1.bf16.msra.mxu0 0
        %6385 = vmatprep.mubr.bf16.mxu0 0
        %6386 = vmatmul.mubr.bf16.gmra.mrb[0].mxu0 %v6266
        %v6387 = vpop.f32.mrb[0].mxu0
        %v6388 = vadd.f32 %v6303, %v6387
        %v6389 = vpop.f32.mrb[0].mxu0
        %v6390 = vpop.f32.mrb[0].mxu0
        %v6391 = vadd.f32 %v6303, %v6390
        %v6392 = vpop.f32.mrb[0].mxu0
        %6393 = vmatprep.mubr.bf16.mxu0 0
        %6394 = vmatmul.mubr.bf16.gmra.mrb[0].mxu0 %v6267
        %v6395 = vpop.f32.mrb[0].mxu0
        %v6396 = vadd.f32 %v6303, %v6395
        %v6397 = vpop.f32.mrb[0].mxu0
        %v6398 = vpop.f32.mrb[0].mxu0
        %v6399 = vadd.f32 %v6303, %v6398
        %v6400 = vpop.f32.mrb[0].mxu0
        %6401 = vmatprep.mubr.bf16.mxu0 0
        %6402 = vmatmul.mubr.bf16.gmra.mrb[0].mxu0 %v6268
        %v6403 = vpop.f32.mrb[0].mxu0
        %v6404 = vadd.f32 %v6303, %v6403
        %v6405 = vpop.f32.mrb[0].mxu0
        %v6406 = vpop.f32.mrb[0].mxu0
        %v6407 = vadd.f32 %v6303, %v6406
        %v6408 = vpop.f32.mrb[0].mxu0
        %6409 = vmatprep.mubr.bf16.mxu0 0
        %6410 = vmatmul.mubr.bf16.gmra.mrb[0].mxu0 %v6269
        %v6411 = vpop.f32.mrb[0].mxu0
        %v6412 = vadd.f32 %v6303, %v6411
        %v6413 = vpop.f32.mrb[0].mxu0
        %v6414 = vpop.f32.mrb[0].mxu0
        %v6415 = vadd.f32 %v6303, %v6414
        %v6416 = vpop.f32.mrb[0].mxu0
        %6417 = vmatprep.mubr.bf16.mxu0 0
        %6418 = vmatmul.mubr.bf16.gmra.mrb[0].mxu0 %v6270
        %v6419 = vpop.f32.mrb[0].mxu0
        %v6420 = vadd.f32 %v6303, %v6419
        %v6421 = vpop.f32.mrb[0].mxu0
        %v6422 = vpop.f32.mrb[0].mxu0
        %v6423 = vadd.f32 %v6303, %v6422
        %v6424 = vpop.f32.mrb[0].mxu0
        %6425 = vmatprep.mubr.bf16.mxu0 0
        %6426 = vmatmul.mubr.bf16.gmra.mrb[0].mxu0 %v6271
        %v6427 = vpop.f32.mrb[0].mxu0
        %v6428 = vadd.f32 %v6303, %v6427
        %v6429 = vpop.f32.mrb[0].mxu0
        %v6430 = vpop.f32.mrb[0].mxu0
        %v6431 = vadd.f32 %v6303, %v6430
        %v6432 = vpop.f32.mrb[0].mxu0
        %6433 = vmatprep.mubr.bf16.mxu0 0
        %6434 = vmatmul.mubr.bf16.gmra.mrb[0].mxu0 %v6272
        %v6435 = vpop.f32.mrb[0].mxu0
        %v6436 = vadd.f32 %v6303, %v6435
        %v6437 = vpop.f32.mrb[0].mxu0
        %v6438 = vpop.f32.mrb[0].mxu0
        %v6439 = vadd.f32 %v6303, %v6438
        %v6440 = vpop.f32.mrb[0].mxu0
        %6441 = vmatprep.mubr.bf16.mxu0 0
        %6442 = vmatmul.mubr.bf16.gmra.mrb[0].mxu0 %v6273
        %v6443 = vpop.f32.mrb[0].mxu0
        %v6444 = vadd.f32 %v6303, %v6443
        %v6445 = vpop.f32.mrb[0].mxu0
        %v6446 = vpop.f32.mrb[0].mxu0
        %v6447 = vadd.f32 %v6303, %v6446
        %v6448 = vpop.f32.mrb[0].mxu0
        %6449 = vmatprep.mubr.bf16.mxu0 0
        %6450 = vmatmul.mubr.bf16.gmra.mrb[0].mxu0 %v6274
        %v6451 = vpop.f32.mrb[0].mxu0
        %v6452 = vadd.f32 %v6303, %v6451
        %v6453 = vpop.f32.mrb[0].mxu0
        %v6454 = vpop.f32.mrb[0].mxu0
        %v6455 = vadd.f32 %v6303, %v6454
        %v6456 = vpop.f32.mrb[0].mxu0
        %6457 = vmatprep.mubr.bf16.mxu0 0
        %6458 = vmatmul.mubr.bf16.gmra.mrb[0].mxu0 %v6275
        %v6459 = vpop.f32.mrb[0].mxu0
        %v6460 = vadd.f32 %v6303, %v6459
        %v6461 = vpop.f32.mrb[0].mxu0
        %v6462 = vpop.f32.mrb[0].mxu0
        %v6463 = vadd.f32 %v6303, %v6462
        %v6464 = vpop.f32.mrb[0].mxu0
        %6465 = vmatprep.mubr.bf16.mxu0 0
        %6466 = vmatmul.mubr.bf16.gmra.mrb[0].mxu0 %v6276
        %v6467 = vpop.f32.mrb[0].mxu0
        %v6468 = vadd.f32 %v6303, %v6467
        %v6469 = vpop.f32.mrb[0].mxu0
        %v6470 = vpop.f32.mrb[0].mxu0
        %v6471 = vadd.f32 %v6303, %v6470
        %v6472 = vpop.f32.mrb[0].mxu0
        %6473 = vmatprep.mubr.bf16.mxu0 0
        %6474 = vmatmul.mubr.bf16.gmra.mrb[0].mxu0 %v6277
        %v6475 = vpop.f32.mrb[0].mxu0
        %v6476 = vadd.f32 %v6303, %v6475
        %v6477 = vpop.f32.mrb[0].mxu0
        %v6478 = vpop.f32.mrb[0].mxu0
        %v6479 = vadd.f32 %v6303, %v6478
        %v6480 = vpop.f32.mrb[0].mxu0
        %6481 = vmatprep.mubr.bf16.mxu0 0
        %6482 = vmatmul.mubr.bf16.gmra.mrb[0].mxu0 %v6278
        %v6483 = vpop.f32.mrb[0].mxu0
        %v6484 = vadd.f32 %v6303, %v6483
        %v6485 = vpop.f32.mrb[0].mxu0
        %v6486 = vpop.f32.mrb[0].mxu0
        %v6487 = vadd.f32 %v6303, %v6486
        %v6488 = vpop.f32.mrb[0].mxu0
        %6489 = vmatprep.mubr.bf16.mxu0 0
        %6490 = vmatmul.mubr.bf16.gmra.mrb[0].mxu0 %v6279
        %v6491 = vpop.f32.mrb[0].mxu0
        %v6492 = vadd.f32 %v6303, %v6491
        %v6493 = vpop.f32.mrb[0].mxu0
        %v6494 = vpop.f32.mrb[0].mxu0
        %v6495 = vadd.f32 %v6303, %v6494
        %v6496 = vpop.f32.mrb[0].mxu0
        %6497 = vmatprep.mubr.bf16.mxu0 0
        %6498 = vmatmul.mubr.bf16.gmra.mrb[0].mxu0 %v6280
        %v6499 = vpop.f32.mrb[0].mxu0
        %v6500 = vadd.f32 %v6303, %v6499
        %v6501 = vpop.f32.mrb[0].mxu0
        %v6502 = vpop.f32.mrb[0].mxu0
        %v6503 = vadd.f32 %v6303, %v6502
        %v6504 = vpop.f32.mrb[0].mxu0
        %6505 = vmatprep.mubr.bf16.mxu0 0
        %6506 = vmatmul.mubr.bf16.gmra.mrb[0].mxu0 %v6281
        %v6507 = vpop.f32.mrb[0].mxu0
        %v6508 = vadd.f32 %v6303, %v6507
        %v6509 = vpop.f32.mrb[0].mxu0
        %v6510 = vpop.f32.mrb[0].mxu0
        %v6511 = vadd.f32 %v6303, %v6510
        %v6512 = vpop.f32.mrb[0].mxu0
        %6513 = vdwg.mxu0
        %v6514 = vmax.f32 %v6388, 0.0
        %v6515 = vmax.f32 %v6391, 0.0
        %v6516 = vmax.f32 %v6396, 0.0
        %v6517 = vmax.f32 %v6399, 0.0
        %v6518 = vmax.f32 %v6404, 0.0
        %v6519 = vmax.f32 %v6407, 0.0
        %v6520 = vmax.f32 %v6412, 0.0
        %v6521 = vmax.f32 %v6415, 0.0
        %v6522 = vmax.f32 %v6420, 0.0
        %v6523 = vmax.f32 %v6423, 0.0
        %v6524 = vmax.f32 %v6428, 0.0
        %v6525 = vmax.f32 %v6431, 0.0
        %v6526 = vmax.f32 %v6436, 0.0
        %v6527 = vmax.f32 %v6439, 0.0
        %v6528 = vmax.f32 %v6444, 0.0
        %v6529 = vmax.f32 %v6447, 0.0
        %v6530 = vmax.f32 %v6452, 0.0
        %v6531 = vmax.f32 %v6455, 0.0
        %v6532 = vmax.f32 %v6460, 0.0
        %v6533 = vmax.f32 %v6463, 0.0
        %v6534 = vmax.f32 %v6468, 0.0
        %v6535 = vmax.f32 %v6471, 0.0
        %v6536 = vmax.f32 %v6476, 0.0
        %v6537 = vmax.f32 %v6479, 0.0
        %v6538 = vmax.f32 %v6484, 0.0
        %v6539 = vmax.f32 %v6487, 0.0
        %v6540 = vmax.f32 %v6492, 0.0
        %v6541 = vmax.f32 %v6495, 0.0
        %v6542 = vmax.f32 %v6500, 0.0
        %v6543 = vmax.f32 %v6503, 0.0
        %v6544 = vmax.f32 %v6508, 0.0
        %v6545 = vmax.f32 %v6511, 0.0
        %v6546 = vld [vmem:[%s298] sm:$0xf]
        %v6547 = vld [vmem:[%s298 + $0x4] sm:$0xf]
        %v6548 = vld [vmem:[%s298 + $0x8] sm:$0xf]
        %v6549 = vld [vmem:[%s298 + $0xc] sm:$0xf]
        %v6550 = vld [vmem:[%s298 + $0x10] sm:$0xf]
        %v6551 = vld [vmem:[%s298 + $0x14] sm:$0xf]
        %v6552 = vld [vmem:[%s298 + $0x18] sm:$0xf]
        %v6553 = vld [vmem:[%s298 + $0x1c] sm:$0xf]
        %v6554 = vld [vmem:[%s298 + $0x20] sm:$0xf]
        %v6555 = vld [vmem:[%s298 + $0x24] sm:$0xf]
        %v6556 = vld [vmem:[%s298 + $0x28] sm:$0xf]
        %v6557 = vld [vmem:[%s298 + $0x2c] sm:$0xf]
        %v6558 = vld [vmem:[%s298 + $0x30] sm:$0xf]
        %v6559 = vld [vmem:[%s298 + $0x34] sm:$0xf]
        %v6560 = vld [vmem:[%s298 + $0x38] sm:$0xf]
        %v6561 = vld [vmem:[%s298 + $0x3c] sm:$0xf]
        %v6562 = vld [vmem:[%s298 + $0x40] sm:$0xf]
        %v6563 = vld [vmem:[%s298 + $0x44] sm:$0xf]
        %v6564 = vld [vmem:[%s298 + $0x48] sm:$0xf]
        %v6565 = vld [vmem:[%s298 + $0x4c] sm:$0xf]
        %v6566 = vld [vmem:[%s298 + $0x50] sm:$0xf]
        %v6567 = vld [vmem:[%s298 + $0x54] sm:$0xf]
        %v6568 = vld [vmem:[%s298 + $0x58] sm:$0xf]
        %v6569 = vld [vmem:[%s298 + $0x5c] sm:$0xf]
        %v6570 = vld [vmem:[%s298 + $0x60] sm:$0xf]
        %v6571 = vld [vmem:[%s298 + $0x64] sm:$0xf]
        %v6572 = vld [vmem:[%s298 + $0x68] sm:$0xf]
        %v6573 = vld [vmem:[%s298 + $0x6c] sm:$0xf]
        %v6574 = vld [vmem:[%s298 + $0x70] sm:$0xf]
        %v6575 = vld [vmem:[%s298 + $0x74] sm:$0xf]
        %v6576 = vld [vmem:[%s298 + $0x78] sm:$0xf]
        %v6577 = vld [vmem:[%s298 + $0x7c] sm:$0xf]
        %v6578 = vunpack.c.l.bf16 %v6546
        %v6579 = vunpack.c.l.bf16 %v6547
        %v6580 = vunpack.c.l.bf16 %v6548
        %v6581 = vunpack.c.l.bf16 %v6549
        %v6582 = vunpack.c.l.bf16 %v6550
        %v6583 = vunpack.c.l.bf16 %v6551
        %v6584 = vunpack.c.l.bf16 %v6552
        %v6585 = vunpack.c.l.bf16 %v6553
        %v6586 = vunpack.c.l.bf16 %v6554
        %v6587 = vunpack.c.l.bf16 %v6555
        %v6588 = vunpack.c.l.bf16 %v6556
        %v6589 = vunpack.c.l.bf16 %v6557
        %v6590 = vunpack.c.l.bf16 %v6558
        %v6591 = vunpack.c.l.bf16 %v6559
        %v6592 = vunpack.c.l.bf16 %v6560
        %v6593 = vunpack.c.l.bf16 %v6561
        %v6594 = vunpack.c.l.bf16 %v6562
        %v6595 = vunpack.c.l.bf16 %v6563
        %v6596 = vunpack.c.l.bf16 %v6564
        %v6597 = vunpack.c.l.bf16 %v6565
        %v6598 = vunpack.c.l.bf16 %v6566
        %v6599 = vunpack.c.l.bf16 %v6567
        %v6600 = vunpack.c.l.bf16 %v6568
        %v6601 = vunpack.c.l.bf16 %v6569
        %v6602 = vunpack.c.l.bf16 %v6570
        %v6603 = vunpack.c.l.bf16 %v6571
        %v6604 = vunpack.c.l.bf16 %v6572
        %v6605 = vunpack.c.l.bf16 %v6573
        %v6606 = vunpack.c.l.bf16 %v6574
        %v6607 = vunpack.c.l.bf16 %v6575
        %v6608 = vunpack.c.l.bf16 %v6576
        %v6609 = vunpack.c.l.bf16 %v6577
        %v6610 = vadd.f32 %v6514, %v6578
        %v6611 = vadd.f32 %v6515, %v6579
        %v6612 = vadd.f32 %v6516, %v6580
        %v6613 = vadd.f32 %v6517, %v6581
        %v6614 = vadd.f32 %v6518, %v6582
        %v6615 = vadd.f32 %v6519, %v6583
        %v6616 = vadd.f32 %v6520, %v6584
        %v6617 = vadd.f32 %v6521, %v6585
        %v6618 = vadd.f32 %v6522, %v6586
        %v6619 = vadd.f32 %v6523, %v6587
        %v6620 = vadd.f32 %v6524, %v6588
        %v6621 = vadd.f32 %v6525, %v6589
        %v6622 = vadd.f32 %v6526, %v6590
        %v6623 = vadd.f32 %v6527, %v6591
        %v6624 = vadd.f32 %v6528, %v6592
        %v6625 = vadd.f32 %v6529, %v6593
        %v6626 = vadd.f32 %v6530, %v6594
        %v6627 = vadd.f32 %v6531, %v6595
        %v6628 = vadd.f32 %v6532, %v6596
        %v6629 = vadd.f32 %v6533, %v6597
        %v6630 = vadd.f32 %v6534, %v6598
        %v6631 = vadd.f32 %v6535, %v6599
        %v6632 = vadd.f32 %v6536, %v6600
        %v6633 = vadd.f32 %v6537, %v6601
        %v6634 = vadd.f32 %v6538, %v6602
        %v6635 = vadd.f32 %v6539, %v6603
        %v6636 = vadd.f32 %v6540, %v6604
        %v6637 = vadd.f32 %v6541, %v6605
        %v6638 = vadd.f32 %v6542, %v6606
        %v6639 = vadd.f32 %v6543, %v6607
        %v6640 = vadd.f32 %v6544, %v6608
        %v6641 = vadd.f32 %v6545, %v6609
        %v6642 = vpack.c.bf16 %v6611, %v6610
        %v6643 = vpack.c.bf16 %v6613, %v6612
        %v6644 = vpack.c.bf16 %v6615, %v6614
        %v6645 = vpack.c.bf16 %v6617, %v6616
        %v6646 = vpack.c.bf16 %v6619, %v6618
        %v6647 = vpack.c.bf16 %v6621, %v6620
        %v6648 = vpack.c.bf16 %v6623, %v6622
        %v6649 = vpack.c.bf16 %v6625, %v6624
        %v6650 = vpack.c.bf16 %v6627, %v6626
        %v6651 = vpack.c.bf16 %v6629, %v6628
        %v6652 = vpack.c.bf16 %v6631, %v6630
        %v6653 = vpack.c.bf16 %v6633, %v6632
        %v6654 = vpack.c.bf16 %v6635, %v6634
        %v6655 = vpack.c.bf16 %v6637, %v6636
        %v6656 = vpack.c.bf16 %v6639, %v6638
        %v6657 = vpack.c.bf16 %v6641, %v6640
        %v6674 = vunpack.c.l.b16 %v6642
        %v6675 = vunpack.c.h.b16 %v6642
        %v6676 = vunpack.c.l.b16 %v6643
        %v6677 = vunpack.c.h.b16 %v6643
        %v6678 = vunpack.c.l.b16 %v6644
        %v6679 = vunpack.c.h.b16 %v6644
        %v6680 = vunpack.c.l.b16 %v6645
        %v6681 = vunpack.c.h.b16 %v6645
        %v6682 = vunpack.c.l.b16 %v6646
        %v6683 = vunpack.c.h.b16 %v6646
        %v6684 = vunpack.c.l.b16 %v6647
        %v6685 = vunpack.c.h.b16 %v6647
        %v6686 = vunpack.c.l.b16 %v6648
        %v6687 = vunpack.c.h.b16 %v6648
        %v6688 = vunpack.c.l.b16 %v6649
        %v6689 = vunpack.c.h.b16 %v6649
        %v6690 = vunpack.c.l.b16 %v6650
        %v6691 = vunpack.c.h.b16 %v6650
        %v6692 = vunpack.c.l.b16 %v6651
        %v6693 = vunpack.c.h.b16 %v6651
        %v6694 = vunpack.c.l.b16 %v6652
        %v6695 = vunpack.c.h.b16 %v6652
        %v6696 = vunpack.c.l.b16 %v6653
        %v6697 = vunpack.c.h.b16 %v6653
        %v6698 = vunpack.c.l.b16 %v6654
        %v6699 = vunpack.c.h.b16 %v6654
        %v6700 = vunpack.c.l.b16 %v6655
        %v6701 = vunpack.c.h.b16 %v6655
        %v6702 = vunpack.c.l.b16 %v6656
        %v6703 = vunpack.c.h.b16 %v6656
        %v6704 = vunpack.c.l.b16 %v6657
        %v6705 = vunpack.c.h.b16 %v6657
        %v6706 = vpack.c.b16 %v6674, %v6674
        %v6707 = vpack.c.b16 %v6675, %v6675
        %v6708 = vpack.c.b16 %v6676, %v6676
        %v6709 = vpack.c.b16 %v6677, %v6677
        %v6710 = vpack.c.b16 %v6678, %v6678
        %v6711 = vpack.c.b16 %v6679, %v6679
        %v6712 = vpack.c.b16 %v6680, %v6680
        %v6713 = vpack.c.b16 %v6681, %v6681
        %v6714 = vpack.c.b16 %v6682, %v6682
        %v6715 = vpack.c.b16 %v6683, %v6683
        %v6716 = vpack.c.b16 %v6684, %v6684
        %v6717 = vpack.c.b16 %v6685, %v6685
        %v6718 = vpack.c.b16 %v6686, %v6686
        %v6719 = vpack.c.b16 %v6687, %v6687
        %v6720 = vpack.c.b16 %v6688, %v6688
        %v6721 = vpack.c.b16 %v6689, %v6689
        %v6722 = vpack.c.b16 %v6690, %v6690
        %v6723 = vpack.c.b16 %v6691, %v6691
        %v6724 = vpack.c.b16 %v6692, %v6692
        %v6725 = vpack.c.b16 %v6693, %v6693
        %v6726 = vpack.c.b16 %v6694, %v6694
        %v6727 = vpack.c.b16 %v6695, %v6695
        %v6728 = vpack.c.b16 %v6696, %v6696
        %v6729 = vpack.c.b16 %v6697, %v6697
        %v6730 = vpack.c.b16 %v6698, %v6698
        %v6731 = vpack.c.b16 %v6699, %v6699
        %v6732 = vpack.c.b16 %v6700, %v6700
        %v6733 = vpack.c.b16 %v6701, %v6701
        %v6734 = vpack.c.b16 %v6702, %v6702
        %v6735 = vpack.c.b16 %v6703, %v6703
        %v6736 = vpack.c.b16 %v6704, %v6704
        %v6737 = vpack.c.b16 %v6705, %v6705
        %6770 = vst [vmem:[%s340] sm:$0xf] %v6706
        %6771 = vst [vmem:[%s340 + $0x4] sm:$0xf] %v6707
        %6772 = vst [vmem:[%s340 + $0x8] sm:$0xf] %v6708
        %6773 = vst [vmem:[%s340 + $0xc] sm:$0xf] %v6709
        %6774 = vst [vmem:[%s340 + $0x10] sm:$0xf] %v6710
        %6775 = vst [vmem:[%s340 + $0x14] sm:$0xf] %v6711
        %6776 = vst [vmem:[%s340 + $0x18] sm:$0xf] %v6712
        %6777 = vst [vmem:[%s340 + $0x1c] sm:$0xf] %v6713
        %6778 = vst [vmem:[%s340 + $0x20] sm:$0xf] %v6714
        %6779 = vst [vmem:[%s340 + $0x24] sm:$0xf] %v6715
        %6780 = vst [vmem:[%s340 + $0x28] sm:$0xf] %v6716
        %6781 = vst [vmem:[%s340 + $0x2c] sm:$0xf] %v6717
        %6782 = vst [vmem:[%s340 + $0x30] sm:$0xf] %v6718
        %6783 = vst [vmem:[%s340 + $0x34] sm:$0xf] %v6719
        %6784 = vst [vmem:[%s340 + $0x38] sm:$0xf] %v6720
        %6785 = vst [vmem:[%s340 + $0x3c] sm:$0xf] %v6721
        %6786 = vst [vmem:[%s340 + $0x40] sm:$0xf] %v6722
        %6787 = vst [vmem:[%s340 + $0x44] sm:$0xf] %v6723
        %6788 = vst [vmem:[%s340 + $0x48] sm:$0xf] %v6724
        %6789 = vst [vmem:[%s340 + $0x4c] sm:$0xf] %v6725
        %6790 = vst [vmem:[%s340 + $0x50] sm:$0xf] %v6726
        %6791 = vst [vmem:[%s340 + $0x54] sm:$0xf] %v6727
        %6792 = vst [vmem:[%s340 + $0x58] sm:$0xf] %v6728
        %6793 = vst [vmem:[%s340 + $0x5c] sm:$0xf] %v6729
        %6794 = vst [vmem:[%s340 + $0x60] sm:$0xf] %v6730
        %6795 = vst [vmem:[%s340 + $0x64] sm:$0xf] %v6731
        %6796 = vst [vmem:[%s340 + $0x68] sm:$0xf] %v6732
        %6797 = vst [vmem:[%s340 + $0x6c] sm:$0xf] %v6733
        %6798 = vst [vmem:[%s340 + $0x70] sm:$0xf] %v6734
        %6799 = vst [vmem:[%s340 + $0x74] sm:$0xf] %v6735
        %6800 = vst [vmem:[%s340 + $0x78] sm:$0xf] %v6736
        %6801 = vst [vmem:[%s340 + $0x7c] sm:$0xf] %v6737
        %s6802 = sand.u32 %s186, 1
        %s6803 = scalar_lea.sflag [#allocation5], %s6802
        %s6804 = sand.u32 %s186, 1
        %s6805 = smul.addr %s6804, 128
        %s6806 = scalar_lea.vmem [#allocation11], %s6805
        // Predicated region
        $region65: #{tpu_custom_call.1} parent=47 // pred_check
          %p6807 = pneg %p196
        $region66: #{tpu_custom_call.1} parent=47 // pred_check_branch
          %6809 = sbr.rel (%p6807) target = $region68
        $region67: #{tpu_custom_call.1} parent=47 // pred_region
          %s6811 = ssub.s32 2048, 2048
          %6812 = vsyncadd %s6803, %s6811
          %s6813 = smul.addr %s26, 32
          %s6814 = smul.addr %s6813, 64
          %s6815 = scalar_lea.hbm %s7, %s6814
          %s6816 = sshll.u32 %s6806, 4
          %s6817 = int_to_ptr.vmem [resolvable:$true] %s6816
          %6822 = dma.vmem_to_hbm [thread:$0]  %s6817, 2048, %s6815, %s6803, 64, 64, 4
        $region68: #{tpu_custom_call.1} parent=47 // pred_fallthru
          _
      $region48: #{tpu_custom_call.1} parent=5 // pred_fallthru
        _
      %p6823 = scmp.le.s32.totalorder 2, %s21
      // Predicated region
      $region69: #{tpu_custom_call.1} parent=5 // pred_check
        %p6824 = pneg %p6823
      $region70: #{tpu_custom_call.1} parent=5 // pred_check_branch
        %6826 = sbr.rel (%p6824) target = $region72
      $region71: #{tpu_custom_call.1} parent=5 // pred_region
        %s6827 = ssub.s32 %s21, 2
        // Predicated region
        $region73: #{tpu_custom_call.1} parent=71 // pred_check
          %p6828 = pneg %p202
        $region74: #{tpu_custom_call.1} parent=71 // pred_check_branch
          %6830 = sbr.rel (%p6828) target = $region76
        $region75: #{tpu_custom_call.1} parent=71 // pred_region
          %s6831 = sand.u32 %s187, 1
          %s6832 = scalar_lea.sflag [#allocation5], %s6831
          %s6833 = sand.u32 %s187, 1
          %s6834 = smul.addr %s6833, 128
          %s6835 = scalar_lea.vmem [#allocation11], %s6834
          %6836 = dma.done %s6832, 2048
        $region76: #{tpu_custom_call.1} parent=71 // pred_fallthru
          _
      $region72: #{tpu_custom_call.1} parent=5 // pred_fallthru
        _
    $region6: #{tpu_custom_call.1} parent=1 // loop_footer
      %s25 = sadd.s32 1, %s21
    $region7: #{tpu_custom_call.1} parent=1 // loop_footer_branch
      %20 = sbr.rel target = $region3
    $region8: #{tpu_custom_call.1} parent=1 // loop_exit
      _
    %6837 = vsyncpa [#allocation4], 1
    %s6838 = scalar_lea.sflag [#allocation4], 1
    %6839 = vsyncpa %s6838, 1
    %6840 = vsyncpa [#allocation7], 1
    %6841 = vsyncpa [#allocation10], 1
    %6842 = vsyncpa [#allocation5], 1
    %s6843 = scalar_lea.sflag [#allocation5], 1
    %6844 = vsyncpa %s6843, 1

</llo_original>
